<compile_context>
chip_gen: v6e
topology: v6e:2x2x1
jax: 0.10.0
libtpu: 0.0.40
codegen_flags: <defaults>
</compile_context>

<pallas_src>
import functools

import jax
import jax.numpy as jnp
import numpy as np
from jax.experimental import pallas as pl
from jax.experimental.pallas import tpu as pltpu

MARGIN = 128          # halo margin, lane-aligned (>= wp + 1 for all layers here)
CIN_PAD = 16          # stem input channels padded to a full bf16 sublane group


def _round_up(x, m):
    return (x + m - 1) // m * m


def _geom(n, h, w):
    """Static layout geometry for an (n, h, w) activation grid."""
    hp, wp = h + 2, w + 2
    slab = _round_up(hp * wp, 128)            # per-image padded flat area, lane-aligned
    return hp, wp, slab, n * slab             # (hp, wp, slab, P)


# ---------------------------------------------------------------------------
# The single fused kernel
# ---------------------------------------------------------------------------
def _resnet_kernel(
        # inputs -------------------------------------------------------------
        xm_ref,
        stem_w_ref, stem_s_ref, stem_b_ref,
        b1c1_w_ref, b1c1_s_ref, b1c1_b_ref,
        b1c2_w_ref, b1c2_s_ref, b1c2_b_ref,
        b2c1_w_ref, b2c1_s_ref, b2c1_b_ref,
        b2ds_w_ref, b2ds_s_ref, b2ds_b_ref,
        b2c2_w_ref, b2c2_s_ref, b2c2_b_ref,
        fc_w_ref, fc_b_ref,
        mask1_ref, gather_ref, scatter_ref, pool_ref,
        # outputs ------------------------------------------------------------
        logits_ref,
        # scratch (VMEM-resident inter-layer activations) ----------------------
        a1_ref, a2_ref, a3_ref, b2_ref,
        *, offsets1, offsets2, p1, p2, c1):
    f32 = jnp.float32

    # Halo margins / dead zones must read as exact zeros.
    for r in (a1_ref, a2_ref, a3_ref, b2_ref):
        r[...] = jnp.zeros(r.shape, r.dtype)

    mask1 = mask1_ref[...]                                  # [1, P1] f32

    def stacked_taps(src_ref, offsets, p):
        """[9*Cin, P] bf16: the 9 shifted halo windows stacked along K."""
        return jnp.concatenate(
            [src_ref[:, pl.ds(MARGIN + off, p)] for off in offsets], axis=0)

    def conv_bn(src_ref, w_ref, s_ref, b_ref, offsets, p):
        st = stacked_taps(src_ref, offsets, p)
        y = jnp.dot(w_ref[...], st, preferred_element_type=f32)
        return y * s_ref[...] + b_ref[...]

    # ---- stem: conv3x3(s1) + BN + ReLU --------------------------------------
    y = conv_bn(xm_ref, stem_w_ref, stem_s_ref, stem_b_ref, offsets1, p1)
    y = jnp.maximum(y, 0.0) * mask1
    a1_ref[:, pl.ds(MARGIN, p1)] = y.astype(a1_ref.dtype)

    # ---- BasicBlock 1 (identity shortcut) -----------------------------------
    y = conv_bn(a1_ref, b1c1_w_ref, b1c1_s_ref, b1c1_b_ref, offsets1, p1)
    y = jnp.maximum(y, 0.0) * mask1
    a2_ref[:, pl.ds(MARGIN, p1)] = y.astype(a2_ref.dtype)

    y = conv_bn(a2_ref, b1c2_w_ref, b1c2_s_ref, b1c2_b_ref, offsets1, p1)
    y = y + a1_ref[:, pl.ds(MARGIN, p1)].astype(f32)        # residual
    y = jnp.maximum(y, 0.0) * mask1
    a3_ref[:, pl.ds(MARGIN, p1)] = y.astype(a3_ref.dtype)

    # ---- BasicBlock 2, conv1 (stride 2) + 1x1-s2 projection shortcut --------
    st = stacked_taps(a3_ref, offsets1, p1)                             # [9*C1, P1]
    taps = jnp.dot(st, gather_ref[...], preferred_element_type=f32)     # gather on MXU
    taps = taps.astype(jnp.bfloat16)                                    # exact (0/1 gather)
    y = jnp.dot(b2c1_w_ref[...], taps, preferred_element_type=f32)      # [C2, NDQ]
    y = jnp.maximum(y * b2c1_s_ref[...] + b2c1_b_ref[...], 0.0)

    centre = taps[4 * c1:5 * c1, :]                                     # stride-2 samples
    ds = jnp.dot(b2ds_w_ref[...], centre, preferred_element_type=f32)
    ds = ds * b2ds_s_ref[...] + b2ds_b_ref[...]                         # [C2, NDQ]

    # scatter conv1 output into the padded quarter-res layout (masking for free)
    y_pad = jnp.dot(y.astype(jnp.bfloat16), scatter_ref[...],
                    preferred_element_type=f32)
    b2_ref[:, pl.ds(MARGIN, p2)] = y_pad.astype(b2_ref.dtype)

    # ---- BasicBlock 2, conv2 + projection shortcut + ReLU --------------------
    y = conv_bn(b2_ref, b2c2_w_ref, b2c2_s_ref, b2c2_b_ref, offsets2, p2)
    ds_pad = jnp.dot(ds.astype(jnp.bfloat16), scatter_ref[...],
                     preferred_element_type=f32)
    a4 = jnp.maximum(y + ds_pad, 0.0)                                   # [C2, P2]

    # ---- GAP (masked mean as a matmul) + FC head ------------------------------
    pooled = jnp.dot(a4.astype(jnp.bfloat16), pool_ref[...],
                     preferred_element_type=f32)                        # [C2, Npad]
    logits = jnp.dot(fc_w_ref[...], pooled.astype(jnp.bfloat16),
                     preferred_element_type=f32) + fc_b_ref[...]
    logits_ref[...] = logits


# ---------------------------------------------------------------------------
# Parameters (inference-mode BN folded to scale/bias) + constant layout matrices
# ---------------------------------------------------------------------------
def _conv3x3_flat(key, cin, cout, cin_pad=None):
    cin_pad = cin if cin_pad is None else cin_pad
    w = jax.random.normal(key, (9, cout, cin), jnp.float32) * (2.0 / (9 * cin)) ** 0.5
    w = jnp.pad(w, ((0, 0), (0, 0), (0, cin_pad - cin)))
    # stacked-taps layout: column index = tap * cin_pad + cin
    return jnp.transpose(w, (1, 0, 2)).reshape(cout, 9 * cin_pad).astype(jnp.bfloat16)


def _folded_bn(key, c, eps=1e-5):
    gamma = jnp.ones((c,), jnp.float32)
    beta = jnp.zeros((c,), jnp.float32)
    mean = jax.random.normal(key, (c,), jnp.float32) * 0.1
    var = jnp.abs(jax.random.normal(jax.random.fold_in(key, 1), (c,), jnp.float32)) * 0.5 + 0.5
    scale = gamma / jnp.sqrt(var + eps)
    bias = beta - mean * scale
    return scale.reshape(c, 1), bias.reshape(c, 1)


def _layout_constants(n, h, w):
    """Border mask, stride-2 gather, quarter-res scatter and pooling matrices."""
    _, wp1, slab1, p1 = _geom(n, h, w)
    h2, w2 = h // 2, w // 2
    _, wp2, slab2, p2 = _geom(n, h2, w2)
    ndq_pad = _round_up(n * h2 * w2, 128)
    n_pad = _round_up(n, 128)
    inv_hw = 1.0 / (h2 * w2)

    mask1 = np.zeros((1, p1), np.float32)
    gather = np.zeros((p1, ndq_pad), np.float32)
    scatter = np.zeros((ndq_pad, p2), np.float32)
    pool = np.zeros((p2, n_pad), np.float32)

    for img in range(n):
        b1, b2 = img * slab1, img * slab2
        for i in range(h):
            for j in range(w):
                mask1[0, b1 + (i + 1) * wp1 + (j + 1)] = 1.0
        for i2 in range(h2):
            for j2 in range(w2):
                dense = img * (h2 * w2) + i2 * w2 + j2
                gather[b1 + (2 * i2 + 1) * wp1 + (2 * j2 + 1), dense] = 1.0
                scatter[dense, b2 + (i2 + 1) * wp2 + (j2 + 1)] = 1.0
                pool[b2 + (i2 + 1) * wp2 + (j2 + 1), img] = inv_hw

    return dict(mask1=jnp.asarray(mask1),
                gather=jnp.asarray(gather, jnp.bfloat16),
                scatter=jnp.asarray(scatter, jnp.bfloat16),
                pool=jnp.asarray(pool, jnp.bfloat16))


def init_params(key, *, num_classes, n, h, w, c_in=3, c1=16, c2=32):
    assert h % 2 == 0 and w % 2 == 0, "stride-2 block needs even spatial dims"
    ks = jax.random.split(key, 12)
    nc_pad = _round_up(num_classes, 8)
    p = {}
    p["stem_w"] = _conv3x3_flat(ks[0], c_in, c1, cin_pad=CIN_PAD)
    p["stem_s"], p["stem_b"] = _folded_bn(ks[1], c1)
    p["b1c1_w"] = _conv3x3_flat(ks[2], c1, c1)
    p["b1c1_s"], p["b1c1_b"] = _folded_bn(ks[3], c1)
    p["b1c2_w"] = _conv3x3_flat(ks[4], c1, c1)
    p["b1c2_s"], p["b1c2_b"] = _folded_bn(ks[5], c1)
    p["b2c1_w"] = _conv3x3_flat(ks[6], c1, c2)
    p["b2c1_s"], p["b2c1_b"] = _folded_bn(ks[7], c2)
    p["b2c2_w"] = _conv3x3_flat(ks[8], c2, c2)
    p["b2c2_s"], p["b2c2_b"] = _folded_bn(ks[9], c2)
    p["b2ds_w"] = (jax.random.normal(ks[10], (c2, c1), jnp.float32)
                   * (2.0 / c1) ** 0.5).astype(jnp.bfloat16)
    p["b2ds_s"], p["b2ds_b"] = _folded_bn(jax.random.fold_in(ks[10], 7), c2)
    fc_w = jax.random.normal(ks[11], (num_classes, c2), jnp.float32) * (1.0 / c2) ** 0.5
    p["fc_w"] = jnp.pad(fc_w, ((0, nc_pad - num_classes), (0, 0))).astype(jnp.bfloat16)
    p["fc_b"] = jnp.zeros((nc_pad, 1), jnp.float32)
    p.update(_layout_constants(n, h, w))
    return p


# ---------------------------------------------------------------------------
# Forward pass (one pallas_call; only the input layout transform stays in XLA)
# ---------------------------------------------------------------------------
def _prep_input(x_nchw):
    n, c, h, w = x_nchw.shape
    hp, wp, slab, p1 = _geom(n, h, w)
    x = jnp.transpose(x_nchw, (1, 0, 2, 3)).astype(jnp.bfloat16)      # [C, N, H, W]
    x = jnp.pad(x, ((0, CIN_PAD - c), (0, 0), (1, 1), (1, 1)))        # channel + spatial pad
    x = x.reshape(CIN_PAD, n, hp * wp)
    x = jnp.pad(x, ((0, 0), (0, 0), (0, slab - hp * wp)))             # per-image dead zone
    x = x.reshape(CIN_PAD, p1)
    return jnp.pad(x, ((0, 0), (MARGIN, MARGIN)))                     # lane-aligned halo margins


def resnet_forward(x_nchw, params, *, num_classes):
    n, _, h, w = x_nchw.shape
    _, wp1, _, p1 = _geom(n, h, w)
    h2, w2 = h // 2, w // 2
    _, wp2, _, p2 = _geom(n, h2, w2)
    c1 = params["b1c1_s"].shape[0]
    c2 = params["b2c2_s"].shape[0]
    nc_pad, n_pad = params["fc_w"].shape[0], params["pool"].shape[1]
    assert MARGIN >= wp1 + 1 and MARGIN >= wp2 + 1

    offsets1 = tuple((kh - 1) * wp1 + (kw - 1) for kh in range(3) for kw in range(3))
    offsets2 = tuple((kh - 1) * wp2 + (kw - 1) for kh in range(3) for kw in range(3))

    xm = _prep_input(x_nchw)

    order = ("stem_w", "stem_s", "stem_b",
             "b1c1_w", "b1c1_s", "b1c1_b",
             "b1c2_w", "b1c2_s", "b1c2_b",
             "b2c1_w", "b2c1_s", "b2c1_b",
             "b2ds_w", "b2ds_s", "b2ds_b",
             "b2c2_w", "b2c2_s", "b2c2_b",
             "fc_w", "fc_b",
             "mask1", "gather", "scatter", "pool")
    args = [xm] + [params[k] for k in order]
    in_specs = [pl.BlockSpec(a.shape, lambda i: (0, 0)) for a in args]   # all 2-D, whole-block

    kernel = functools.partial(_resnet_kernel, offsets1=offsets1, offsets2=offsets2,
                               p1=p1, p2=p2, c1=c1)

    logits_pad = pl.pallas_call(
        kernel,
        out_shape=jax.ShapeDtypeStruct((nc_pad, n_pad), jnp.float32),
        grid=(1,),
        in_specs=in_specs,
        out_specs=pl.BlockSpec((nc_pad, n_pad), lambda i: (0, 0)),
        scratch_shapes=[
            pltpu.VMEM((c1, 2 * MARGIN + p1), jnp.bfloat16),   # a1 (stem out)
            pltpu.VMEM((c1, 2 * MARGIN + p1), jnp.bfloat16),   # a2 (block-1 mid)
            pltpu.VMEM((c1, 2 * MARGIN + p1), jnp.bfloat16),   # a3 (block-1 out)
            pltpu.VMEM((c2, 2 * MARGIN + p2), jnp.bfloat16),   # b1 (block-2 mid)
        ],
        compiler_params=pltpu.CompilerParams(dimension_semantics=("arbitrary",)),
    )(*args)

    return jnp.transpose(logits_pad[:num_classes, :n])         # [N, num_classes]


if __name__ == "__main__":
    key = jax.random.PRNGKey(0)
    k_param, k_in = jax.random.split(key)

    num_classes = 10
    N, C, H, W = 2, 3, 16, 16
    params = init_params(k_param, num_classes=num_classes, n=N, h=H, w=W)

    # NCHW input, matching the PyTorch module's convention.
    x = jax.random.normal(k_in, (N, C, H, W), jnp.float32)

    fwd = jax.jit(functools.partial(resnet_forward, num_classes=num_classes))
    logits = jax.block_until_ready(fwd(x, params))
    assert logits.shape == (N, num_classes)
    assert bool(jnp.all(jnp.isfinite(logits)))
    print("KERNEL_OK")
</pallas_src>

<mosaic_0001>
module attributes {stable_mosaic.version = 11 : i64} {
  func.func @_resnet_kernel(%arg0: i32, %arg1: memref<16x1024xbf16, #tpu.memory_space<vmem>>, %arg2: memref<16x144xbf16, #tpu.memory_space<vmem>>, %arg3: memref<16x1xf32, #tpu.memory_space<vmem>>, %arg4: memref<16x1xf32, #tpu.memory_space<vmem>>, %arg5: memref<16x144xbf16, #tpu.memory_space<vmem>>, %arg6: memref<16x1xf32, #tpu.memory_space<vmem>>, %arg7: memref<16x1xf32, #tpu.memory_space<vmem>>, %arg8: memref<16x144xbf16, #tpu.memory_space<vmem>>, %arg9: memref<16x1xf32, #tpu.memory_space<vmem>>, %arg10: memref<16x1xf32, #tpu.memory_space<vmem>>, %arg11: memref<32x144xbf16, #tpu.memory_space<vmem>>, %arg12: memref<32x1xf32, #tpu.memory_space<vmem>>, %arg13: memref<32x1xf32, #tpu.memory_space<vmem>>, %arg14: memref<32x16xbf16, #tpu.memory_space<vmem>>, %arg15: memref<32x1xf32, #tpu.memory_space<vmem>>, %arg16: memref<32x1xf32, #tpu.memory_space<vmem>>, %arg17: memref<32x288xbf16, #tpu.memory_space<vmem>>, %arg18: memref<32x1xf32, #tpu.memory_space<vmem>>, %arg19: memref<32x1xf32, #tpu.memory_space<vmem>>, %arg20: memref<16x32xbf16, #tpu.memory_space<vmem>>, %arg21: memref<16x1xf32, #tpu.memory_space<vmem>>, %arg22: memref<1x768xf32, #tpu.memory_space<vmem>>, %arg23: memref<768x128xbf16, #tpu.memory_space<vmem>>, %arg24: memref<128x256xbf16, #tpu.memory_space<vmem>>, %arg25: memref<256x128xbf16, #tpu.memory_space<vmem>>, %arg26: memref<16x128xf32, #tpu.memory_space<vmem>>, %arg27: memref<16x1024xbf16, #tpu.memory_space<vmem>>, %arg28: memref<16x1024xbf16, #tpu.memory_space<vmem>>, %arg29: memref<16x1024xbf16, #tpu.memory_space<vmem>>, %arg30: memref<32x512xbf16, #tpu.memory_space<vmem>>) attributes {dimension_semantics = [#tpu.dimension_semantics<arbitrary>], iteration_bounds = array<i64: 1>, scalar_prefetch = 0 : i64, scratch_operands = 4 : i64, tpu.core_type = #tpu.core_type<tc>, window_params = [{pipeline_mode = #tpu.pipeline_mode<synchronous>, transform_indices = @transform_0, window_bounds = array<i64: 16, 1024>}, {pipeline_mode = #tpu.pipeline_mode<synchronous>, transform_indices = @transform_1, window_bounds = array<i64: 16, 144>}, {pipeline_mode = #tpu.pipeline_mode<synchronous>, transform_indices = @transform_2, window_bounds = array<i64: 16, 1>}, {pipeline_mode = #tpu.pipeline_mode<synchronous>, transform_indices = @transform_3, window_bounds = array<i64: 16, 1>}, {pipeline_mode = #tpu.pipeline_mode<synchronous>, transform_indices = @transform_4, window_bounds = array<i64: 16, 144>}, {pipeline_mode = #tpu.pipeline_mode<synchronous>, transform_indices = @transform_5, window_bounds = array<i64: 16, 1>}, {pipeline_mode = #tpu.pipeline_mode<synchronous>, transform_indices = @transform_6, window_bounds = array<i64: 16, 1>}, {pipeline_mode = #tpu.pipeline_mode<synchronous>, transform_indices = @transform_7, window_bounds = array<i64: 16, 144>}, {pipeline_mode = #tpu.pipeline_mode<synchronous>, transform_indices = @transform_8, window_bounds = array<i64: 16, 1>}, {pipeline_mode = #tpu.pipeline_mode<synchronous>, transform_indices = @transform_9, window_bounds = array<i64: 16, 1>}, {pipeline_mode = #tpu.pipeline_mode<synchronous>, transform_indices = @transform_10, window_bounds = array<i64: 32, 144>}, {pipeline_mode = #tpu.pipeline_mode<synchronous>, transform_indices = @transform_11, window_bounds = array<i64: 32, 1>}, {pipeline_mode = #tpu.pipeline_mode<synchronous>, transform_indices = @transform_12, window_bounds = array<i64: 32, 1>}, {pipeline_mode = #tpu.pipeline_mode<synchronous>, transform_indices = @transform_13, window_bounds = array<i64: 32, 16>}, {pipeline_mode = #tpu.pipeline_mode<synchronous>, transform_indices = @transform_14, window_bounds = array<i64: 32, 1>}, {pipeline_mode = #tpu.pipeline_mode<synchronous>, transform_indices = @transform_15, window_bounds = array<i64: 32, 1>}, {pipeline_mode = #tpu.pipeline_mode<synchronous>, transform_indices = @transform_16, window_bounds = array<i64: 32, 288>}, {pipeline_mode = #tpu.pipeline_mode<synchronous>, transform_indices = @transform_17, window_bounds = array<i64: 32, 1>}, {pipeline_mode = #tpu.pipeline_mode<synchronous>, transform_indices = @transform_18, window_bounds = array<i64: 32, 1>}, {pipeline_mode = #tpu.pipeline_mode<synchronous>, transform_indices = @transform_19, window_bounds = array<i64: 16, 32>}, {pipeline_mode = #tpu.pipeline_mode<synchronous>, transform_indices = @transform_20, window_bounds = array<i64: 16, 1>}, {pipeline_mode = #tpu.pipeline_mode<synchronous>, transform_indices = @transform_21, window_bounds = array<i64: 1, 768>}, {pipeline_mode = #tpu.pipeline_mode<synchronous>, transform_indices = @transform_22, window_bounds = array<i64: 768, 128>}, {pipeline_mode = #tpu.pipeline_mode<synchronous>, transform_indices = @transform_23, window_bounds = array<i64: 128, 256>}, {pipeline_mode = #tpu.pipeline_mode<synchronous>, transform_indices = @transform_24, window_bounds = array<i64: 256, 128>}, {pipeline_mode = #tpu.pipeline_mode<synchronous>, transform_indices = @transform_25, window_bounds = array<i64: 16, 128>}]} {
    %cst = arith.constant 0.000000e+00 : bf16
    %0 = vector.broadcast %cst : bf16 to vector<16x1024xbf16>
    %c0 = arith.constant 0 : index
    %c0_0 = arith.constant 0 : index
    %1 = vector.load %arg27[%c0, %c0_0] : memref<16x1024xbf16, #tpu.memory_space<vmem>>, vector<16x1024xbf16>
    tpu.vector_store %arg27[%c0, %c0_0], %0 {strides = array<i32>} : memref<16x1024xbf16, #tpu.memory_space<vmem>>, vector<16x1024xbf16>,
    %cst_1 = arith.constant 0.000000e+00 : bf16
    %2 = vector.broadcast %cst_1 : bf16 to vector<16x1024xbf16>
    %c0_2 = arith.constant 0 : index
    %c0_3 = arith.constant 0 : index
    %3 = vector.load %arg28[%c0_2, %c0_3] : memref<16x1024xbf16, #tpu.memory_space<vmem>>, vector<16x1024xbf16>
    tpu.vector_store %arg28[%c0_2, %c0_3], %2 {strides = array<i32>} : memref<16x1024xbf16, #tpu.memory_space<vmem>>, vector<16x1024xbf16>,
    %cst_4 = arith.constant 0.000000e+00 : bf16
    %4 = vector.broadcast %cst_4 : bf16 to vector<16x1024xbf16>
    %c0_5 = arith.constant 0 : index
    %c0_6 = arith.constant 0 : index
    %5 = vector.load %arg29[%c0_5, %c0_6] : memref<16x1024xbf16, #tpu.memory_space<vmem>>, vector<16x1024xbf16>
    tpu.vector_store %arg29[%c0_5, %c0_6], %4 {strides = array<i32>} : memref<16x1024xbf16, #tpu.memory_space<vmem>>, vector<16x1024xbf16>,
    %cst_7 = arith.constant 0.000000e+00 : bf16
    %6 = vector.broadcast %cst_7 : bf16 to vector<32x512xbf16>
    %c0_8 = arith.constant 0 : index
    %c0_9 = arith.constant 0 : index
    %7 = vector.load %arg30[%c0_8, %c0_9] : memref<32x512xbf16, #tpu.memory_space<vmem>>, vector<32x512xbf16>
    tpu.vector_store %arg30[%c0_8, %c0_9], %6 {strides = array<i32>} : memref<32x512xbf16, #tpu.memory_space<vmem>>, vector<32x512xbf16>,
    %c0_10 = arith.constant 0 : index
    %c0_11 = arith.constant 0 : index
    %8 = vector.load %arg22[%c0_10, %c0_11] : memref<1x768xf32, #tpu.memory_space<vmem>>, vector<1x768xf32>
    %c0_12 = arith.constant 0 : index
    %c109 = arith.constant 109 : index
    %9 = vector.load %arg1[%c0_12, %c109] : memref<16x1024xbf16, #tpu.memory_space<vmem>>, vector<16x768xbf16>
    %c0_13 = arith.constant 0 : index
    %c110 = arith.constant 110 : index
    %10 = vector.load %arg1[%c0_13, %c110] : memref<16x1024xbf16, #tpu.memory_space<vmem>>, vector<16x768xbf16>
    %c0_14 = arith.constant 0 : index
    %c111 = arith.constant 111 : index
    %11 = vector.load %arg1[%c0_14, %c111] : memref<16x1024xbf16, #tpu.memory_space<vmem>>, vector<16x768xbf16>
    %c0_15 = arith.constant 0 : index
    %c127 = arith.constant 127 : index
    %12 = vector.load %arg1[%c0_15, %c127] : memref<16x1024xbf16, #tpu.memory_space<vmem>>, vector<16x768xbf16>
    %c0_16 = arith.constant 0 : index
    %c128 = arith.constant 128 : index
    %13 = vector.load %arg1[%c0_16, %c128] : memref<16x1024xbf16, #tpu.memory_space<vmem>>, vector<16x768xbf16>
    %c0_17 = arith.constant 0 : index
    %c129 = arith.constant 129 : index
    %14 = vector.load %arg1[%c0_17, %c129] : memref<16x1024xbf16, #tpu.memory_space<vmem>>, vector<16x768xbf16>
    %c0_18 = arith.constant 0 : index
    %c145 = arith.constant 145 : index
    %15 = vector.load %arg1[%c0_18, %c145] : memref<16x1024xbf16, #tpu.memory_space<vmem>>, vector<16x768xbf16>
    %c0_19 = arith.constant 0 : index
    %c146 = arith.constant 146 : index
    %16 = vector.load %arg1[%c0_19, %c146] : memref<16x1024xbf16, #tpu.memory_space<vmem>>, vector<16x768xbf16>
    %c0_20 = arith.constant 0 : index
    %c147 = arith.constant 147 : index
    %17 = vector.load %arg1[%c0_20, %c147] : memref<16x1024xbf16, #tpu.memory_space<vmem>>, vector<16x768xbf16>
    %18 = tpu.concatenate %9, %10, %11, %12, %13, %14, %15, %16, %17 in 0 : vector<16x768xbf16>, vector<16x768xbf16>, vector<16x768xbf16>, vector<16x768xbf16>, vector<16x768xbf16>, vector<16x768xbf16>, vector<16x768xbf16>, vector<16x768xbf16>, vector<16x768xbf16> -> vector<144x768xbf16>
    %c0_21 = arith.constant 0 : index
    %c0_22 = arith.constant 0 : index
    %19 = vector.load %arg2[%c0_21, %c0_22] : memref<16x144xbf16, #tpu.memory_space<vmem>>, vector<16x144xbf16>
    %cst_23 = arith.constant dense<0.000000e+00> : vector<16x768xf32>
    %20 = tpu.matmul %19, %18, %cst_23 {dimension_numbers = #tpu.dot_dimension_numbers<[1], [0], [0], [1], [0, 0, 1, 1], [], []>} : vector<16x144xbf16>, vector<144x768xbf16>, vector<16x768xf32> -> vector<16x768xf32>
    %c0_24 = arith.constant 0 : index
    %c0_25 = arith.constant 0 : index
    %21 = vector.load %arg3[%c0_24, %c0_25] : memref<16x1xf32, #tpu.memory_space<vmem>>, vector<16x1xf32>
    %22 = vector.broadcast %21 : vector<16x1xf32> to vector<16x768xf32>
    %23 = arith.mulf %20, %22 : vector<16x768xf32>
    %c0_26 = arith.constant 0 : index
    %c0_27 = arith.constant 0 : index
    %24 = vector.load %arg4[%c0_26, %c0_27] : memref<16x1xf32, #tpu.memory_space<vmem>>, vector<16x1xf32>
    %25 = vector.broadcast %24 : vector<16x1xf32> to vector<16x768xf32>
    %26 = arith.addf %23, %25 : vector<16x768xf32>
    %cst_28 = arith.constant 0.000000e+00 : f32
    %27 = vector.broadcast %cst_28 : f32 to vector<16x768xf32>
    %28 = arith.maximumf %26, %27 : vector<16x768xf32>
    %29 = vector.broadcast %8 : vector<1x768xf32> to vector<16x768xf32>
    %30 = arith.mulf %28, %29 : vector<16x768xf32>
    %31 = arith.truncf %30 : vector<16x768xf32> to vector<16x768xbf16>
    %c0_29 = arith.constant 0 : index
    %c128_30 = arith.constant 128 : index
    %32 = vector.load %arg27[%c0_29, %c128_30] : memref<16x1024xbf16, #tpu.memory_space<vmem>>, vector<16x768xbf16>
    tpu.vector_store %arg27[%c0_29, %c128_30], %31 {strides = array<i32>} : memref<16x1024xbf16, #tpu.memory_space<vmem>>, vector<16x768xbf16>,
    %c0_31 = arith.constant 0 : index
    %c109_32 = arith.constant 109 : index
    %33 = vector.load %arg27[%c0_31, %c109_32] : memref<16x1024xbf16, #tpu.memory_space<vmem>>, vector<16x768xbf16>
    %c0_33 = arith.constant 0 : index
    %c110_34 = arith.constant 110 : index
    %34 = vector.load %arg27[%c0_33, %c110_34] : memref<16x1024xbf16, #tpu.memory_space<vmem>>, vector<16x768xbf16>
    %c0_35 = arith.constant 0 : index
    %c111_36 = arith.constant 111 : index
    %35 = vector.load %arg27[%c0_35, %c111_36] : memref<16x1024xbf16, #tpu.memory_space<vmem>>, vector<16x768xbf16>
    %c0_37 = arith.constant 0 : index
    %c127_38 = arith.constant 127 : index
    %36 = vector.load %arg27[%c0_37, %c127_38] : memref<16x1024xbf16, #tpu.memory_space<vmem>>, vector<16x768xbf16>
    %c0_39 = arith.constant 0 : index
    %c128_40 = arith.constant 128 : index
    %37 = vector.load %arg27[%c0_39, %c128_40] : memref<16x1024xbf16, #tpu.memory_space<vmem>>, vector<16x768xbf16>
    %c0_41 = arith.constant 0 : index
    %c129_42 = arith.constant 129 : index
    %38 = vector.load %arg27[%c0_41, %c129_42] : memref<16x1024xbf16, #tpu.memory_space<vmem>>, vector<16x768xbf16>
    %c0_43 = arith.constant 0 : index
    %c145_44 = arith.constant 145 : index
    %39 = vector.load %arg27[%c0_43, %c145_44] : memref<16x1024xbf16, #tpu.memory_space<vmem>>, vector<16x768xbf16>
    %c0_45 = arith.constant 0 : index
    %c146_46 = arith.constant 146 : index
    %40 = vector.load %arg27[%c0_45, %c146_46] : memref<16x1024xbf16, #tpu.memory_space<vmem>>, vector<16x768xbf16>
    %c0_47 = arith.constant 0 : index
    %c147_48 = arith.constant 147 : index
    %41 = vector.load %arg27[%c0_47, %c147_48] : memref<16x1024xbf16, #tpu.memory_space<vmem>>, vector<16x768xbf16>
    %42 = tpu.concatenate %33, %34, %35, %36, %37, %38, %39, %40, %41 in 0 : vector<16x768xbf16>, vector<16x768xbf16>, vector<16x768xbf16>, vector<16x768xbf16>, vector<16x768xbf16>, vector<16x768xbf16>, vector<16x768xbf16>, vector<16x768xbf16>, vector<16x768xbf16> -> vector<144x768xbf16>
    %c0_49 = arith.constant 0 : index
    %c0_50 = arith.constant 0 : index
    %43 = vector.load %arg5[%c0_49, %c0_50] : memref<16x144xbf16, #tpu.memory_space<vmem>>, vector<16x144xbf16>
    %cst_51 = arith.constant dense<0.000000e+00> : vector<16x768xf32>
    %44 = tpu.matmul %43, %42, %cst_51 {dimension_numbers = #tpu.dot_dimension_numbers<[1], [0], [0], [1], [0, 0, 1, 1], [], []>} : vector<16x144xbf16>, vector<144x768xbf16>, vector<16x768xf32> -> vector<16x768xf32>
    %c0_52 = arith.constant 0 : index
    %c0_53 = arith.constant 0 : index
    %45 = vector.load %arg6[%c0_52, %c0_53] : memref<16x1xf32, #tpu.memory_space<vmem>>, vector<16x1xf32>
    %46 = vector.broadcast %45 : vector<16x1xf32> to vector<16x768xf32>
    %47 = arith.mulf %44, %46 : vector<16x768xf32>
    %c0_54 = arith.constant 0 : index
    %c0_55 = arith.constant 0 : index
    %48 = vector.load %arg7[%c0_54, %c0_55] : memref<16x1xf32, #tpu.memory_space<vmem>>, vector<16x1xf32>
    %49 = vector.broadcast %48 : vector<16x1xf32> to vector<16x768xf32>
    %50 = arith.addf %47, %49 : vector<16x768xf32>
    %cst_56 = arith.constant 0.000000e+00 : f32
    %51 = vector.broadcast %cst_56 : f32 to vector<16x768xf32>
    %52 = arith.maximumf %50, %51 : vector<16x768xf32>
    %53 = vector.broadcast %8 : vector<1x768xf32> to vector<16x768xf32>
    %54 = arith.mulf %52, %53 : vector<16x768xf32>
    %55 = arith.truncf %54 : vector<16x768xf32> to vector<16x768xbf16>
    %c0_57 = arith.constant 0 : index
    %c128_58 = arith.constant 128 : index
    %56 = vector.load %arg28[%c0_57, %c128_58] : memref<16x1024xbf16, #tpu.memory_space<vmem>>, vector<16x768xbf16>
    tpu.vector_store %arg28[%c0_57, %c128_58], %55 {strides = array<i32>} : memref<16x1024xbf16, #tpu.memory_space<vmem>>, vector<16x768xbf16>,
    %c0_59 = arith.constant 0 : index
    %c109_60 = arith.constant 109 : index
    %57 = vector.load %arg28[%c0_59, %c109_60] : memref<16x1024xbf16, #tpu.memory_space<vmem>>, vector<16x768xbf16>
    %c0_61 = arith.constant 0 : index
    %c110_62 = arith.constant 110 : index
    %58 = vector.load %arg28[%c0_61, %c110_62] : memref<16x1024xbf16, #tpu.memory_space<vmem>>, vector<16x768xbf16>
    %c0_63 = arith.constant 0 : index
    %c111_64 = arith.constant 111 : index
    %59 = vector.load %arg28[%c0_63, %c111_64] : memref<16x1024xbf16, #tpu.memory_space<vmem>>, vector<16x768xbf16>
    %c0_65 = arith.constant 0 : index
    %c127_66 = arith.constant 127 : index
    %60 = vector.load %arg28[%c0_65, %c127_66] : memref<16x1024xbf16, #tpu.memory_space<vmem>>, vector<16x768xbf16>
    %c0_67 = arith.constant 0 : index
    %c128_68 = arith.constant 128 : index
    %61 = vector.load %arg28[%c0_67, %c128_68] : memref<16x1024xbf16, #tpu.memory_space<vmem>>, vector<16x768xbf16>
    %c0_69 = arith.constant 0 : index
    %c129_70 = arith.constant 129 : index
    %62 = vector.load %arg28[%c0_69, %c129_70] : memref<16x1024xbf16, #tpu.memory_space<vmem>>, vector<16x768xbf16>
    %c0_71 = arith.constant 0 : index
    %c145_72 = arith.constant 145 : index
    %63 = vector.load %arg28[%c0_71, %c145_72] : memref<16x1024xbf16, #tpu.memory_space<vmem>>, vector<16x768xbf16>
    %c0_73 = arith.constant 0 : index
    %c146_74 = arith.constant 146 : index
    %64 = vector.load %arg28[%c0_73, %c146_74] : memref<16x1024xbf16, #tpu.memory_space<vmem>>, vector<16x768xbf16>
    %c0_75 = arith.constant 0 : index
    %c147_76 = arith.constant 147 : index
    %65 = vector.load %arg28[%c0_75, %c147_76] : memref<16x1024xbf16, #tpu.memory_space<vmem>>, vector<16x768xbf16>
    %66 = tpu.concatenate %57, %58, %59, %60, %61, %62, %63, %64, %65 in 0 : vector<16x768xbf16>, vector<16x768xbf16>, vector<16x768xbf16>, vector<16x768xbf16>, vector<16x768xbf16>, vector<16x768xbf16>, vector<16x768xbf16>, vector<16x768xbf16>, vector<16x768xbf16> -> vector<144x768xbf16>
    %c0_77 = arith.constant 0 : index
    %c0_78 = arith.constant 0 : index
    %67 = vector.load %arg8[%c0_77, %c0_78] : memref<16x144xbf16, #tpu.memory_space<vmem>>, vector<16x144xbf16>
    %cst_79 = arith.constant dense<0.000000e+00> : vector<16x768xf32>
    %68 = tpu.matmul %67, %66, %cst_79 {dimension_numbers = #tpu.dot_dimension_numbers<[1], [0], [0], [1], [0, 0, 1, 1], [], []>} : vector<16x144xbf16>, vector<144x768xbf16>, vector<16x768xf32> -> vector<16x768xf32>
    %c0_80 = arith.constant 0 : index
    %c0_81 = arith.constant 0 : index
    %69 = vector.load %arg9[%c0_80, %c0_81] : memref<16x1xf32, #tpu.memory_space<vmem>>, vector<16x1xf32>
    %70 = vector.broadcast %69 : vector<16x1xf32> to vector<16x768xf32>
    %71 = arith.mulf %68, %70 : vector<16x768xf32>
    %c0_82 = arith.constant 0 : index
    %c0_83 = arith.constant 0 : index
    %72 = vector.load %arg10[%c0_82, %c0_83] : memref<16x1xf32, #tpu.memory_space<vmem>>, vector<16x1xf32>
    %73 = vector.broadcast %72 : vector<16x1xf32> to vector<16x768xf32>
    %74 = arith.addf %71, %73 : vector<16x768xf32>
    %c0_84 = arith.constant 0 : index
    %c128_85 = arith.constant 128 : index
    %75 = vector.load %arg27[%c0_84, %c128_85] : memref<16x1024xbf16, #tpu.memory_space<vmem>>, vector<16x768xbf16>
    %76 = arith.extf %75 : vector<16x768xbf16> to vector<16x768xf32>
    %77 = arith.addf %74, %76 : vector<16x768xf32>
    %cst_86 = arith.constant 0.000000e+00 : f32
    %78 = vector.broadcast %cst_86 : f32 to vector<16x768xf32>
    %79 = arith.maximumf %77, %78 : vector<16x768xf32>
    %80 = vector.broadcast %8 : vector<1x768xf32> to vector<16x768xf32>
    %81 = arith.mulf %79, %80 : vector<16x768xf32>
    %82 = arith.truncf %81 : vector<16x768xf32> to vector<16x768xbf16>
    %c0_87 = arith.constant 0 : index
    %c128_88 = arith.constant 128 : index
    %83 = vector.load %arg29[%c0_87, %c128_88] : memref<16x1024xbf16, #tpu.memory_space<vmem>>, vector<16x768xbf16>
    tpu.vector_store %arg29[%c0_87, %c128_88], %82 {strides = array<i32>} : memref<16x1024xbf16, #tpu.memory_space<vmem>>, vector<16x768xbf16>,
    %c0_89 = arith.constant 0 : index
    %c109_90 = arith.constant 109 : index
    %84 = vector.load %arg29[%c0_89, %c109_90] : memref<16x1024xbf16, #tpu.memory_space<vmem>>, vector<16x768xbf16>
    %c0_91 = arith.constant 0 : index
    %c110_92 = arith.constant 110 : index
    %85 = vector.load %arg29[%c0_91, %c110_92] : memref<16x1024xbf16, #tpu.memory_space<vmem>>, vector<16x768xbf16>
    %c0_93 = arith.constant 0 : index
    %c111_94 = arith.constant 111 : index
    %86 = vector.load %arg29[%c0_93, %c111_94] : memref<16x1024xbf16, #tpu.memory_space<vmem>>, vector<16x768xbf16>
    %c0_95 = arith.constant 0 : index
    %c127_96 = arith.constant 127 : index
    %87 = vector.load %arg29[%c0_95, %c127_96] : memref<16x1024xbf16, #tpu.memory_space<vmem>>, vector<16x768xbf16>
    %c0_97 = arith.constant 0 : index
    %c128_98 = arith.constant 128 : index
    %88 = vector.load %arg29[%c0_97, %c128_98] : memref<16x1024xbf16, #tpu.memory_space<vmem>>, vector<16x768xbf16>
    %c0_99 = arith.constant 0 : index
    %c129_100 = arith.constant 129 : index
    %89 = vector.load %arg29[%c0_99, %c129_100] : memref<16x1024xbf16, #tpu.memory_space<vmem>>, vector<16x768xbf16>
    %c0_101 = arith.constant 0 : index
    %c145_102 = arith.constant 145 : index
    %90 = vector.load %arg29[%c0_101, %c145_102] : memref<16x1024xbf16, #tpu.memory_space<vmem>>, vector<16x768xbf16>
    %c0_103 = arith.constant 0 : index
    %c146_104 = arith.constant 146 : index
    %91 = vector.load %arg29[%c0_103, %c146_104] : memref<16x1024xbf16, #tpu.memory_space<vmem>>, vector<16x768xbf16>
    %c0_105 = arith.constant 0 : index
    %c147_106 = arith.constant 147 : index
    %92 = vector.load %arg29[%c0_105, %c147_106] : memref<16x1024xbf16, #tpu.memory_space<vmem>>, vector<16x768xbf16>
    %93 = tpu.concatenate %84, %85, %86, %87, %88, %89, %90, %91, %92 in 0 : vector<16x768xbf16>, vector<16x768xbf16>, vector<16x768xbf16>, vector<16x768xbf16>, vector<16x768xbf16>, vector<16x768xbf16>, vector<16x768xbf16>, vector<16x768xbf16>, vector<16x768xbf16> -> vector<144x768xbf16>
    %c0_107 = arith.constant 0 : index
    %c0_108 = arith.constant 0 : index
    %94 = vector.load %arg23[%c0_107, %c0_108] : memref<768x128xbf16, #tpu.memory_space<vmem>>, vector<768x128xbf16>
    %cst_109 = arith.constant dense<0.000000e+00> : vector<144x128xf32>
    %95 = tpu.matmul %93, %94, %cst_109 {dimension_numbers = #tpu.dot_dimension_numbers<[1], [0], [0], [1], [0, 0, 1, 1], [], []>} : vector<144x768xbf16>, vector<768x128xbf16>, vector<144x128xf32> -> vector<144x128xf32>
    %96 = arith.truncf %95 : vector<144x128xf32> to vector<144x128xbf16>
    %c0_110 = arith.constant 0 : index
    %c0_111 = arith.constant 0 : index
    %97 = vector.load %arg11[%c0_110, %c0_111] : memref<32x144xbf16, #tpu.memory_space<vmem>>, vector<32x144xbf16>
    %cst_112 = arith.constant dense<0.000000e+00> : vector<32x128xf32>
    %98 = tpu.matmul %97, %96, %cst_112 {dimension_numbers = #tpu.dot_dimension_numbers<[1], [0], [0], [1], [0, 0, 1, 1], [], []>} : vector<32x144xbf16>, vector<144x128xbf16>, vector<32x128xf32> -> vector<32x128xf32>
    %c0_113 = arith.constant 0 : index
    %c0_114 = arith.constant 0 : index
    %99 = vector.load %arg12[%c0_113, %c0_114] : memref<32x1xf32, #tpu.memory_space<vmem>>, vector<32x1xf32>
    %100 = vector.broadcast %99 : vector<32x1xf32> to vector<32x128xf32>
    %101 = arith.mulf %98, %100 : vector<32x128xf32>
    %c0_115 = arith.constant 0 : index
    %c0_116 = arith.constant 0 : index
    %102 = vector.load %arg13[%c0_115, %c0_116] : memref<32x1xf32, #tpu.memory_space<vmem>>, vector<32x1xf32>
    %103 = vector.broadcast %102 : vector<32x1xf32> to vector<32x128xf32>
    %104 = arith.addf %101, %103 : vector<32x128xf32>
    %cst_117 = arith.constant 0.000000e+00 : f32
    %105 = vector.broadcast %cst_117 : f32 to vector<32x128xf32>
    %106 = arith.maximumf %104, %105 : vector<32x128xf32>
    %107 = vector.extract_strided_slice %96 {offsets = [64, 0], sizes = [16, 128], strides = [1, 1]} : vector<144x128xbf16> to vector<16x128xbf16>
    %c0_118 = arith.constant 0 : index
    %c0_119 = arith.constant 0 : index
    %108 = vector.load %arg14[%c0_118, %c0_119] : memref<32x16xbf16, #tpu.memory_space<vmem>>, vector<32x16xbf16>
    %cst_120 = arith.constant dense<0.000000e+00> : vector<32x128xf32>
    %109 = tpu.matmul %108, %107, %cst_120 {dimension_numbers = #tpu.dot_dimension_numbers<[1], [0], [0], [1], [0, 0, 1, 1], [], []>} : vector<32x16xbf16>, vector<16x128xbf16>, vector<32x128xf32> -> vector<32x128xf32>
    %c0_121 = arith.constant 0 : index
    %c0_122 = arith.constant 0 : index
    %110 = vector.load %arg15[%c0_121, %c0_122] : memref<32x1xf32, #tpu.memory_space<vmem>>, vector<32x1xf32>
    %111 = vector.broadcast %110 : vector<32x1xf32> to vector<32x128xf32>
    %112 = arith.mulf %109, %111 : vector<32x128xf32>
    %c0_123 = arith.constant 0 : index
    %c0_124 = arith.constant 0 : index
    %113 = vector.load %arg16[%c0_123, %c0_124] : memref<32x1xf32, #tpu.memory_space<vmem>>, vector<32x1xf32>
    %114 = vector.broadcast %113 : vector<32x1xf32> to vector<32x128xf32>
    %115 = arith.addf %112, %114 : vector<32x128xf32>
    %116 = arith.truncf %106 : vector<32x128xf32> to vector<32x128xbf16>
    %c0_125 = arith.constant 0 : index
    %c0_126 = arith.constant 0 : index
    %117 = vector.load %arg24[%c0_125, %c0_126] : memref<128x256xbf16, #tpu.memory_space<vmem>>, vector<128x256xbf16>
    %cst_127 = arith.constant dense<0.000000e+00> : vector<32x256xf32>
    %118 = tpu.matmul %116, %117, %cst_127 {dimension_numbers = #tpu.dot_dimension_numbers<[1], [0], [0], [1], [0, 0, 1, 1], [], []>} : vector<32x128xbf16>, vector<128x256xbf16>, vector<32x256xf32> -> vector<32x256xf32>
    %119 = arith.truncf %118 : vector<32x256xf32> to vector<32x256xbf16>
    %c0_128 = arith.constant 0 : index
    %c128_129 = arith.constant 128 : index
    %120 = vector.load %arg30[%c0_128, %c128_129] : memref<32x512xbf16, #tpu.memory_space<vmem>>, vector<32x256xbf16>
    tpu.vector_store %arg30[%c0_128, %c128_129], %119 {strides = array<i32>} : memref<32x512xbf16, #tpu.memory_space<vmem>>, vector<32x256xbf16>,
    %c0_130 = arith.constant 0 : index
    %c117 = arith.constant 117 : index
    %121 = vector.load %arg30[%c0_130, %c117] : memref<32x512xbf16, #tpu.memory_space<vmem>>, vector<32x256xbf16>
    %c0_131 = arith.constant 0 : index
    %c118 = arith.constant 118 : index
    %122 = vector.load %arg30[%c0_131, %c118] : memref<32x512xbf16, #tpu.memory_space<vmem>>, vector<32x256xbf16>
    %c0_132 = arith.constant 0 : index
    %c119 = arith.constant 119 : index
    %123 = vector.load %arg30[%c0_132, %c119] : memref<32x512xbf16, #tpu.memory_space<vmem>>, vector<32x256xbf16>
    %c0_133 = arith.constant 0 : index
    %c127_134 = arith.constant 127 : index
    %124 = vector.load %arg30[%c0_133, %c127_134] : memref<32x512xbf16, #tpu.memory_space<vmem>>, vector<32x256xbf16>
    %c0_135 = arith.constant 0 : index
    %c128_136 = arith.constant 128 : index
    %125 = vector.load %arg30[%c0_135, %c128_136] : memref<32x512xbf16, #tpu.memory_space<vmem>>, vector<32x256xbf16>
    %c0_137 = arith.constant 0 : index
    %c129_138 = arith.constant 129 : index
    %126 = vector.load %arg30[%c0_137, %c129_138] : memref<32x512xbf16, #tpu.memory_space<vmem>>, vector<32x256xbf16>
    %c0_139 = arith.constant 0 : index
    %c137 = arith.constant 137 : index
    %127 = vector.load %arg30[%c0_139, %c137] : memref<32x512xbf16, #tpu.memory_space<vmem>>, vector<32x256xbf16>
    %c0_140 = arith.constant 0 : index
    %c138 = arith.constant 138 : index
    %128 = vector.load %arg30[%c0_140, %c138] : memref<32x512xbf16, #tpu.memory_space<vmem>>, vector<32x256xbf16>
    %c0_141 = arith.constant 0 : index
    %c139 = arith.constant 139 : index
    %129 = vector.load %arg30[%c0_141, %c139] : memref<32x512xbf16, #tpu.memory_space<vmem>>, vector<32x256xbf16>
    %130 = tpu.concatenate %121, %122, %123, %124, %125, %126, %127, %128, %129 in 0 : vector<32x256xbf16>, vector<32x256xbf16>, vector<32x256xbf16>, vector<32x256xbf16>, vector<32x256xbf16>, vector<32x256xbf16>, vector<32x256xbf16>, vector<32x256xbf16>, vector<32x256xbf16> -> vector<288x256xbf16>
    %c0_142 = arith.constant 0 : index
    %c0_143 = arith.constant 0 : index
    %131 = vector.load %arg17[%c0_142, %c0_143] : memref<32x288xbf16, #tpu.memory_space<vmem>>, vector<32x288xbf16>
    %cst_144 = arith.constant dense<0.000000e+00> : vector<32x256xf32>
    %132 = tpu.matmul %131, %130, %cst_144 {dimension_numbers = #tpu.dot_dimension_numbers<[1], [0], [0], [1], [0, 0, 1, 1], [], []>} : vector<32x288xbf16>, vector<288x256xbf16>, vector<32x256xf32> -> vector<32x256xf32>
    %c0_145 = arith.constant 0 : index
    %c0_146 = arith.constant 0 : index
    %133 = vector.load %arg18[%c0_145, %c0_146] : memref<32x1xf32, #tpu.memory_space<vmem>>, vector<32x1xf32>
    %134 = vector.broadcast %133 : vector<32x1xf32> to vector<32x256xf32>
    %135 = arith.mulf %132, %134 : vector<32x256xf32>
    %c0_147 = arith.constant 0 : index
    %c0_148 = arith.constant 0 : index
    %136 = vector.load %arg19[%c0_147, %c0_148] : memref<32x1xf32, #tpu.memory_space<vmem>>, vector<32x1xf32>
    %137 = vector.broadcast %136 : vector<32x1xf32> to vector<32x256xf32>
    %138 = arith.addf %135, %137 : vector<32x256xf32>
    %139 = arith.truncf %115 : vector<32x128xf32> to vector<32x128xbf16>
    %c0_149 = arith.constant 0 : index
    %c0_150 = arith.constant 0 : index
    %140 = vector.load %arg24[%c0_149, %c0_150] : memref<128x256xbf16, #tpu.memory_space<vmem>>, vector<128x256xbf16>
    %cst_151 = arith.constant dense<0.000000e+00> : vector<32x256xf32>
    %141 = tpu.matmul %139, %140, %cst_151 {dimension_numbers = #tpu.dot_dimension_numbers<[1], [0], [0], [1], [0, 0, 1, 1], [], []>} : vector<32x128xbf16>, vector<128x256xbf16>, vector<32x256xf32> -> vector<32x256xf32>
    %142 = arith.addf %138, %141 : vector<32x256xf32>
    %cst_152 = arith.constant 0.000000e+00 : f32
    %143 = vector.broadcast %cst_152 : f32 to vector<32x256xf32>
    %144 = arith.maximumf %142, %143 : vector<32x256xf32>
    %145 = arith.truncf %144 : vector<32x256xf32> to vector<32x256xbf16>
    %c0_153 = arith.constant 0 : index
    %c0_154 = arith.constant 0 : index
    %146 = vector.load %arg25[%c0_153, %c0_154] : memref<256x128xbf16, #tpu.memory_space<vmem>>, vector<256x128xbf16>
    %cst_155 = arith.constant dense<0.000000e+00> : vector<32x128xf32>
    %147 = tpu.matmul %145, %146, %cst_155 {dimension_numbers = #tpu.dot_dimension_numbers<[1], [0], [0], [1], [0, 0, 1, 1], [], []>} : vector<32x256xbf16>, vector<256x128xbf16>, vector<32x128xf32> -> vector<32x128xf32>
    %c0_156 = arith.constant 0 : index
    %c0_157 = arith.constant 0 : index
    %148 = vector.load %arg20[%c0_156, %c0_157] : memref<16x32xbf16, #tpu.memory_space<vmem>>, vector<16x32xbf16>
    %149 = arith.truncf %147 : vector<32x128xf32> to vector<32x128xbf16>
    %cst_158 = arith.constant dense<0.000000e+00> : vector<16x128xf32>
    %150 = tpu.matmul %148, %149, %cst_158 {dimension_numbers = #tpu.dot_dimension_numbers<[1], [0], [0], [1], [0, 0, 1, 1], [], []>} : vector<16x32xbf16>, vector<32x128xbf16>, vector<16x128xf32> -> vector<16x128xf32>
    %c0_159 = arith.constant 0 : index
    %c0_160 = arith.constant 0 : index
    %151 = vector.load %arg21[%c0_159, %c0_160] : memref<16x1xf32, #tpu.memory_space<vmem>>, vector<16x1xf32>
    %152 = vector.broadcast %151 : vector<16x1xf32> to vector<16x128xf32>
    %153 = arith.addf %150, %152 : vector<16x128xf32>
    %c0_161 = arith.constant 0 : index
    %c0_162 = arith.constant 0 : index
    %154 = vector.load %arg26[%c0_161, %c0_162] : memref<16x128xf32, #tpu.memory_space<vmem>>, vector<16x128xf32>
    tpu.vector_store %arg26[%c0_161, %c0_162], %153 {strides = array<i32>} : memref<16x128xf32, #tpu.memory_space<vmem>>, vector<16x128xf32>,
    return
  }
  func.func @transform_0(%arg0: i32) -> (i32, i32) {
    %c0_i32 = arith.constant 0 : i32
    %c0_i32_0 = arith.constant 0 : i32
    %c0_i32_1 = arith.constant 0 : i32
    return %c0_i32, %c0_i32_0 : i32, i32
  }
  func.func @transform_1(%arg0: i32) -> (i32, i32) {
    %c0_i32 = arith.constant 0 : i32
    %c0_i32_0 = arith.constant 0 : i32
    %c0_i32_1 = arith.constant 0 : i32
    return %c0_i32, %c0_i32_0 : i32, i32
  }
  func.func @transform_2(%arg0: i32) -> (i32, i32) {
    %c0_i32 = arith.constant 0 : i32
    %c0_i32_0 = arith.constant 0 : i32
    %c0_i32_1 = arith.constant 0 : i32
    return %c0_i32, %c0_i32_0 : i32, i32
  }
  func.func @transform_3(%arg0: i32) -> (i32, i32) {
    %c0_i32 = arith.constant 0 : i32
    %c0_i32_0 = arith.constant 0 : i32
    %c0_i32_1 = arith.constant 0 : i32
    return %c0_i32, %c0_i32_0 : i32, i32
  }
  func.func @transform_4(%arg0: i32) -> (i32, i32) {
    %c0_i32 = arith.constant 0 : i32
    %c0_i32_0 = arith.constant 0 : i32
    %c0_i32_1 = arith.constant 0 : i32
    return %c0_i32, %c0_i32_0 : i32, i32
  }
  func.func @transform_5(%arg0: i32) -> (i32, i32) {
    %c0_i32 = arith.constant 0 : i32
    %c0_i32_0 = arith.constant 0 : i32
    %c0_i32_1 = arith.constant 0 : i32
    return %c0_i32, %c0_i32_0 : i32, i32
  }
  func.func @transform_6(%arg0: i32) -> (i32, i32) {
    %c0_i32 = arith.constant 0 : i32
    %c0_i32_0 = arith.constant 0 : i32
    %c0_i32_1 = arith.constant 0 : i32
    return %c0_i32, %c0_i32_0 : i32, i32
  }
  func.func @transform_7(%arg0: i32) -> (i32, i32) {
    %c0_i32 = arith.constant 0 : i32
    %c0_i32_0 = arith.constant 0 : i32
    %c0_i32_1 = arith.constant 0 : i32
    return %c0_i32, %c0_i32_0 : i32, i32
  }
  func.func @transform_8(%arg0: i32) -> (i32, i32) {
    %c0_i32 = arith.constant 0 : i32
    %c0_i32_0 = arith.constant 0 : i32
    %c0_i32_1 = arith.constant 0 : i32
    return %c0_i32, %c0_i32_0 : i32, i32
  }
  func.func @transform_9(%arg0: i32) -> (i32, i32) {
    %c0_i32 = arith.constant 0 : i32
    %c0_i32_0 = arith.constant 0 : i32
    %c0_i32_1 = arith.constant 0 : i32
    return %c0_i32, %c0_i32_0 : i32, i32
  }
  func.func @transform_10(%arg0: i32) -> (i32, i32) {
    %c0_i32 = arith.constant 0 : i32
    %c0_i32_0 = arith.constant 0 : i32
    %c0_i32_1 = arith.constant 0 : i32
    return %c0_i32, %c0_i32_0 : i32, i32
  }
  func.func @transform_11(%arg0: i32) -> (i32, i32) {
    %c0_i32 = arith.constant 0 : i32
    %c0_i32_0 = arith.constant 0 : i32
    %c0_i32_1 = arith.constant 0 : i32
    return %c0_i32, %c0_i32_0 : i32, i32
  }
  func.func @transform_12(%arg0: i32) -> (i32, i32) {
    %c0_i32 = arith.constant 0 : i32
    %c0_i32_0 = arith.constant 0 : i32
    %c0_i32_1 = arith.constant 0 : i32
    return %c0_i32, %c0_i32_0 : i32, i32
  }
  func.func @transform_13(%arg0: i32) -> (i32, i32) {
    %c0_i32 = arith.constant 0 : i32
    %c0_i32_0 = arith.constant 0 : i32
    %c0_i32_1 = arith.constant 0 : i32
    return %c0_i32, %c0_i32_0 : i32, i32
  }
  func.func @transform_14(%arg0: i32) -> (i32, i32) {
    %c0_i32 = arith.constant 0 : i32
    %c0_i32_0 = arith.constant 0 : i32
    %c0_i32_1 = arith.constant 0 : i32
    return %c0_i32, %c0_i32_0 : i32, i32
  }
  func.func @transform_15(%arg0: i32) -> (i32, i32) {
    %c0_i32 = arith.constant 0 : i32
    %c0_i32_0 = arith.constant 0 : i32
    %c0_i32_1 = arith.constant 0 : i32
    return %c0_i32, %c0_i32_0 : i32, i32
  }
  func.func @transform_16(%arg0: i32) -> (i32, i32) {
    %c0_i32 = arith.constant 0 : i32
    %c0_i32_0 = arith.constant 0 : i32
    %c0_i32_1 = arith.constant 0 : i32
    return %c0_i32, %c0_i32_0 : i32, i32
  }
  func.func @transform_17(%arg0: i32) -> (i32, i32) {
    %c0_i32 = arith.constant 0 : i32
    %c0_i32_0 = arith.constant 0 : i32
    %c0_i32_1 = arith.constant 0 : i32
    return %c0_i32, %c0_i32_0 : i32, i32
  }
  func.func @transform_18(%arg0: i32) -> (i32, i32) {
    %c0_i32 = arith.constant 0 : i32
    %c0_i32_0 = arith.constant 0 : i32
    %c0_i32_1 = arith.constant 0 : i32
    return %c0_i32, %c0_i32_0 : i32, i32
  }
  func.func @transform_19(%arg0: i32) -> (i32, i32) {
    %c0_i32 = arith.constant 0 : i32
    %c0_i32_0 = arith.constant 0 : i32
    %c0_i32_1 = arith.constant 0 : i32
    return %c0_i32, %c0_i32_0 : i32, i32
  }
  func.func @transform_20(%arg0: i32) -> (i32, i32) {
    %c0_i32 = arith.constant 0 : i32
    %c0_i32_0 = arith.constant 0 : i32
    %c0_i32_1 = arith.constant 0 : i32
    return %c0_i32, %c0_i32_0 : i32, i32
  }
  func.func @transform_21(%arg0: i32) -> (i32, i32) {
    %c0_i32 = arith.constant 0 : i32
    %c0_i32_0 = arith.constant 0 : i32
    %c0_i32_1 = arith.constant 0 : i32
    return %c0_i32, %c0_i32_0 : i32, i32
  }
  func.func @transform_22(%arg0: i32) -> (i32, i32) {
    %c0_i32 = arith.constant 0 : i32
    %c0_i32_0 = arith.constant 0 : i32
    %c0_i32_1 = arith.constant 0 : i32
    return %c0_i32, %c0_i32_0 : i32, i32
  }
  func.func @transform_23(%arg0: i32) -> (i32, i32) {
    %c0_i32 = arith.constant 0 : i32
    %c0_i32_0 = arith.constant 0 : i32
    %c0_i32_1 = arith.constant 0 : i32
    return %c0_i32, %c0_i32_0 : i32, i32
  }
  func.func @transform_24(%arg0: i32) -> (i32, i32) {
    %c0_i32 = arith.constant 0 : i32
    %c0_i32_0 = arith.constant 0 : i32
    %c0_i32_1 = arith.constant 0 : i32
    return %c0_i32, %c0_i32_0 : i32, i32
  }
  func.func @transform_25(%arg0: i32) -> (i32, i32) {
    %c0_i32 = arith.constant 0 : i32
    %c0_i32_0 = arith.constant 0 : i32
    %c0_i32_1 = arith.constant 0 : i32
    return %c0_i32, %c0_i32_0 : i32, i32
  }
}

</mosaic_0001>

<llo_original>
// kernel: resnet_forward.1
$region0: #{resnet_forward.1}
  #allocation0 [shape = 'u32[]', space=smem, size = 0x4, offset = 0x4, fixed_abs, tag = 'smem constant byte address 0x4 - core index']
  #allocation1 [shape = 'u32[144,128]{1,0:T(1,128)}', space=vmem, size = 0x12000, scoped, tag = 'internal scratch']
  #allocation2 [shape = 'bf16[16,1024]{1,0:T(8,128)(2,1)}', space=vmem, size = 0x8000, scoped, tag = 'scratch operand']
  #allocation3 [shape = 'bf16[16,1024]{1,0:T(8,128)(2,1)}', space=vmem, size = 0x8000, scoped, tag = 'scratch operand']
  #allocation4 [shape = 'bf16[16,1024]{1,0:T(8,128)(2,1)}', space=vmem, size = 0x8000, scoped, tag = 'scratch operand']
  #allocation5 [shape = 'bf16[32,512]{1,0:T(8,128)(2,1)}', space=vmem, size = 0x8000, scoped, tag = 'scratch operand']
  %s0 = inlined_call_operand.vmem [shape: bf16[16,1024], index: 0, kind: input, shape index: {}]
  %s1 = inlined_call_operand.vmem [shape: bf16[16,144], index: 1, kind: input, shape index: {}]
  %s2 = inlined_call_operand.vmem [shape: f32[16,1], index: 2, kind: input, shape index: {}]
  %s3 = inlined_call_operand.vmem [shape: f32[16,1], index: 3, kind: input, shape index: {}]
  %s4 = inlined_call_operand.vmem [shape: bf16[16,144], index: 4, kind: input, shape index: {}]
  %s5 = inlined_call_operand.vmem [shape: f32[16,1], index: 5, kind: input, shape index: {}]
  %s6 = inlined_call_operand.vmem [shape: f32[16,1], index: 6, kind: input, shape index: {}]
  %s7 = inlined_call_operand.vmem [shape: bf16[16,144], index: 7, kind: input, shape index: {}]
  %s8 = inlined_call_operand.vmem [shape: f32[16,1], index: 8, kind: input, shape index: {}]
  %s9 = inlined_call_operand.vmem [shape: f32[16,1], index: 9, kind: input, shape index: {}]
  %s10 = inlined_call_operand.vmem [shape: bf16[32,144], index: 10, kind: input, shape index: {}]
  %s11 = inlined_call_operand.vmem [shape: f32[32,1], index: 11, kind: input, shape index: {}]
  %s12 = inlined_call_operand.vmem [shape: f32[32,1], index: 12, kind: input, shape index: {}]
  %s13 = inlined_call_operand.vmem [shape: bf16[32,16], index: 13, kind: input, shape index: {}]
  %s14 = inlined_call_operand.vmem [shape: f32[32,1], index: 14, kind: input, shape index: {}]
  %s15 = inlined_call_operand.vmem [shape: f32[32,1], index: 15, kind: input, shape index: {}]
  %s16 = inlined_call_operand.vmem [shape: bf16[32,288], index: 16, kind: input, shape index: {}]
  %s17 = inlined_call_operand.vmem [shape: f32[32,1], index: 17, kind: input, shape index: {}]
  %s18 = inlined_call_operand.vmem [shape: f32[32,1], index: 18, kind: input, shape index: {}]
  %s19 = inlined_call_operand.vmem [shape: bf16[16,32], index: 19, kind: input, shape index: {}]
  %s20 = inlined_call_operand.vmem [shape: f32[16,1], index: 20, kind: input, shape index: {}]
  %s21 = inlined_call_operand.vmem [shape: f32[1,768], index: 21, kind: input, shape index: {}]
  %s22 = inlined_call_operand.vmem [shape: bf16[768,128], index: 22, kind: input, shape index: {}]
  %s23 = inlined_call_operand.vmem [shape: bf16[128,256], index: 23, kind: input, shape index: {}]
  %s24 = inlined_call_operand.vmem [shape: bf16[256,128], index: 24, kind: input, shape index: {}]
  %s25 = inlined_call_operand.vmem [shape: f32[16,128], index: 25, kind: output, shape index: {}]
  %s26 = sld [smem:[#allocation0]]
  $region110: #{resnet_forward.1} parent=0
    _
  %s28 = ssub.s32 1, %s26
  %s29 = scalar_select 0, %s28, %s26
  // Predicated region
  $region2: #{resnet_forward.1} parent=0 // pred_check
    _
  $region3: #{resnet_forward.1} parent=0 // pred_check_branch
    %31 = sbr.rel (0) target = $region5
  $region4: #{resnet_forward.1} parent=0 // pred_region
    _
  $region5: #{resnet_forward.1} parent=0 // pred_fallthru
    _
  // Predicated region
  $region6: #{resnet_forward.1} parent=0 // pred_check
    _
  $region7: #{resnet_forward.1} parent=0 // pred_check_branch
    %33 = sbr.rel (0) target = $region9
  $region8: #{resnet_forward.1} parent=0 // pred_region
    _
  $region9: #{resnet_forward.1} parent=0 // pred_fallthru
    _
  // Predicated region
  $region10: #{resnet_forward.1} parent=0 // pred_check
    _
  $region11: #{resnet_forward.1} parent=0 // pred_check_branch
    %35 = sbr.rel (0) target = $region13
  $region12: #{resnet_forward.1} parent=0 // pred_region
    _
  $region13: #{resnet_forward.1} parent=0 // pred_fallthru
    _
  // Predicated region
  $region14: #{resnet_forward.1} parent=0 // pred_check
    _
  $region15: #{resnet_forward.1} parent=0 // pred_check_branch
    %37 = sbr.rel (0) target = $region17
  $region16: #{resnet_forward.1} parent=0 // pred_region
    _
  $region17: #{resnet_forward.1} parent=0 // pred_fallthru
    _
  // Predicated region
  $region18: #{resnet_forward.1} parent=0 // pred_check
    _
  $region19: #{resnet_forward.1} parent=0 // pred_check_branch
    %39 = sbr.rel (0) target = $region21
  $region20: #{resnet_forward.1} parent=0 // pred_region
    _
  $region21: #{resnet_forward.1} parent=0 // pred_fallthru
    _
  // Predicated region
  $region22: #{resnet_forward.1} parent=0 // pred_check
    _
  $region23: #{resnet_forward.1} parent=0 // pred_check_branch
    %41 = sbr.rel (0) target = $region25
  $region24: #{resnet_forward.1} parent=0 // pred_region
    _
  $region25: #{resnet_forward.1} parent=0 // pred_fallthru
    _
  // Predicated region
  $region26: #{resnet_forward.1} parent=0 // pred_check
    _
  $region27: #{resnet_forward.1} parent=0 // pred_check_branch
    %43 = sbr.rel (0) target = $region29
  $region28: #{resnet_forward.1} parent=0 // pred_region
    _
  $region29: #{resnet_forward.1} parent=0 // pred_fallthru
    _
  // Predicated region
  $region30: #{resnet_forward.1} parent=0 // pred_check
    _
  $region31: #{resnet_forward.1} parent=0 // pred_check_branch
    %45 = sbr.rel (0) target = $region33
  $region32: #{resnet_forward.1} parent=0 // pred_region
    _
  $region33: #{resnet_forward.1} parent=0 // pred_fallthru
    _
  // Predicated region
  $region34: #{resnet_forward.1} parent=0 // pred_check
    _
  $region35: #{resnet_forward.1} parent=0 // pred_check_branch
    %47 = sbr.rel (0) target = $region37
  $region36: #{resnet_forward.1} parent=0 // pred_region
    _
  $region37: #{resnet_forward.1} parent=0 // pred_fallthru
    _
  // Predicated region
  $region38: #{resnet_forward.1} parent=0 // pred_check
    _
  $region39: #{resnet_forward.1} parent=0 // pred_check_branch
    %49 = sbr.rel (0) target = $region41
  $region40: #{resnet_forward.1} parent=0 // pred_region
    _
  $region41: #{resnet_forward.1} parent=0 // pred_fallthru
    _
  // Predicated region
  $region42: #{resnet_forward.1} parent=0 // pred_check
    _
  $region43: #{resnet_forward.1} parent=0 // pred_check_branch
    %51 = sbr.rel (0) target = $region45
  $region44: #{resnet_forward.1} parent=0 // pred_region
    _
  $region45: #{resnet_forward.1} parent=0 // pred_fallthru
    _
  // Predicated region
  $region46: #{resnet_forward.1} parent=0 // pred_check
    _
  $region47: #{resnet_forward.1} parent=0 // pred_check_branch
    %53 = sbr.rel (0) target = $region49
  $region48: #{resnet_forward.1} parent=0 // pred_region
    _
  $region49: #{resnet_forward.1} parent=0 // pred_fallthru
    _
  // Predicated region
  $region50: #{resnet_forward.1} parent=0 // pred_check
    _
  $region51: #{resnet_forward.1} parent=0 // pred_check_branch
    %55 = sbr.rel (0) target = $region53
  $region52: #{resnet_forward.1} parent=0 // pred_region
    _
  $region53: #{resnet_forward.1} parent=0 // pred_fallthru
    _
  // Predicated region
  $region54: #{resnet_forward.1} parent=0 // pred_check
    _
  $region55: #{resnet_forward.1} parent=0 // pred_check_branch
    %57 = sbr.rel (0) target = $region57
  $region56: #{resnet_forward.1} parent=0 // pred_region
    _
  $region57: #{resnet_forward.1} parent=0 // pred_fallthru
    _
  // Predicated region
  $region58: #{resnet_forward.1} parent=0 // pred_check
    _
  $region59: #{resnet_forward.1} parent=0 // pred_check_branch
    %59 = sbr.rel (0) target = $region61
  $region60: #{resnet_forward.1} parent=0 // pred_region
    _
  $region61: #{resnet_forward.1} parent=0 // pred_fallthru
    _
  // Predicated region
  $region62: #{resnet_forward.1} parent=0 // pred_check
    _
  $region63: #{resnet_forward.1} parent=0 // pred_check_branch
    %61 = sbr.rel (0) target = $region65
  $region64: #{resnet_forward.1} parent=0 // pred_region
    _
  $region65: #{resnet_forward.1} parent=0 // pred_fallthru
    _
  // Predicated region
  $region66: #{resnet_forward.1} parent=0 // pred_check
    _
  $region67: #{resnet_forward.1} parent=0 // pred_check_branch
    %63 = sbr.rel (0) target = $region69
  $region68: #{resnet_forward.1} parent=0 // pred_region
    _
  $region69: #{resnet_forward.1} parent=0 // pred_fallthru
    _
  // Predicated region
  $region70: #{resnet_forward.1} parent=0 // pred_check
    _
  $region71: #{resnet_forward.1} parent=0 // pred_check_branch
    %65 = sbr.rel (0) target = $region73
  $region72: #{resnet_forward.1} parent=0 // pred_region
    _
  $region73: #{resnet_forward.1} parent=0 // pred_fallthru
    _
  // Predicated region
  $region74: #{resnet_forward.1} parent=0 // pred_check
    _
  $region75: #{resnet_forward.1} parent=0 // pred_check_branch
    %67 = sbr.rel (0) target = $region77
  $region76: #{resnet_forward.1} parent=0 // pred_region
    _
  $region77: #{resnet_forward.1} parent=0 // pred_fallthru
    _
  // Predicated region
  $region78: #{resnet_forward.1} parent=0 // pred_check
    _
  $region79: #{resnet_forward.1} parent=0 // pred_check_branch
    %69 = sbr.rel (0) target = $region81
  $region80: #{resnet_forward.1} parent=0 // pred_region
    _
  $region81: #{resnet_forward.1} parent=0 // pred_fallthru
    _
  // Predicated region
  $region82: #{resnet_forward.1} parent=0 // pred_check
    _
  $region83: #{resnet_forward.1} parent=0 // pred_check_branch
    %71 = sbr.rel (0) target = $region85
  $region84: #{resnet_forward.1} parent=0 // pred_region
    _
  $region85: #{resnet_forward.1} parent=0 // pred_fallthru
    _
  // Predicated region
  $region86: #{resnet_forward.1} parent=0 // pred_check
    _
  $region87: #{resnet_forward.1} parent=0 // pred_check_branch
    %73 = sbr.rel (0) target = $region89
  $region88: #{resnet_forward.1} parent=0 // pred_region
    _
  $region89: #{resnet_forward.1} parent=0 // pred_fallthru
    _
  // Predicated region
  $region90: #{resnet_forward.1} parent=0 // pred_check
    _
  $region91: #{resnet_forward.1} parent=0 // pred_check_branch
    %75 = sbr.rel (0) target = $region93
  $region92: #{resnet_forward.1} parent=0 // pred_region
    _
  $region93: #{resnet_forward.1} parent=0 // pred_fallthru
    _
  // Predicated region
  $region94: #{resnet_forward.1} parent=0 // pred_check
    _
  $region95: #{resnet_forward.1} parent=0 // pred_check_branch
    %77 = sbr.rel (0) target = $region97
  $region96: #{resnet_forward.1} parent=0 // pred_region
    _
  $region97: #{resnet_forward.1} parent=0 // pred_fallthru
    _
  // Predicated region
  $region98: #{resnet_forward.1} parent=0 // pred_check
    _
  $region99: #{resnet_forward.1} parent=0 // pred_check_branch
    %79 = sbr.rel (0) target = $region101
  $region100: #{resnet_forward.1} parent=0 // pred_region
    _
  $region101: #{resnet_forward.1} parent=0 // pred_fallthru
    _
  %81 = vst [vmem:[#allocation2] sm:$0xff] 0
  %82 = vst [vmem:[#allocation2 + $0x8] sm:$0xff] 0
  %83 = vst [vmem:[#allocation2 + $0x10] sm:$0xff] 0
  %84 = vst [vmem:[#allocation2 + $0x18] sm:$0xff] 0
  %85 = vst [vmem:[#allocation2 + $0x20] sm:$0xff] 0
  %86 = vst [vmem:[#allocation2 + $0x28] sm:$0xff] 0
  %87 = vst [vmem:[#allocation2 + $0x30] sm:$0xff] 0
  %88 = vst [vmem:[#allocation2 + $0x38] sm:$0xff] 0
  %89 = vst [vmem:[#allocation3] sm:$0xff] 0
  %90 = vst [vmem:[#allocation3 + $0x8] sm:$0xff] 0
  %91 = vst [vmem:[#allocation3 + $0x10] sm:$0xff] 0
  %92 = vst [vmem:[#allocation3 + $0x18] sm:$0xff] 0
  %93 = vst [vmem:[#allocation3 + $0x20] sm:$0xff] 0
  %94 = vst [vmem:[#allocation3 + $0x28] sm:$0xff] 0
  %95 = vst [vmem:[#allocation3 + $0x30] sm:$0xff] 0
  %96 = vst [vmem:[#allocation3 + $0x38] sm:$0xff] 0
  %97 = vst [vmem:[#allocation4] sm:$0xff] 0
  %98 = vst [vmem:[#allocation4 + $0x8] sm:$0xff] 0
  %99 = vst [vmem:[#allocation4 + $0x10] sm:$0xff] 0
  %100 = vst [vmem:[#allocation4 + $0x18] sm:$0xff] 0
  %101 = vst [vmem:[#allocation4 + $0x20] sm:$0xff] 0
  %102 = vst [vmem:[#allocation4 + $0x28] sm:$0xff] 0
  %103 = vst [vmem:[#allocation4 + $0x30] sm:$0xff] 0
  %104 = vst [vmem:[#allocation4 + $0x38] sm:$0xff] 0
  %105 = vst [vmem:[#allocation5] sm:$0xff] 0
  %106 = vst [vmem:[#allocation5 + $0x8] sm:$0xff] 0
  %107 = vst [vmem:[#allocation5 + $0x10] sm:$0xff] 0
  %108 = vst [vmem:[#allocation5 + $0x18] sm:$0xff] 0
  %109 = vst [vmem:[#allocation5 + $0x20] sm:$0xff] 0
  %110 = vst [vmem:[#allocation5 + $0x28] sm:$0xff] 0
  %111 = vst [vmem:[#allocation5 + $0x30] sm:$0xff] 0
  %112 = vst [vmem:[#allocation5 + $0x38] sm:$0xff] 0
  %v113 = vld [vmem:[%s21] sm:$0x3f]
  %v114 = vld [vmem:[%s0] sm:$0xff]
  %v115 = vld [vmem:[%s0 + $0x8] sm:$0xff]
  %v116 = vld [vmem:[%s0 + $0x10] sm:$0xff]
  %v117 = vld [vmem:[%s0 + $0x18] sm:$0xf]
  %v118 = vld [vmem:[%s0 + $0x20] sm:$0xff]
  %v119 = vld [vmem:[%s0 + $0x28] sm:$0xff]
  %v120 = vld [vmem:[%s0 + $0x30] sm:$0xff]
  %v121 = vld [vmem:[%s0 + $0x38] sm:$0xf]
  %v122 = vld [vmem:[%s0 + $0x4] sm:$0xff]
  %v123 = vld [vmem:[%s0 + $0xc] sm:$0xff]
  %v124 = vld [vmem:[%s0 + $0x14] sm:$0xff]
  %v125 = vld [vmem:[%s0 + $0x24] sm:$0xff]
  %v126 = vld [vmem:[%s0 + $0x2c] sm:$0xff]
  %v127 = vld [vmem:[%s0 + $0x34] sm:$0xff]
  %v128 = vld [vmem:[%s0 + $0x4] sm:$0xff]
  %v129 = vld [vmem:[%s0 + $0xc] sm:$0xff]
  %v130 = vld [vmem:[%s0 + $0x14] sm:$0xff]
  %v131 = vld [vmem:[%s0 + $0x1c] sm:$0xf]
  %v132 = vld [vmem:[%s0 + $0x24] sm:$0xff]
  %v133 = vld [vmem:[%s0 + $0x2c] sm:$0xff]
  %v134 = vld [vmem:[%s0 + $0x34] sm:$0xff]
  %v135 = vld [vmem:[%s0 + $0x3c] sm:$0xf]
  %v144 = vunpack.c.l.b16 %v114
  %v145 = vunpack.c.h.b16 %v114
  %v146 = vunpack.c.l.b16 %v115
  %v147 = vunpack.c.h.b16 %v115
  %v148 = vunpack.c.l.b16 %v116
  %v149 = vunpack.c.h.b16 %v116
  %v150 = vunpack.c.l.b16 %v117
  %v151 = vunpack.c.l.b16 %v118
  %v152 = vunpack.c.h.b16 %v118
  %v153 = vunpack.c.l.b16 %v119
  %v154 = vunpack.c.h.b16 %v119
  %v155 = vunpack.c.l.b16 %v120
  %v156 = vunpack.c.h.b16 %v120
  %v157 = vunpack.c.l.b16 %v121
  %v158 = vpack.c.b16 %v151, %v144
  %v159 = vpack.c.b16 %v152, %v145
  %v160 = vpack.c.b16 %v153, %v146
  %v161 = vpack.c.b16 %v154, %v147
  %v162 = vpack.c.b16 %v155, %v148
  %v163 = vpack.c.b16 %v156, %v149
  %v164 = vpack.c.b16 %v157, %v150
  %165 = vrot.lane.b32.xlu0 %v158, 127
  %v166 = vpop.permute.xlu0 %165
  %167 = vrot.lane.b32.xlu0 %v159, 127
  %v168 = vpop.permute.xlu0 %167
  %169 = vrot.lane.b32.xlu0 %v160, 127
  %v170 = vpop.permute.xlu0 %169
  %171 = vrot.lane.b32.xlu0 %v161, 127
  %v172 = vpop.permute.xlu0 %171
  %173 = vrot.lane.b32.xlu0 %v162, 127
  %v174 = vpop.permute.xlu0 %173
  %175 = vrot.lane.b32.xlu0 %v163, 127
  %v176 = vpop.permute.xlu0 %175
  %177 = vrot.lane.b32.xlu0 %v164, 127
  %v178 = vpop.permute.xlu0 %177
  %vm179 = vcmask 1039360
  %v180 = vsel %vm179, %v166, %v168
  %v181 = vsel %vm179, %v168, %v170
  %v182 = vsel %vm179, %v170, %v172
  %v183 = vsel %vm179, %v172, %v174
  %v184 = vsel %vm179, %v174, %v176
  %v185 = vsel %vm179, %v176, %v178
  %186 = vrot.lane.b32.xlu0 %v158, 126
  %v187 = vpop.permute.xlu0 %186
  %188 = vrot.lane.b32.xlu0 %v159, 126
  %v189 = vpop.permute.xlu0 %188
  %190 = vrot.lane.b32.xlu0 %v160, 126
  %v191 = vpop.permute.xlu0 %190
  %192 = vrot.lane.b32.xlu0 %v161, 126
  %v193 = vpop.permute.xlu0 %192
  %194 = vrot.lane.b32.xlu0 %v162, 126
  %v195 = vpop.permute.xlu0 %194
  %196 = vrot.lane.b32.xlu0 %v163, 126
  %v197 = vpop.permute.xlu0 %196
  %198 = vrot.lane.b32.xlu0 %v164, 126
  %v199 = vpop.permute.xlu0 %198
  %vm200 = vcmask 1031168
  %v201 = vsel %vm200, %v187, %v189
  %v202 = vsel %vm200, %v189, %v191
  %v203 = vsel %vm200, %v191, %v193
  %v204 = vsel %vm200, %v193, %v195
  %v205 = vsel %vm200, %v195, %v197
  %v206 = vsel %vm200, %v197, %v199
  %207 = vrot.lane.b32.xlu0 %v158, 110
  %v208 = vpop.permute.xlu0 %207
  %209 = vrot.lane.b32.xlu0 %v159, 110
  %v210 = vpop.permute.xlu0 %209
  %211 = vrot.lane.b32.xlu0 %v160, 110
  %v212 = vpop.permute.xlu0 %211
  %213 = vrot.lane.b32.xlu0 %v161, 110
  %v214 = vpop.permute.xlu0 %213
  %215 = vrot.lane.b32.xlu0 %v162, 110
  %v216 = vpop.permute.xlu0 %215
  %217 = vrot.lane.b32.xlu0 %v163, 110
  %v218 = vpop.permute.xlu0 %217
  %219 = vrot.lane.b32.xlu0 %v164, 110
  %v220 = vpop.permute.xlu0 %219
  %vm221 = vcmask 900096
  %v222 = vsel %vm221, %v208, %v210
  %v223 = vsel %vm221, %v210, %v212
  %v224 = vsel %vm221, %v212, %v214
  %v225 = vsel %vm221, %v214, %v216
  %v226 = vsel %vm221, %v216, %v218
  %v227 = vsel %vm221, %v218, %v220
  %v234 = vunpack.c.l.b16 %v122
  %v235 = vunpack.c.h.b16 %v122
  %v236 = vunpack.c.l.b16 %v123
  %v237 = vunpack.c.h.b16 %v123
  %v238 = vunpack.c.l.b16 %v124
  %v239 = vunpack.c.h.b16 %v124
  %v240 = vunpack.c.l.b16 %v125
  %v241 = vunpack.c.h.b16 %v125
  %v242 = vunpack.c.l.b16 %v126
  %v243 = vunpack.c.h.b16 %v126
  %v244 = vunpack.c.l.b16 %v127
  %v245 = vunpack.c.h.b16 %v127
  %v246 = vpack.c.b16 %v240, %v234
  %v247 = vpack.c.b16 %v241, %v235
  %v248 = vpack.c.b16 %v242, %v236
  %v249 = vpack.c.b16 %v243, %v237
  %v250 = vpack.c.b16 %v244, %v238
  %v251 = vpack.c.b16 %v245, %v239
  %252 = vrot.lane.b32.xlu0 %v246, 109
  %v253 = vpop.permute.xlu0 %252
  %254 = vrot.lane.b32.xlu0 %v247, 109
  %v255 = vpop.permute.xlu0 %254
  %256 = vrot.lane.b32.xlu0 %v248, 109
  %v257 = vpop.permute.xlu0 %256
  %258 = vrot.lane.b32.xlu0 %v249, 109
  %v259 = vpop.permute.xlu0 %258
  %260 = vrot.lane.b32.xlu0 %v250, 109
  %v261 = vpop.permute.xlu0 %260
  %262 = vrot.lane.b32.xlu0 %v251, 109
  %v263 = vpop.permute.xlu0 %262
  %vm264 = vcmask 891904
  %v265 = vsel %vm264, %v253, %v255
  %v266 = vsel %vm264, %v255, %v257
  %v267 = vsel %vm264, %v257, %v259
  %v268 = vsel %vm264, %v259, %v261
  %v269 = vsel %vm264, %v261, %v263
  %v278 = vunpack.c.l.b16 %v128
  %v279 = vunpack.c.h.b16 %v128
  %v280 = vunpack.c.l.b16 %v129
  %v281 = vunpack.c.h.b16 %v129
  %v282 = vunpack.c.l.b16 %v130
  %v283 = vunpack.c.h.b16 %v130
  %v284 = vunpack.c.l.b16 %v131
  %v285 = vunpack.c.l.b16 %v132
  %v286 = vunpack.c.h.b16 %v132
  %v287 = vunpack.c.l.b16 %v133
  %v288 = vunpack.c.h.b16 %v133
  %v289 = vunpack.c.l.b16 %v134
  %v290 = vunpack.c.h.b16 %v134
  %v291 = vunpack.c.l.b16 %v135
  %v292 = vpack.c.b16 %v285, %v278
  %v293 = vpack.c.b16 %v286, %v279
  %v294 = vpack.c.b16 %v287, %v280
  %v295 = vpack.c.b16 %v288, %v281
  %v296 = vpack.c.b16 %v289, %v282
  %v297 = vpack.c.b16 %v290, %v283
  %v298 = vpack.c.b16 %v291, %v284
  %299 = vrot.lane.b32.xlu0 %v292, 108
  %v300 = vpop.permute.xlu0 %299
  %301 = vrot.lane.b32.xlu0 %v293, 108
  %v302 = vpop.permute.xlu0 %301
  %303 = vrot.lane.b32.xlu0 %v294, 108
  %v304 = vpop.permute.xlu0 %303
  %305 = vrot.lane.b32.xlu0 %v295, 108
  %v306 = vpop.permute.xlu0 %305
  %307 = vrot.lane.b32.xlu0 %v296, 108
  %v308 = vpop.permute.xlu0 %307
  %309 = vrot.lane.b32.xlu0 %v297, 108
  %v310 = vpop.permute.xlu0 %309
  %311 = vrot.lane.b32.xlu0 %v298, 108
  %v312 = vpop.permute.xlu0 %311
  %vm313 = vcmask 883712
  %v314 = vsel %vm313, %v300, %v302
  %v315 = vsel %vm313, %v302, %v304
  %v316 = vsel %vm313, %v304, %v306
  %v317 = vsel %vm313, %v306, %v308
  %v318 = vsel %vm313, %v308, %v310
  %v319 = vsel %vm313, %v310, %v312
  %320 = vrot.lane.b32.xlu0 %v292, 92
  %v321 = vpop.permute.xlu0 %320
  %322 = vrot.lane.b32.xlu0 %v293, 92
  %v323 = vpop.permute.xlu0 %322
  %324 = vrot.lane.b32.xlu0 %v294, 92
  %v325 = vpop.permute.xlu0 %324
  %326 = vrot.lane.b32.xlu0 %v295, 92
  %v327 = vpop.permute.xlu0 %326
  %328 = vrot.lane.b32.xlu0 %v296, 92
  %v329 = vpop.permute.xlu0 %328
  %330 = vrot.lane.b32.xlu0 %v297, 92
  %v331 = vpop.permute.xlu0 %330
  %332 = vrot.lane.b32.xlu0 %v298, 92
  %v333 = vpop.permute.xlu0 %332
  %vm334 = vcmask 752640
  %v335 = vsel %vm334, %v321, %v323
  %v336 = vsel %vm334, %v323, %v325
  %v337 = vsel %vm334, %v325, %v327
  %v338 = vsel %vm334, %v327, %v329
  %v339 = vsel %vm334, %v329, %v331
  %v340 = vsel %vm334, %v331, %v333
  %341 = vrot.lane.b32.xlu0 %v292, 91
  %v342 = vpop.permute.xlu0 %341
  %343 = vrot.lane.b32.xlu0 %v293, 91
  %v344 = vpop.permute.xlu0 %343
  %345 = vrot.lane.b32.xlu0 %v294, 91
  %v346 = vpop.permute.xlu0 %345
  %347 = vrot.lane.b32.xlu0 %v295, 91
  %v348 = vpop.permute.xlu0 %347
  %349 = vrot.lane.b32.xlu0 %v296, 91
  %v350 = vpop.permute.xlu0 %349
  %351 = vrot.lane.b32.xlu0 %v297, 91
  %v352 = vpop.permute.xlu0 %351
  %353 = vrot.lane.b32.xlu0 %v298, 91
  %v354 = vpop.permute.xlu0 %353
  %vm355 = vcmask 744448
  %v356 = vsel %vm355, %v342, %v344
  %v357 = vsel %vm355, %v344, %v346
  %v358 = vsel %vm355, %v346, %v348
  %v359 = vsel %vm355, %v348, %v350
  %v360 = vsel %vm355, %v350, %v352
  %v361 = vsel %vm355, %v352, %v354
  %362 = vrot.lane.b32.xlu0 %v292, 90
  %v363 = vpop.permute.xlu0 %362
  %364 = vrot.lane.b32.xlu0 %v293, 90
  %v365 = vpop.permute.xlu0 %364
  %366 = vrot.lane.b32.xlu0 %v294, 90
  %v367 = vpop.permute.xlu0 %366
  %368 = vrot.lane.b32.xlu0 %v295, 90
  %v369 = vpop.permute.xlu0 %368
  %370 = vrot.lane.b32.xlu0 %v296, 90
  %v371 = vpop.permute.xlu0 %370
  %372 = vrot.lane.b32.xlu0 %v297, 90
  %v373 = vpop.permute.xlu0 %372
  %374 = vrot.lane.b32.xlu0 %v298, 90
  %v375 = vpop.permute.xlu0 %374
  %vm376 = vcmask 736256
  %v377 = vsel %vm376, %v363, %v365
  %v378 = vsel %vm376, %v365, %v367
  %v379 = vsel %vm376, %v367, %v369
  %v380 = vsel %vm376, %v369, %v371
  %v381 = vsel %vm376, %v371, %v373
  %v382 = vsel %vm376, %v373, %v375
  %v383 = vld [vmem:[%s1] sm:$0xff]
  %v384 = vld [vmem:[%s1 + $0x8] sm:$0xff]
  %v387 = vunpack.c.l.b16 %v383
  %v388 = vunpack.c.h.b16 %v383
  %v389 = vunpack.c.l.b16 %v384
  %v390 = vunpack.c.h.b16 %v384
  %v391 = vpack.c.b16 %v389, %v387
  %v392 = vpack.c.b16 %v390, %v388
  %394 = vrot.lane.b32.xlu0 %v158, 19
  %v395 = vpop.permute.xlu0 %394
  %396 = vrot.lane.b32.xlu0 %v159, 19
  %v397 = vpop.permute.xlu0 %396
  %398 = vrot.lane.b32.xlu0 %v160, 19
  %v399 = vpop.permute.xlu0 %398
  %400 = vrot.lane.b32.xlu0 %v161, 19
  %v401 = vpop.permute.xlu0 %400
  %402 = vrot.lane.b32.xlu0 %v162, 19
  %v403 = vpop.permute.xlu0 %402
  %404 = vrot.lane.b32.xlu0 %v163, 19
  %v405 = vpop.permute.xlu0 %404
  %406 = vrot.lane.b32.xlu0 %v164, 19
  %v407 = vpop.permute.xlu0 %406
  %408 = vrot.lane.b32.xlu0 %v180, 19
  %v409 = vpop.permute.xlu0 %408
  %410 = vrot.lane.b32.xlu0 %v181, 19
  %v411 = vpop.permute.xlu0 %410
  %412 = vrot.lane.b32.xlu0 %v182, 19
  %v413 = vpop.permute.xlu0 %412
  %414 = vrot.lane.b32.xlu0 %v183, 19
  %v415 = vpop.permute.xlu0 %414
  %416 = vrot.lane.b32.xlu0 %v184, 19
  %v417 = vpop.permute.xlu0 %416
  %418 = vrot.lane.b32.xlu0 %v185, 19
  %v419 = vpop.permute.xlu0 %418
  %420 = vrot.lane.b32.xlu0 %v178, 19
  %v421 = vpop.permute.xlu0 %420
  %422 = vrot.lane.b32.xlu0 %v201, 19
  %v423 = vpop.permute.xlu0 %422
  %424 = vrot.lane.b32.xlu0 %v202, 19
  %v425 = vpop.permute.xlu0 %424
  %426 = vrot.lane.b32.xlu0 %v203, 19
  %v427 = vpop.permute.xlu0 %426
  %428 = vrot.lane.b32.xlu0 %v204, 19
  %v429 = vpop.permute.xlu0 %428
  %430 = vrot.lane.b32.xlu0 %v205, 19
  %v431 = vpop.permute.xlu0 %430
  %432 = vrot.lane.b32.xlu0 %v206, 19
  %v433 = vpop.permute.xlu0 %432
  %434 = vrot.lane.b32.xlu0 %v199, 19
  %v435 = vpop.permute.xlu0 %434
  %436 = vrot.lane.b32.xlu0 %v222, 19
  %v437 = vpop.permute.xlu0 %436
  %438 = vrot.lane.b32.xlu0 %v223, 19
  %v439 = vpop.permute.xlu0 %438
  %440 = vrot.lane.b32.xlu0 %v224, 19
  %v441 = vpop.permute.xlu0 %440
  %442 = vrot.lane.b32.xlu0 %v225, 19
  %v443 = vpop.permute.xlu0 %442
  %444 = vrot.lane.b32.xlu0 %v226, 19
  %v445 = vpop.permute.xlu0 %444
  %446 = vrot.lane.b32.xlu0 %v227, 19
  %v447 = vpop.permute.xlu0 %446
  %448 = vrot.lane.b32.xlu0 %v220, 19
  %v449 = vpop.permute.xlu0 %448
  %450 = vrot.lane.b32.xlu0 %v253, 19
  %v451 = vpop.permute.xlu0 %450
  %452 = vrot.lane.b32.xlu0 %v265, 19
  %v453 = vpop.permute.xlu0 %452
  %454 = vrot.lane.b32.xlu0 %v266, 19
  %v455 = vpop.permute.xlu0 %454
  %456 = vrot.lane.b32.xlu0 %v267, 19
  %v457 = vpop.permute.xlu0 %456
  %458 = vrot.lane.b32.xlu0 %v268, 19
  %v459 = vpop.permute.xlu0 %458
  %460 = vrot.lane.b32.xlu0 %v269, 19
  %v461 = vpop.permute.xlu0 %460
  %462 = vrot.lane.b32.xlu0 %v263, 19
  %v463 = vpop.permute.xlu0 %462
  %464 = vrot.lane.b32.xlu0 %v300, 19
  %v465 = vpop.permute.xlu0 %464
  %466 = vrot.lane.b32.xlu0 %v314, 19
  %v467 = vpop.permute.xlu0 %466
  %468 = vrot.lane.b32.xlu0 %v315, 19
  %v469 = vpop.permute.xlu0 %468
  %470 = vrot.lane.b32.xlu0 %v316, 19
  %v471 = vpop.permute.xlu0 %470
  %472 = vrot.lane.b32.xlu0 %v317, 19
  %v473 = vpop.permute.xlu0 %472
  %474 = vrot.lane.b32.xlu0 %v318, 19
  %v475 = vpop.permute.xlu0 %474
  %476 = vrot.lane.b32.xlu0 %v319, 19
  %v477 = vpop.permute.xlu0 %476
  %478 = vrot.lane.b32.xlu0 %v321, 19
  %v479 = vpop.permute.xlu0 %478
  %480 = vrot.lane.b32.xlu0 %v335, 19
  %v481 = vpop.permute.xlu0 %480
  %482 = vrot.lane.b32.xlu0 %v336, 19
  %v483 = vpop.permute.xlu0 %482
  %484 = vrot.lane.b32.xlu0 %v337, 19
  %v485 = vpop.permute.xlu0 %484
  %486 = vrot.lane.b32.xlu0 %v338, 19
  %v487 = vpop.permute.xlu0 %486
  %488 = vrot.lane.b32.xlu0 %v339, 19
  %v489 = vpop.permute.xlu0 %488
  %490 = vrot.lane.b32.xlu0 %v340, 19
  %v491 = vpop.permute.xlu0 %490
  %492 = vrot.lane.b32.xlu0 %v342, 19
  %v493 = vpop.permute.xlu0 %492
  %494 = vrot.lane.b32.xlu0 %v356, 19
  %v495 = vpop.permute.xlu0 %494
  %496 = vrot.lane.b32.xlu0 %v357, 19
  %v497 = vpop.permute.xlu0 %496
  %498 = vrot.lane.b32.xlu0 %v358, 19
  %v499 = vpop.permute.xlu0 %498
  %500 = vrot.lane.b32.xlu0 %v359, 19
  %v501 = vpop.permute.xlu0 %500
  %502 = vrot.lane.b32.xlu0 %v360, 19
  %v503 = vpop.permute.xlu0 %502
  %504 = vrot.lane.b32.xlu0 %v361, 19
  %v505 = vpop.permute.xlu0 %504
  %506 = vrot.lane.b32.xlu0 %v363, 19
  %v507 = vpop.permute.xlu0 %506
  %508 = vrot.lane.b32.xlu0 %v377, 19
  %v509 = vpop.permute.xlu0 %508
  %510 = vrot.lane.b32.xlu0 %v378, 19
  %v511 = vpop.permute.xlu0 %510
  %512 = vrot.lane.b32.xlu0 %v379, 19
  %v513 = vpop.permute.xlu0 %512
  %514 = vrot.lane.b32.xlu0 %v380, 19
  %v515 = vpop.permute.xlu0 %514
  %516 = vrot.lane.b32.xlu0 %v381, 19
  %v517 = vpop.permute.xlu0 %516
  %518 = vrot.lane.b32.xlu0 %v382, 19
  %v519 = vpop.permute.xlu0 %518
  %vm520 = vcmask 154624
  %v521 = vsel %vm520, %v395, %v397
  %v522 = vsel %vm520, %v397, %v399
  %v523 = vsel %vm520, %v399, %v401
  %v524 = vsel %vm520, %v401, %v403
  %v525 = vsel %vm520, %v403, %v405
  %v526 = vsel %vm520, %v405, %v407
  %v527 = vsel %vm520, %v409, %v411
  %v528 = vsel %vm520, %v411, %v413
  %v529 = vsel %vm520, %v413, %v415
  %v530 = vsel %vm520, %v415, %v417
  %v531 = vsel %vm520, %v417, %v419
  %v532 = vsel %vm520, %v419, %v421
  %v533 = vsel %vm520, %v423, %v425
  %v534 = vsel %vm520, %v425, %v427
  %v535 = vsel %vm520, %v427, %v429
  %v536 = vsel %vm520, %v429, %v431
  %v537 = vsel %vm520, %v431, %v433
  %v538 = vsel %vm520, %v433, %v435
  %v539 = vsel %vm520, %v437, %v439
  %v540 = vsel %vm520, %v439, %v441
  %v541 = vsel %vm520, %v441, %v443
  %v542 = vsel %vm520, %v443, %v445
  %v543 = vsel %vm520, %v445, %v447
  %v544 = vsel %vm520, %v447, %v449
  %v545 = vsel %vm520, %v451, %v453
  %v546 = vsel %vm520, %v453, %v455
  %v547 = vsel %vm520, %v455, %v457
  %v548 = vsel %vm520, %v457, %v459
  %v549 = vsel %vm520, %v459, %v461
  %v550 = vsel %vm520, %v461, %v463
  %v551 = vsel %vm520, %v465, %v467
  %v552 = vsel %vm520, %v467, %v469
  %v553 = vsel %vm520, %v469, %v471
  %v554 = vsel %vm520, %v471, %v473
  %v555 = vsel %vm520, %v473, %v475
  %v556 = vsel %vm520, %v475, %v477
  %v557 = vsel %vm520, %v479, %v481
  %v558 = vsel %vm520, %v481, %v483
  %v559 = vsel %vm520, %v483, %v485
  %v560 = vsel %vm520, %v485, %v487
  %v561 = vsel %vm520, %v487, %v489
  %v562 = vsel %vm520, %v489, %v491
  %v563 = vsel %vm520, %v493, %v495
  %v564 = vsel %vm520, %v495, %v497
  %v565 = vsel %vm520, %v497, %v499
  %v566 = vsel %vm520, %v499, %v501
  %v567 = vsel %vm520, %v501, %v503
  %v568 = vsel %vm520, %v503, %v505
  %v569 = vsel %vm520, %v507, %v509
  %v570 = vsel %vm520, %v509, %v511
  %v571 = vsel %vm520, %v511, %v513
  %v572 = vsel %vm520, %v513, %v515
  %v573 = vsel %vm520, %v515, %v517
  %v574 = vsel %vm520, %v517, %v519
  %vm629 = vcmask 130048
  %v631 = vsel %vm629, %v392, 0
  %633 = vmatprep.subr.bf16.mxu0 %v564
  %634 = vmatpush1.bf16.msra.mxu0 %v563
  %635 = vmatprep.subr.bf16.mxu0 %v558
  %636 = vmatpush1.bf16.msra.mxu0 %v557
  %637 = vmatprep.subr.bf16.mxu0 %v552
  %638 = vmatpush1.bf16.msra.mxu0 %v551
  %639 = vmatprep.subr.bf16.mxu0 %v546
  %640 = vmatpush1.bf16.msra.mxu0 %v545
  %641 = vmatprep.subr.bf16.mxu0 %v540
  %642 = vmatpush1.bf16.msra.mxu0 %v539
  %643 = vmatprep.subr.bf16.mxu0 %v534
  %644 = vmatpush1.bf16.msra.mxu0 %v533
  %645 = vmatprep.subr.bf16.mxu0 %v528
  %646 = vmatpush1.bf16.msra.mxu0 %v527
  %647 = vmatprep.subr.bf16.mxu0 %v522
  %648 = vmatpush1.bf16.msra.mxu0 %v521
  %649 = vmatprep.subr.bf16.mxu0 0
  %650 = vmatpush2.bf16.msra.mxu0 0
  %651 = vmatprep.subr.bf16.mxu0 0
  %652 = vmatpush2.bf16.msra.mxu0 0
  %653 = vmatprep.subr.bf16.mxu0 0
  %654 = vmatpush2.bf16.msra.mxu0 0
  %655 = vmatprep.subr.bf16.mxu0 0
  %656 = vmatpush2.bf16.msra.mxu0 0
  %657 = vmatprep.subr.bf16.mxu0 0
  %658 = vmatpush2.bf16.msra.mxu0 0
  %659 = vmatprep.subr.bf16.mxu0 0
  %660 = vmatpush2.bf16.msra.mxu0 0
  %661 = vmatprep.subr.bf16.mxu0 0
  %662 = vmatpush2.bf16.msra.mxu0 0
  %663 = vmatprep.subr.bf16.mxu0 %v570
  %664 = vmatpush2.bf16.msra.mxu0 %v569
  %665 = vmatprep.mubr.bf16.mxu0 %v631
  %666 = vmatmul.mubr.bf16.gmra.mxu0 %v391
  %v667 = vpop.f32.mrf.mxu0
  %v668 = vadd.f32 0.0, %v667
  %v669 = vpop.f32.mrf.mxu0
  %v670 = vadd.f32 0.0, %v669
  %v671 = vpop.f32.mrf.mxu0
  %v672 = vadd.f32 0.0, %v671
  %v673 = vpop.f32.mrf.mxu0
  %v674 = vadd.f32 0.0, %v673
  %675 = vdwg.mxu0
  %676 = vmatprep.subr.bf16.mxu0 %v566
  %677 = vmatpush1.bf16.msra.mxu0 %v565
  %678 = vmatprep.subr.bf16.mxu0 %v560
  %679 = vmatpush1.bf16.msra.mxu0 %v559
  %680 = vmatprep.subr.bf16.mxu0 %v554
  %681 = vmatpush1.bf16.msra.mxu0 %v553
  %682 = vmatprep.subr.bf16.mxu0 %v548
  %683 = vmatpush1.bf16.msra.mxu0 %v547
  %684 = vmatprep.subr.bf16.mxu0 %v542
  %685 = vmatpush1.bf16.msra.mxu0 %v541
  %686 = vmatprep.subr.bf16.mxu0 %v536
  %687 = vmatpush1.bf16.msra.mxu0 %v535
  %688 = vmatprep.subr.bf16.mxu0 %v530
  %689 = vmatpush1.bf16.msra.mxu0 %v529
  %690 = vmatprep.subr.bf16.mxu0 %v524
  %691 = vmatpush1.bf16.msra.mxu0 %v523
  %692 = vmatprep.subr.bf16.mxu0 0
  %693 = vmatpush2.bf16.msra.mxu0 0
  %694 = vmatprep.subr.bf16.mxu0 0
  %695 = vmatpush2.bf16.msra.mxu0 0
  %696 = vmatprep.subr.bf16.mxu0 0
  %697 = vmatpush2.bf16.msra.mxu0 0
  %698 = vmatprep.subr.bf16.mxu0 0
  %699 = vmatpush2.bf16.msra.mxu0 0
  %700 = vmatprep.subr.bf16.mxu0 0
  %701 = vmatpush2.bf16.msra.mxu0 0
  %702 = vmatprep.subr.bf16.mxu0 0
  %703 = vmatpush2.bf16.msra.mxu0 0
  %704 = vmatprep.subr.bf16.mxu0 0
  %705 = vmatpush2.bf16.msra.mxu0 0
  %706 = vmatprep.subr.bf16.mxu0 %v572
  %707 = vmatpush2.bf16.msra.mxu0 %v571
  %708 = vmatprep.mubr.bf16.mxu0 %v631
  %709 = vmatmul.mubr.bf16.gmra.mxu0 %v391
  %v710 = vpop.f32.mrf.mxu0
  %v711 = vadd.f32 0.0, %v710
  %v712 = vpop.f32.mrf.mxu0
  %v713 = vadd.f32 0.0, %v712
  %v714 = vpop.f32.mrf.mxu0
  %v715 = vadd.f32 0.0, %v714
  %v716 = vpop.f32.mrf.mxu0
  %v717 = vadd.f32 0.0, %v716
  %718 = vdwg.mxu0
  %719 = vmatprep.subr.bf16.mxu0 %v568
  %720 = vmatpush1.bf16.msra.mxu0 %v567
  %721 = vmatprep.subr.bf16.mxu0 %v562
  %722 = vmatpush1.bf16.msra.mxu0 %v561
  %723 = vmatprep.subr.bf16.mxu0 %v556
  %724 = vmatpush1.bf16.msra.mxu0 %v555
  %725 = vmatprep.subr.bf16.mxu0 %v550
  %726 = vmatpush1.bf16.msra.mxu0 %v549
  %727 = vmatprep.subr.bf16.mxu0 %v544
  %728 = vmatpush1.bf16.msra.mxu0 %v543
  %729 = vmatprep.subr.bf16.mxu0 %v538
  %730 = vmatpush1.bf16.msra.mxu0 %v537
  %731 = vmatprep.subr.bf16.mxu0 %v532
  %732 = vmatpush1.bf16.msra.mxu0 %v531
  %733 = vmatprep.subr.bf16.mxu0 %v526
  %734 = vmatpush1.bf16.msra.mxu0 %v525
  %735 = vmatprep.subr.bf16.mxu0 0
  %736 = vmatpush2.bf16.msra.mxu0 0
  %737 = vmatprep.subr.bf16.mxu0 0
  %738 = vmatpush2.bf16.msra.mxu0 0
  %739 = vmatprep.subr.bf16.mxu0 0
  %740 = vmatpush2.bf16.msra.mxu0 0
  %741 = vmatprep.subr.bf16.mxu0 0
  %742 = vmatpush2.bf16.msra.mxu0 0
  %743 = vmatprep.subr.bf16.mxu0 0
  %744 = vmatpush2.bf16.msra.mxu0 0
  %745 = vmatprep.subr.bf16.mxu0 0
  %746 = vmatpush2.bf16.msra.mxu0 0
  %747 = vmatprep.subr.bf16.mxu0 0
  %748 = vmatpush2.bf16.msra.mxu0 0
  %749 = vmatprep.subr.bf16.mxu0 %v574
  %750 = vmatpush2.bf16.msra.mxu0 %v573
  %751 = vmatprep.mubr.bf16.mxu0 %v631
  %752 = vmatmul.mubr.bf16.gmra.mxu0 %v391
  %v753 = vpop.f32.mrf.mxu0
  %v754 = vadd.f32 0.0, %v753
  %v755 = vpop.f32.mrf.mxu0
  %v756 = vadd.f32 0.0, %v755
  %v757 = vpop.f32.mrf.mxu0
  %v758 = vadd.f32 0.0, %v757
  %v759 = vpop.f32.mrf.mxu0
  %v760 = vadd.f32 0.0, %v759
  %761 = vdwg.mxu0
  %v762 = vld [vmem:[%s2] sm:$0xff]
  %v763 = vld [vmem:[%s2 + $0x8] sm:$0xff]
  %765 = vset.pattern.permute.xlu0 0
  %766 = vperm.xlu0 %765, %v762
  %v767 = vpop.permute.xlu0 %766
  %770 = vset.pattern.permute.xlu0 0
  %771 = vperm.xlu0 %770, %v763
  %v772 = vpop.permute.xlu0 %771
  %v774 = vmul.f32 %v668, %v767
  %v775 = vmul.f32 %v670, %v767
  %v776 = vmul.f32 %v711, %v767
  %v777 = vmul.f32 %v713, %v767
  %v778 = vmul.f32 %v754, %v767
  %v779 = vmul.f32 %v756, %v767
  %v780 = vmul.f32 %v672, %v772
  %v781 = vmul.f32 %v674, %v772
  %v782 = vmul.f32 %v715, %v772
  %v783 = vmul.f32 %v717, %v772
  %v784 = vmul.f32 %v758, %v772
  %v785 = vmul.f32 %v760, %v772
  %v786 = vld [vmem:[%s3] sm:$0xff]
  %v787 = vld [vmem:[%s3 + $0x8] sm:$0xff]
  %789 = vset.pattern.permute.xlu0 0
  %790 = vperm.xlu0 %789, %v786
  %v791 = vpop.permute.xlu0 %790
  %794 = vset.pattern.permute.xlu0 0
  %795 = vperm.xlu0 %794, %v787
  %v796 = vpop.permute.xlu0 %795
  %v798 = vadd.f32 %v774, %v791
  %v799 = vadd.f32 %v775, %v791
  %v800 = vadd.f32 %v776, %v791
  %v801 = vadd.f32 %v777, %v791
  %v802 = vadd.f32 %v778, %v791
  %v803 = vadd.f32 %v779, %v791
  %v804 = vadd.f32 %v780, %v796
  %v805 = vadd.f32 %v781, %v796
  %v806 = vadd.f32 %v782, %v796
  %v807 = vadd.f32 %v783, %v796
  %v808 = vadd.f32 %v784, %v796
  %v809 = vadd.f32 %v785, %v796
  %v810 = vmax.f32 %v798, 0.0
  %v811 = vmax.f32 %v799, 0.0
  %v812 = vmax.f32 %v800, 0.0
  %v813 = vmax.f32 %v801, 0.0
  %v814 = vmax.f32 %v802, 0.0
  %v815 = vmax.f32 %v803, 0.0
  %v816 = vmax.f32 %v804, 0.0
  %v817 = vmax.f32 %v805, 0.0
  %v818 = vmax.f32 %v806, 0.0
  %v819 = vmax.f32 %v807, 0.0
  %v820 = vmax.f32 %v808, 0.0
  %v821 = vmax.f32 %v809, 0.0
  %v823 = vlaneseq
  %v824 = vshrl.u32 %v823, 7
  %v825 = vsub.s32 0, %v824
  %v826 = vrot.slane %v113, %v825
  %v827 = vlaneseq
  %v828 = vshrl.u32 %v827, 7
  %v829 = vsub.s32 1, %v828
  %v830 = vrot.slane %v113, %v829
  %v831 = vlaneseq
  %v832 = vshrl.u32 %v831, 7
  %v833 = vsub.s32 2, %v832
  %v834 = vrot.slane %v113, %v833
  %v835 = vlaneseq
  %v836 = vshrl.u32 %v835, 7
  %v837 = vsub.s32 3, %v836
  %v838 = vrot.slane %v113, %v837
  %v839 = vlaneseq
  %v840 = vshrl.u32 %v839, 7
  %v841 = vsub.s32 4, %v840
  %v842 = vrot.slane %v113, %v841
  %v843 = vlaneseq
  %v844 = vshrl.u32 %v843, 7
  %v845 = vsub.s32 5, %v844
  %v846 = vrot.slane %v113, %v845
  %v853 = vmul.f32 %v810, %v826
  %v854 = vmul.f32 %v811, %v830
  %v855 = vmul.f32 %v812, %v834
  %v856 = vmul.f32 %v813, %v838
  %v857 = vmul.f32 %v814, %v842
  %v858 = vmul.f32 %v815, %v846
  %v859 = vmul.f32 %v816, %v826
  %v860 = vmul.f32 %v817, %v830
  %v861 = vmul.f32 %v818, %v834
  %v862 = vmul.f32 %v819, %v838
  %v863 = vmul.f32 %v820, %v842
  %v864 = vmul.f32 %v821, %v846
  %v865 = vpack.c.bf16 %v859, %v853
  %v866 = vpack.c.bf16 %v860, %v854
  %v867 = vpack.c.bf16 %v861, %v855
  %v868 = vpack.c.bf16 %v862, %v856
  %v869 = vpack.c.bf16 %v863, %v857
  %v870 = vpack.c.bf16 %v864, %v858
  %v877 = vunpack.c.l.b16 %v865
  %v878 = vunpack.c.l.b16 %v866
  %v879 = vunpack.c.l.b16 %v867
  %v880 = vunpack.c.l.b16 %v868
  %v881 = vunpack.c.l.b16 %v869
  %v882 = vunpack.c.l.b16 %v870
  %v883 = vunpack.c.h.b16 %v865
  %v884 = vunpack.c.h.b16 %v866
  %v885 = vunpack.c.h.b16 %v867
  %v886 = vunpack.c.h.b16 %v868
  %v887 = vunpack.c.h.b16 %v869
  %v888 = vunpack.c.h.b16 %v870
  %v889 = vpack.c.b16 %v878, %v877
  %v890 = vpack.c.b16 %v880, %v879
  %v891 = vpack.c.b16 %v882, %v881
  %v892 = vpack.c.b16 %v884, %v883
  %v893 = vpack.c.b16 %v886, %v885
  %v894 = vpack.c.b16 %v888, %v887
  %901 = vst [vmem:[#allocation2 + $0x4] sm:$0xff] %v889
  %902 = vst [vmem:[#allocation2 + $0xc] sm:$0xff] %v890
  %903 = vst [vmem:[#allocation2 + $0x14] sm:$0xff] %v891
  %904 = vst [vmem:[#allocation2 + $0x24] sm:$0xff] %v892
  %905 = vst [vmem:[#allocation2 + $0x2c] sm:$0xff] %v893
  %906 = vst [vmem:[#allocation2 + $0x34] sm:$0xff] %v894
  %v907 = vld [vmem:[#allocation2] sm:$0xff]
  %v908 = vld [vmem:[#allocation2 + $0x8] sm:$0xff]
  %v909 = vld [vmem:[#allocation2 + $0x10] sm:$0xff]
  %v910 = vld [vmem:[#allocation2 + $0x18] sm:$0xf]
  %v911 = vld [vmem:[#allocation2 + $0x20] sm:$0xff]
  %v912 = vld [vmem:[#allocation2 + $0x28] sm:$0xff]
  %v913 = vld [vmem:[#allocation2 + $0x30] sm:$0xff]
  %v914 = vld [vmem:[#allocation2 + $0x38] sm:$0xf]
  %v915 = vld [vmem:[#allocation2 + $0x4] sm:$0xff]
  %v916 = vld [vmem:[#allocation2 + $0xc] sm:$0xff]
  %v917 = vld [vmem:[#allocation2 + $0x14] sm:$0xff]
  %v918 = vld [vmem:[#allocation2 + $0x24] sm:$0xff]
  %v919 = vld [vmem:[#allocation2 + $0x2c] sm:$0xff]
  %v920 = vld [vmem:[#allocation2 + $0x34] sm:$0xff]
  %v921 = vld [vmem:[#allocation2 + $0x4] sm:$0xff]
  %v922 = vld [vmem:[#allocation2 + $0xc] sm:$0xff]
  %v923 = vld [vmem:[#allocation2 + $0x14] sm:$0xff]
  %v924 = vld [vmem:[#allocation2 + $0x1c] sm:$0xf]
  %v925 = vld [vmem:[#allocation2 + $0x24] sm:$0xff]
  %v926 = vld [vmem:[#allocation2 + $0x2c] sm:$0xff]
  %v927 = vld [vmem:[#allocation2 + $0x34] sm:$0xff]
  %v928 = vld [vmem:[#allocation2 + $0x3c] sm:$0xf]
  %v937 = vunpack.c.l.b16 %v907
  %v938 = vunpack.c.h.b16 %v907
  %v939 = vunpack.c.l.b16 %v908
  %v940 = vunpack.c.h.b16 %v908
  %v941 = vunpack.c.l.b16 %v909
  %v942 = vunpack.c.h.b16 %v909
  %v943 = vunpack.c.l.b16 %v910
  %v944 = vunpack.c.l.b16 %v911
  %v945 = vunpack.c.h.b16 %v911
  %v946 = vunpack.c.l.b16 %v912
  %v947 = vunpack.c.h.b16 %v912
  %v948 = vunpack.c.l.b16 %v913
  %v949 = vunpack.c.h.b16 %v913
  %v950 = vunpack.c.l.b16 %v914
  %v951 = vpack.c.b16 %v944, %v937
  %v952 = vpack.c.b16 %v945, %v938
  %v953 = vpack.c.b16 %v946, %v939
  %v954 = vpack.c.b16 %v947, %v940
  %v955 = vpack.c.b16 %v948, %v941
  %v956 = vpack.c.b16 %v949, %v942
  %v957 = vpack.c.b16 %v950, %v943
  %958 = vrot.lane.b32.xlu0 %v951, 127
  %v959 = vpop.permute.xlu0 %958
  %960 = vrot.lane.b32.xlu0 %v952, 127
  %v961 = vpop.permute.xlu0 %960
  %962 = vrot.lane.b32.xlu0 %v953, 127
  %v963 = vpop.permute.xlu0 %962
  %964 = vrot.lane.b32.xlu0 %v954, 127
  %v965 = vpop.permute.xlu0 %964
  %966 = vrot.lane.b32.xlu0 %v955, 127
  %v967 = vpop.permute.xlu0 %966
  %968 = vrot.lane.b32.xlu0 %v956, 127
  %v969 = vpop.permute.xlu0 %968
  %970 = vrot.lane.b32.xlu0 %v957, 127
  %v971 = vpop.permute.xlu0 %970
  %v972 = vsel %vm179, %v959, %v961
  %v973 = vsel %vm179, %v961, %v963
  %v974 = vsel %vm179, %v963, %v965
  %v975 = vsel %vm179, %v965, %v967
  %v976 = vsel %vm179, %v967, %v969
  %v977 = vsel %vm179, %v969, %v971
  %978 = vrot.lane.b32.xlu0 %v951, 126
  %v979 = vpop.permute.xlu0 %978
  %980 = vrot.lane.b32.xlu0 %v952, 126
  %v981 = vpop.permute.xlu0 %980
  %982 = vrot.lane.b32.xlu0 %v953, 126
  %v983 = vpop.permute.xlu0 %982
  %984 = vrot.lane.b32.xlu0 %v954, 126
  %v985 = vpop.permute.xlu0 %984
  %986 = vrot.lane.b32.xlu0 %v955, 126
  %v987 = vpop.permute.xlu0 %986
  %988 = vrot.lane.b32.xlu0 %v956, 126
  %v989 = vpop.permute.xlu0 %988
  %990 = vrot.lane.b32.xlu0 %v957, 126
  %v991 = vpop.permute.xlu0 %990
  %v992 = vsel %vm200, %v979, %v981
  %v993 = vsel %vm200, %v981, %v983
  %v994 = vsel %vm200, %v983, %v985
  %v995 = vsel %vm200, %v985, %v987
  %v996 = vsel %vm200, %v987, %v989
  %v997 = vsel %vm200, %v989, %v991
  %998 = vrot.lane.b32.xlu0 %v951, 110
  %v999 = vpop.permute.xlu0 %998
  %1000 = vrot.lane.b32.xlu0 %v952, 110
  %v1001 = vpop.permute.xlu0 %1000
  %1002 = vrot.lane.b32.xlu0 %v953, 110
  %v1003 = vpop.permute.xlu0 %1002
  %1004 = vrot.lane.b32.xlu0 %v954, 110
  %v1005 = vpop.permute.xlu0 %1004
  %1006 = vrot.lane.b32.xlu0 %v955, 110
  %v1007 = vpop.permute.xlu0 %1006
  %1008 = vrot.lane.b32.xlu0 %v956, 110
  %v1009 = vpop.permute.xlu0 %1008
  %1010 = vrot.lane.b32.xlu0 %v957, 110
  %v1011 = vpop.permute.xlu0 %1010
  %v1012 = vsel %vm221, %v999, %v1001
  %v1013 = vsel %vm221, %v1001, %v1003
  %v1014 = vsel %vm221, %v1003, %v1005
  %v1015 = vsel %vm221, %v1005, %v1007
  %v1016 = vsel %vm221, %v1007, %v1009
  %v1017 = vsel %vm221, %v1009, %v1011
  %v1024 = vunpack.c.l.b16 %v915
  %v1025 = vunpack.c.h.b16 %v915
  %v1026 = vunpack.c.l.b16 %v916
  %v1027 = vunpack.c.h.b16 %v916
  %v1028 = vunpack.c.l.b16 %v917
  %v1029 = vunpack.c.h.b16 %v917
  %v1030 = vunpack.c.l.b16 %v918
  %v1031 = vunpack.c.h.b16 %v918
  %v1032 = vunpack.c.l.b16 %v919
  %v1033 = vunpack.c.h.b16 %v919
  %v1034 = vunpack.c.l.b16 %v920
  %v1035 = vunpack.c.h.b16 %v920
  %v1036 = vpack.c.b16 %v1030, %v1024
  %v1037 = vpack.c.b16 %v1031, %v1025
  %v1038 = vpack.c.b16 %v1032, %v1026
  %v1039 = vpack.c.b16 %v1033, %v1027
  %v1040 = vpack.c.b16 %v1034, %v1028
  %v1041 = vpack.c.b16 %v1035, %v1029
  %1042 = vrot.lane.b32.xlu0 %v1036, 109
  %v1043 = vpop.permute.xlu0 %1042
  %1044 = vrot.lane.b32.xlu0 %v1037, 109
  %v1045 = vpop.permute.xlu0 %1044
  %1046 = vrot.lane.b32.xlu0 %v1038, 109
  %v1047 = vpop.permute.xlu0 %1046
  %1048 = vrot.lane.b32.xlu0 %v1039, 109
  %v1049 = vpop.permute.xlu0 %1048
  %1050 = vrot.lane.b32.xlu0 %v1040, 109
  %v1051 = vpop.permute.xlu0 %1050
  %1052 = vrot.lane.b32.xlu0 %v1041, 109
  %v1053 = vpop.permute.xlu0 %1052
  %v1054 = vsel %vm264, %v1043, %v1045
  %v1055 = vsel %vm264, %v1045, %v1047
  %v1056 = vsel %vm264, %v1047, %v1049
  %v1057 = vsel %vm264, %v1049, %v1051
  %v1058 = vsel %vm264, %v1051, %v1053
  %v1067 = vunpack.c.l.b16 %v921
  %v1068 = vunpack.c.h.b16 %v921
  %v1069 = vunpack.c.l.b16 %v922
  %v1070 = vunpack.c.h.b16 %v922
  %v1071 = vunpack.c.l.b16 %v923
  %v1072 = vunpack.c.h.b16 %v923
  %v1073 = vunpack.c.l.b16 %v924
  %v1074 = vunpack.c.l.b16 %v925
  %v1075 = vunpack.c.h.b16 %v925
  %v1076 = vunpack.c.l.b16 %v926
  %v1077 = vunpack.c.h.b16 %v926
  %v1078 = vunpack.c.l.b16 %v927
  %v1079 = vunpack.c.h.b16 %v927
  %v1080 = vunpack.c.l.b16 %v928
  %v1081 = vpack.c.b16 %v1074, %v1067
  %v1082 = vpack.c.b16 %v1075, %v1068
  %v1083 = vpack.c.b16 %v1076, %v1069
  %v1084 = vpack.c.b16 %v1077, %v1070
  %v1085 = vpack.c.b16 %v1078, %v1071
  %v1086 = vpack.c.b16 %v1079, %v1072
  %v1087 = vpack.c.b16 %v1080, %v1073
  %1088 = vrot.lane.b32.xlu0 %v1081, 108
  %v1089 = vpop.permute.xlu0 %1088
  %1090 = vrot.lane.b32.xlu0 %v1082, 108
  %v1091 = vpop.permute.xlu0 %1090
  %1092 = vrot.lane.b32.xlu0 %v1083, 108
  %v1093 = vpop.permute.xlu0 %1092
  %1094 = vrot.lane.b32.xlu0 %v1084, 108
  %v1095 = vpop.permute.xlu0 %1094
  %1096 = vrot.lane.b32.xlu0 %v1085, 108
  %v1097 = vpop.permute.xlu0 %1096
  %1098 = vrot.lane.b32.xlu0 %v1086, 108
  %v1099 = vpop.permute.xlu0 %1098
  %1100 = vrot.lane.b32.xlu0 %v1087, 108
  %v1101 = vpop.permute.xlu0 %1100
  %v1102 = vsel %vm313, %v1089, %v1091
  %v1103 = vsel %vm313, %v1091, %v1093
  %v1104 = vsel %vm313, %v1093, %v1095
  %v1105 = vsel %vm313, %v1095, %v1097
  %v1106 = vsel %vm313, %v1097, %v1099
  %v1107 = vsel %vm313, %v1099, %v1101
  %1108 = vrot.lane.b32.xlu0 %v1081, 92
  %v1109 = vpop.permute.xlu0 %1108
  %1110 = vrot.lane.b32.xlu0 %v1082, 92
  %v1111 = vpop.permute.xlu0 %1110
  %1112 = vrot.lane.b32.xlu0 %v1083, 92
  %v1113 = vpop.permute.xlu0 %1112
  %1114 = vrot.lane.b32.xlu0 %v1084, 92
  %v1115 = vpop.permute.xlu0 %1114
  %1116 = vrot.lane.b32.xlu0 %v1085, 92
  %v1117 = vpop.permute.xlu0 %1116
  %1118 = vrot.lane.b32.xlu0 %v1086, 92
  %v1119 = vpop.permute.xlu0 %1118
  %1120 = vrot.lane.b32.xlu0 %v1087, 92
  %v1121 = vpop.permute.xlu0 %1120
  %v1122 = vsel %vm334, %v1109, %v1111
  %v1123 = vsel %vm334, %v1111, %v1113
  %v1124 = vsel %vm334, %v1113, %v1115
  %v1125 = vsel %vm334, %v1115, %v1117
  %v1126 = vsel %vm334, %v1117, %v1119
  %v1127 = vsel %vm334, %v1119, %v1121
  %1128 = vrot.lane.b32.xlu0 %v1081, 91
  %v1129 = vpop.permute.xlu0 %1128
  %1130 = vrot.lane.b32.xlu0 %v1082, 91
  %v1131 = vpop.permute.xlu0 %1130
  %1132 = vrot.lane.b32.xlu0 %v1083, 91
  %v1133 = vpop.permute.xlu0 %1132
  %1134 = vrot.lane.b32.xlu0 %v1084, 91
  %v1135 = vpop.permute.xlu0 %1134
  %1136 = vrot.lane.b32.xlu0 %v1085, 91
  %v1137 = vpop.permute.xlu0 %1136
  %1138 = vrot.lane.b32.xlu0 %v1086, 91
  %v1139 = vpop.permute.xlu0 %1138
  %1140 = vrot.lane.b32.xlu0 %v1087, 91
  %v1141 = vpop.permute.xlu0 %1140
  %v1142 = vsel %vm355, %v1129, %v1131
  %v1143 = vsel %vm355, %v1131, %v1133
  %v1144 = vsel %vm355, %v1133, %v1135
  %v1145 = vsel %vm355, %v1135, %v1137
  %v1146 = vsel %vm355, %v1137, %v1139
  %v1147 = vsel %vm355, %v1139, %v1141
  %1148 = vrot.lane.b32.xlu0 %v1081, 90
  %v1149 = vpop.permute.xlu0 %1148
  %1150 = vrot.lane.b32.xlu0 %v1082, 90
  %v1151 = vpop.permute.xlu0 %1150
  %1152 = vrot.lane.b32.xlu0 %v1083, 90
  %v1153 = vpop.permute.xlu0 %1152
  %1154 = vrot.lane.b32.xlu0 %v1084, 90
  %v1155 = vpop.permute.xlu0 %1154
  %1156 = vrot.lane.b32.xlu0 %v1085, 90
  %v1157 = vpop.permute.xlu0 %1156
  %1158 = vrot.lane.b32.xlu0 %v1086, 90
  %v1159 = vpop.permute.xlu0 %1158
  %1160 = vrot.lane.b32.xlu0 %v1087, 90
  %v1161 = vpop.permute.xlu0 %1160
  %v1162 = vsel %vm376, %v1149, %v1151
  %v1163 = vsel %vm376, %v1151, %v1153
  %v1164 = vsel %vm376, %v1153, %v1155
  %v1165 = vsel %vm376, %v1155, %v1157
  %v1166 = vsel %vm376, %v1157, %v1159
  %v1167 = vsel %vm376, %v1159, %v1161
  %v1168 = vld [vmem:[%s4] sm:$0xff]
  %v1169 = vld [vmem:[%s4 + $0x8] sm:$0xff]
  %v1172 = vunpack.c.l.b16 %v1168
  %v1173 = vunpack.c.h.b16 %v1168
  %v1174 = vunpack.c.l.b16 %v1169
  %v1175 = vunpack.c.h.b16 %v1169
  %v1176 = vpack.c.b16 %v1174, %v1172
  %v1177 = vpack.c.b16 %v1175, %v1173
  %1179 = vrot.lane.b32.xlu0 %v951, 19
  %v1180 = vpop.permute.xlu0 %1179
  %1181 = vrot.lane.b32.xlu0 %v952, 19
  %v1182 = vpop.permute.xlu0 %1181
  %1183 = vrot.lane.b32.xlu0 %v953, 19
  %v1184 = vpop.permute.xlu0 %1183
  %1185 = vrot.lane.b32.xlu0 %v954, 19
  %v1186 = vpop.permute.xlu0 %1185
  %1187 = vrot.lane.b32.xlu0 %v955, 19
  %v1188 = vpop.permute.xlu0 %1187
  %1189 = vrot.lane.b32.xlu0 %v956, 19
  %v1190 = vpop.permute.xlu0 %1189
  %1191 = vrot.lane.b32.xlu0 %v957, 19
  %v1192 = vpop.permute.xlu0 %1191
  %1193 = vrot.lane.b32.xlu0 %v972, 19
  %v1194 = vpop.permute.xlu0 %1193
  %1195 = vrot.lane.b32.xlu0 %v973, 19
  %v1196 = vpop.permute.xlu0 %1195
  %1197 = vrot.lane.b32.xlu0 %v974, 19
  %v1198 = vpop.permute.xlu0 %1197
  %1199 = vrot.lane.b32.xlu0 %v975, 19
  %v1200 = vpop.permute.xlu0 %1199
  %1201 = vrot.lane.b32.xlu0 %v976, 19
  %v1202 = vpop.permute.xlu0 %1201
  %1203 = vrot.lane.b32.xlu0 %v977, 19
  %v1204 = vpop.permute.xlu0 %1203
  %1205 = vrot.lane.b32.xlu0 %v971, 19
  %v1206 = vpop.permute.xlu0 %1205
  %1207 = vrot.lane.b32.xlu0 %v992, 19
  %v1208 = vpop.permute.xlu0 %1207
  %1209 = vrot.lane.b32.xlu0 %v993, 19
  %v1210 = vpop.permute.xlu0 %1209
  %1211 = vrot.lane.b32.xlu0 %v994, 19
  %v1212 = vpop.permute.xlu0 %1211
  %1213 = vrot.lane.b32.xlu0 %v995, 19
  %v1214 = vpop.permute.xlu0 %1213
  %1215 = vrot.lane.b32.xlu0 %v996, 19
  %v1216 = vpop.permute.xlu0 %1215
  %1217 = vrot.lane.b32.xlu0 %v997, 19
  %v1218 = vpop.permute.xlu0 %1217
  %1219 = vrot.lane.b32.xlu0 %v991, 19
  %v1220 = vpop.permute.xlu0 %1219
  %1221 = vrot.lane.b32.xlu0 %v1012, 19
  %v1222 = vpop.permute.xlu0 %1221
  %1223 = vrot.lane.b32.xlu0 %v1013, 19
  %v1224 = vpop.permute.xlu0 %1223
  %1225 = vrot.lane.b32.xlu0 %v1014, 19
  %v1226 = vpop.permute.xlu0 %1225
  %1227 = vrot.lane.b32.xlu0 %v1015, 19
  %v1228 = vpop.permute.xlu0 %1227
  %1229 = vrot.lane.b32.xlu0 %v1016, 19
  %v1230 = vpop.permute.xlu0 %1229
  %1231 = vrot.lane.b32.xlu0 %v1017, 19
  %v1232 = vpop.permute.xlu0 %1231
  %1233 = vrot.lane.b32.xlu0 %v1011, 19
  %v1234 = vpop.permute.xlu0 %1233
  %1235 = vrot.lane.b32.xlu0 %v1043, 19
  %v1236 = vpop.permute.xlu0 %1235
  %1237 = vrot.lane.b32.xlu0 %v1054, 19
  %v1238 = vpop.permute.xlu0 %1237
  %1239 = vrot.lane.b32.xlu0 %v1055, 19
  %v1240 = vpop.permute.xlu0 %1239
  %1241 = vrot.lane.b32.xlu0 %v1056, 19
  %v1242 = vpop.permute.xlu0 %1241
  %1243 = vrot.lane.b32.xlu0 %v1057, 19
  %v1244 = vpop.permute.xlu0 %1243
  %1245 = vrot.lane.b32.xlu0 %v1058, 19
  %v1246 = vpop.permute.xlu0 %1245
  %1247 = vrot.lane.b32.xlu0 %v1053, 19
  %v1248 = vpop.permute.xlu0 %1247
  %1249 = vrot.lane.b32.xlu0 %v1089, 19
  %v1250 = vpop.permute.xlu0 %1249
  %1251 = vrot.lane.b32.xlu0 %v1102, 19
  %v1252 = vpop.permute.xlu0 %1251
  %1253 = vrot.lane.b32.xlu0 %v1103, 19
  %v1254 = vpop.permute.xlu0 %1253
  %1255 = vrot.lane.b32.xlu0 %v1104, 19
  %v1256 = vpop.permute.xlu0 %1255
  %1257 = vrot.lane.b32.xlu0 %v1105, 19
  %v1258 = vpop.permute.xlu0 %1257
  %1259 = vrot.lane.b32.xlu0 %v1106, 19
  %v1260 = vpop.permute.xlu0 %1259
  %1261 = vrot.lane.b32.xlu0 %v1107, 19
  %v1262 = vpop.permute.xlu0 %1261
  %1263 = vrot.lane.b32.xlu0 %v1109, 19
  %v1264 = vpop.permute.xlu0 %1263
  %1265 = vrot.lane.b32.xlu0 %v1122, 19
  %v1266 = vpop.permute.xlu0 %1265
  %1267 = vrot.lane.b32.xlu0 %v1123, 19
  %v1268 = vpop.permute.xlu0 %1267
  %1269 = vrot.lane.b32.xlu0 %v1124, 19
  %v1270 = vpop.permute.xlu0 %1269
  %1271 = vrot.lane.b32.xlu0 %v1125, 19
  %v1272 = vpop.permute.xlu0 %1271
  %1273 = vrot.lane.b32.xlu0 %v1126, 19
  %v1274 = vpop.permute.xlu0 %1273
  %1275 = vrot.lane.b32.xlu0 %v1127, 19
  %v1276 = vpop.permute.xlu0 %1275
  %1277 = vrot.lane.b32.xlu0 %v1129, 19
  %v1278 = vpop.permute.xlu0 %1277
  %1279 = vrot.lane.b32.xlu0 %v1142, 19
  %v1280 = vpop.permute.xlu0 %1279
  %1281 = vrot.lane.b32.xlu0 %v1143, 19
  %v1282 = vpop.permute.xlu0 %1281
  %1283 = vrot.lane.b32.xlu0 %v1144, 19
  %v1284 = vpop.permute.xlu0 %1283
  %1285 = vrot.lane.b32.xlu0 %v1145, 19
  %v1286 = vpop.permute.xlu0 %1285
  %1287 = vrot.lane.b32.xlu0 %v1146, 19
  %v1288 = vpop.permute.xlu0 %1287
  %1289 = vrot.lane.b32.xlu0 %v1147, 19
  %v1290 = vpop.permute.xlu0 %1289
  %1291 = vrot.lane.b32.xlu0 %v1149, 19
  %v1292 = vpop.permute.xlu0 %1291
  %1293 = vrot.lane.b32.xlu0 %v1162, 19
  %v1294 = vpop.permute.xlu0 %1293
  %1295 = vrot.lane.b32.xlu0 %v1163, 19
  %v1296 = vpop.permute.xlu0 %1295
  %1297 = vrot.lane.b32.xlu0 %v1164, 19
  %v1298 = vpop.permute.xlu0 %1297
  %1299 = vrot.lane.b32.xlu0 %v1165, 19
  %v1300 = vpop.permute.xlu0 %1299
  %1301 = vrot.lane.b32.xlu0 %v1166, 19
  %v1302 = vpop.permute.xlu0 %1301
  %1303 = vrot.lane.b32.xlu0 %v1167, 19
  %v1304 = vpop.permute.xlu0 %1303
  %v1305 = vsel %vm520, %v1180, %v1182
  %v1306 = vsel %vm520, %v1182, %v1184
  %v1307 = vsel %vm520, %v1184, %v1186
  %v1308 = vsel %vm520, %v1186, %v1188
  %v1309 = vsel %vm520, %v1188, %v1190
  %v1310 = vsel %vm520, %v1190, %v1192
  %v1311 = vsel %vm520, %v1194, %v1196
  %v1312 = vsel %vm520, %v1196, %v1198
  %v1313 = vsel %vm520, %v1198, %v1200
  %v1314 = vsel %vm520, %v1200, %v1202
  %v1315 = vsel %vm520, %v1202, %v1204
  %v1316 = vsel %vm520, %v1204, %v1206
  %v1317 = vsel %vm520, %v1208, %v1210
  %v1318 = vsel %vm520, %v1210, %v1212
  %v1319 = vsel %vm520, %v1212, %v1214
  %v1320 = vsel %vm520, %v1214, %v1216
  %v1321 = vsel %vm520, %v1216, %v1218
  %v1322 = vsel %vm520, %v1218, %v1220
  %v1323 = vsel %vm520, %v1222, %v1224
  %v1324 = vsel %vm520, %v1224, %v1226
  %v1325 = vsel %vm520, %v1226, %v1228
  %v1326 = vsel %vm520, %v1228, %v1230
  %v1327 = vsel %vm520, %v1230, %v1232
  %v1328 = vsel %vm520, %v1232, %v1234
  %v1329 = vsel %vm520, %v1236, %v1238
  %v1330 = vsel %vm520, %v1238, %v1240
  %v1331 = vsel %vm520, %v1240, %v1242
  %v1332 = vsel %vm520, %v1242, %v1244
  %v1333 = vsel %vm520, %v1244, %v1246
  %v1334 = vsel %vm520, %v1246, %v1248
  %v1335 = vsel %vm520, %v1250, %v1252
  %v1336 = vsel %vm520, %v1252, %v1254
  %v1337 = vsel %vm520, %v1254, %v1256
  %v1338 = vsel %vm520, %v1256, %v1258
  %v1339 = vsel %vm520, %v1258, %v1260
  %v1340 = vsel %vm520, %v1260, %v1262
  %v1341 = vsel %vm520, %v1264, %v1266
  %v1342 = vsel %vm520, %v1266, %v1268
  %v1343 = vsel %vm520, %v1268, %v1270
  %v1344 = vsel %vm520, %v1270, %v1272
  %v1345 = vsel %vm520, %v1272, %v1274
  %v1346 = vsel %vm520, %v1274, %v1276
  %v1347 = vsel %vm520, %v1278, %v1280
  %v1348 = vsel %vm520, %v1280, %v1282
  %v1349 = vsel %vm520, %v1282, %v1284
  %v1350 = vsel %vm520, %v1284, %v1286
  %v1351 = vsel %vm520, %v1286, %v1288
  %v1352 = vsel %vm520, %v1288, %v1290
  %v1353 = vsel %vm520, %v1292, %v1294
  %v1354 = vsel %vm520, %v1294, %v1296
  %v1355 = vsel %vm520, %v1296, %v1298
  %v1356 = vsel %vm520, %v1298, %v1300
  %v1357 = vsel %vm520, %v1300, %v1302
  %v1358 = vsel %vm520, %v1302, %v1304
  %v1414 = vsel %vm629, %v1177, 0
  %1416 = vmatprep.subr.bf16.mxu0 %v1348
  %1417 = vmatpush1.bf16.msra.mxu0 %v1347
  %1418 = vmatprep.subr.bf16.mxu0 %v1342
  %1419 = vmatpush1.bf16.msra.mxu0 %v1341
  %1420 = vmatprep.subr.bf16.mxu0 %v1336
  %1421 = vmatpush1.bf16.msra.mxu0 %v1335
  %1422 = vmatprep.subr.bf16.mxu0 %v1330
  %1423 = vmatpush1.bf16.msra.mxu0 %v1329
  %1424 = vmatprep.subr.bf16.mxu0 %v1324
  %1425 = vmatpush1.bf16.msra.mxu0 %v1323
  %1426 = vmatprep.subr.bf16.mxu0 %v1318
  %1427 = vmatpush1.bf16.msra.mxu0 %v1317
  %1428 = vmatprep.subr.bf16.mxu0 %v1312
  %1429 = vmatpush1.bf16.msra.mxu0 %v1311
  %1430 = vmatprep.subr.bf16.mxu0 %v1306
  %1431 = vmatpush1.bf16.msra.mxu0 %v1305
  %1432 = vmatprep.subr.bf16.mxu0 0
  %1433 = vmatpush2.bf16.msra.mxu0 0
  %1434 = vmatprep.subr.bf16.mxu0 0
  %1435 = vmatpush2.bf16.msra.mxu0 0
  %1436 = vmatprep.subr.bf16.mxu0 0
  %1437 = vmatpush2.bf16.msra.mxu0 0
  %1438 = vmatprep.subr.bf16.mxu0 0
  %1439 = vmatpush2.bf16.msra.mxu0 0
  %1440 = vmatprep.subr.bf16.mxu0 0
  %1441 = vmatpush2.bf16.msra.mxu0 0
  %1442 = vmatprep.subr.bf16.mxu0 0
  %1443 = vmatpush2.bf16.msra.mxu0 0
  %1444 = vmatprep.subr.bf16.mxu0 0
  %1445 = vmatpush2.bf16.msra.mxu0 0
  %1446 = vmatprep.subr.bf16.mxu0 %v1354
  %1447 = vmatpush2.bf16.msra.mxu0 %v1353
  %1448 = vmatprep.mubr.bf16.mxu0 %v1414
  %1449 = vmatmul.mubr.bf16.gmra.mxu0 %v1176
  %v1450 = vpop.f32.mrf.mxu0
  %v1451 = vadd.f32 0.0, %v1450
  %v1452 = vpop.f32.mrf.mxu0
  %v1453 = vadd.f32 0.0, %v1452
  %v1454 = vpop.f32.mrf.mxu0
  %v1455 = vadd.f32 0.0, %v1454
  %v1456 = vpop.f32.mrf.mxu0
  %v1457 = vadd.f32 0.0, %v1456
  %1458 = vdwg.mxu0
  %1459 = vmatprep.subr.bf16.mxu0 %v1350
  %1460 = vmatpush1.bf16.msra.mxu0 %v1349
  %1461 = vmatprep.subr.bf16.mxu0 %v1344
  %1462 = vmatpush1.bf16.msra.mxu0 %v1343
  %1463 = vmatprep.subr.bf16.mxu0 %v1338
  %1464 = vmatpush1.bf16.msra.mxu0 %v1337
  %1465 = vmatprep.subr.bf16.mxu0 %v1332
  %1466 = vmatpush1.bf16.msra.mxu0 %v1331
  %1467 = vmatprep.subr.bf16.mxu0 %v1326
  %1468 = vmatpush1.bf16.msra.mxu0 %v1325
  %1469 = vmatprep.subr.bf16.mxu0 %v1320
  %1470 = vmatpush1.bf16.msra.mxu0 %v1319
  %1471 = vmatprep.subr.bf16.mxu0 %v1314
  %1472 = vmatpush1.bf16.msra.mxu0 %v1313
  %1473 = vmatprep.subr.bf16.mxu0 %v1308
  %1474 = vmatpush1.bf16.msra.mxu0 %v1307
  %1475 = vmatprep.subr.bf16.mxu0 0
  %1476 = vmatpush2.bf16.msra.mxu0 0
  %1477 = vmatprep.subr.bf16.mxu0 0
  %1478 = vmatpush2.bf16.msra.mxu0 0
  %1479 = vmatprep.subr.bf16.mxu0 0
  %1480 = vmatpush2.bf16.msra.mxu0 0
  %1481 = vmatprep.subr.bf16.mxu0 0
  %1482 = vmatpush2.bf16.msra.mxu0 0
  %1483 = vmatprep.subr.bf16.mxu0 0
  %1484 = vmatpush2.bf16.msra.mxu0 0
  %1485 = vmatprep.subr.bf16.mxu0 0
  %1486 = vmatpush2.bf16.msra.mxu0 0
  %1487 = vmatprep.subr.bf16.mxu0 0
  %1488 = vmatpush2.bf16.msra.mxu0 0
  %1489 = vmatprep.subr.bf16.mxu0 %v1356
  %1490 = vmatpush2.bf16.msra.mxu0 %v1355
  %1491 = vmatprep.mubr.bf16.mxu0 %v1414
  %1492 = vmatmul.mubr.bf16.gmra.mxu0 %v1176
  %v1493 = vpop.f32.mrf.mxu0
  %v1494 = vadd.f32 0.0, %v1493
  %v1495 = vpop.f32.mrf.mxu0
  %v1496 = vadd.f32 0.0, %v1495
  %v1497 = vpop.f32.mrf.mxu0
  %v1498 = vadd.f32 0.0, %v1497
  %v1499 = vpop.f32.mrf.mxu0
  %v1500 = vadd.f32 0.0, %v1499
  %1501 = vdwg.mxu0
  %1502 = vmatprep.subr.bf16.mxu0 %v1352
  %1503 = vmatpush1.bf16.msra.mxu0 %v1351
  %1504 = vmatprep.subr.bf16.mxu0 %v1346
  %1505 = vmatpush1.bf16.msra.mxu0 %v1345
  %1506 = vmatprep.subr.bf16.mxu0 %v1340
  %1507 = vmatpush1.bf16.msra.mxu0 %v1339
  %1508 = vmatprep.subr.bf16.mxu0 %v1334
  %1509 = vmatpush1.bf16.msra.mxu0 %v1333
  %1510 = vmatprep.subr.bf16.mxu0 %v1328
  %1511 = vmatpush1.bf16.msra.mxu0 %v1327
  %1512 = vmatprep.subr.bf16.mxu0 %v1322
  %1513 = vmatpush1.bf16.msra.mxu0 %v1321
  %1514 = vmatprep.subr.bf16.mxu0 %v1316
  %1515 = vmatpush1.bf16.msra.mxu0 %v1315
  %1516 = vmatprep.subr.bf16.mxu0 %v1310
  %1517 = vmatpush1.bf16.msra.mxu0 %v1309
  %1518 = vmatprep.subr.bf16.mxu0 0
  %1519 = vmatpush2.bf16.msra.mxu0 0
  %1520 = vmatprep.subr.bf16.mxu0 0
  %1521 = vmatpush2.bf16.msra.mxu0 0
  %1522 = vmatprep.subr.bf16.mxu0 0
  %1523 = vmatpush2.bf16.msra.mxu0 0
  %1524 = vmatprep.subr.bf16.mxu0 0
  %1525 = vmatpush2.bf16.msra.mxu0 0
  %1526 = vmatprep.subr.bf16.mxu0 0
  %1527 = vmatpush2.bf16.msra.mxu0 0
  %1528 = vmatprep.subr.bf16.mxu0 0
  %1529 = vmatpush2.bf16.msra.mxu0 0
  %1530 = vmatprep.subr.bf16.mxu0 0
  %1531 = vmatpush2.bf16.msra.mxu0 0
  %1532 = vmatprep.subr.bf16.mxu0 %v1358
  %1533 = vmatpush2.bf16.msra.mxu0 %v1357
  %1534 = vmatprep.mubr.bf16.mxu0 %v1414
  %1535 = vmatmul.mubr.bf16.gmra.mxu0 %v1176
  %v1536 = vpop.f32.mrf.mxu0
  %v1537 = vadd.f32 0.0, %v1536
  %v1538 = vpop.f32.mrf.mxu0
  %v1539 = vadd.f32 0.0, %v1538
  %v1540 = vpop.f32.mrf.mxu0
  %v1541 = vadd.f32 0.0, %v1540
  %v1542 = vpop.f32.mrf.mxu0
  %v1543 = vadd.f32 0.0, %v1542
  %1544 = vdwg.mxu0
  %v1545 = vld [vmem:[%s5] sm:$0xff]
  %v1546 = vld [vmem:[%s5 + $0x8] sm:$0xff]
  %1548 = vset.pattern.permute.xlu0 0
  %1549 = vperm.xlu0 %1548, %v1545
  %v1550 = vpop.permute.xlu0 %1549
  %1553 = vset.pattern.permute.xlu0 0
  %1554 = vperm.xlu0 %1553, %v1546
  %v1555 = vpop.permute.xlu0 %1554
  %v1557 = vmul.f32 %v1451, %v1550
  %v1558 = vmul.f32 %v1453, %v1550
  %v1559 = vmul.f32 %v1494, %v1550
  %v1560 = vmul.f32 %v1496, %v1550
  %v1561 = vmul.f32 %v1537, %v1550
  %v1562 = vmul.f32 %v1539, %v1550
  %v1563 = vmul.f32 %v1455, %v1555
  %v1564 = vmul.f32 %v1457, %v1555
  %v1565 = vmul.f32 %v1498, %v1555
  %v1566 = vmul.f32 %v1500, %v1555
  %v1567 = vmul.f32 %v1541, %v1555
  %v1568 = vmul.f32 %v1543, %v1555
  %v1569 = vld [vmem:[%s6] sm:$0xff]
  %v1570 = vld [vmem:[%s6 + $0x8] sm:$0xff]
  %1572 = vset.pattern.permute.xlu0 0
  %1573 = vperm.xlu0 %1572, %v1569
  %v1574 = vpop.permute.xlu0 %1573
  %1577 = vset.pattern.permute.xlu0 0
  %1578 = vperm.xlu0 %1577, %v1570
  %v1579 = vpop.permute.xlu0 %1578
  %v1581 = vadd.f32 %v1557, %v1574
  %v1582 = vadd.f32 %v1558, %v1574
  %v1583 = vadd.f32 %v1559, %v1574
  %v1584 = vadd.f32 %v1560, %v1574
  %v1585 = vadd.f32 %v1561, %v1574
  %v1586 = vadd.f32 %v1562, %v1574
  %v1587 = vadd.f32 %v1563, %v1579
  %v1588 = vadd.f32 %v1564, %v1579
  %v1589 = vadd.f32 %v1565, %v1579
  %v1590 = vadd.f32 %v1566, %v1579
  %v1591 = vadd.f32 %v1567, %v1579
  %v1592 = vadd.f32 %v1568, %v1579
  %v1593 = vmax.f32 %v1581, 0.0
  %v1594 = vmax.f32 %v1582, 0.0
  %v1595 = vmax.f32 %v1583, 0.0
  %v1596 = vmax.f32 %v1584, 0.0
  %v1597 = vmax.f32 %v1585, 0.0
  %v1598 = vmax.f32 %v1586, 0.0
  %v1599 = vmax.f32 %v1587, 0.0
  %v1600 = vmax.f32 %v1588, 0.0
  %v1601 = vmax.f32 %v1589, 0.0
  %v1602 = vmax.f32 %v1590, 0.0
  %v1603 = vmax.f32 %v1591, 0.0
  %v1604 = vmax.f32 %v1592, 0.0
  %v1605 = vmul.f32 %v1593, %v826
  %v1606 = vmul.f32 %v1594, %v830
  %v1607 = vmul.f32 %v1595, %v834
  %v1608 = vmul.f32 %v1596, %v838
  %v1609 = vmul.f32 %v1597, %v842
  %v1610 = vmul.f32 %v1598, %v846
  %v1611 = vmul.f32 %v1599, %v826
  %v1612 = vmul.f32 %v1600, %v830
  %v1613 = vmul.f32 %v1601, %v834
  %v1614 = vmul.f32 %v1602, %v838
  %v1615 = vmul.f32 %v1603, %v842
  %v1616 = vmul.f32 %v1604, %v846
  %v1617 = vpack.c.bf16 %v1611, %v1605
  %v1618 = vpack.c.bf16 %v1612, %v1606
  %v1619 = vpack.c.bf16 %v1613, %v1607
  %v1620 = vpack.c.bf16 %v1614, %v1608
  %v1621 = vpack.c.bf16 %v1615, %v1609
  %v1622 = vpack.c.bf16 %v1616, %v1610
  %v1629 = vunpack.c.l.b16 %v1617
  %v1630 = vunpack.c.l.b16 %v1618
  %v1631 = vunpack.c.l.b16 %v1619
  %v1632 = vunpack.c.l.b16 %v1620
  %v1633 = vunpack.c.l.b16 %v1621
  %v1634 = vunpack.c.l.b16 %v1622
  %v1635 = vunpack.c.h.b16 %v1617
  %v1636 = vunpack.c.h.b16 %v1618
  %v1637 = vunpack.c.h.b16 %v1619
  %v1638 = vunpack.c.h.b16 %v1620
  %v1639 = vunpack.c.h.b16 %v1621
  %v1640 = vunpack.c.h.b16 %v1622
  %v1641 = vpack.c.b16 %v1630, %v1629
  %v1642 = vpack.c.b16 %v1632, %v1631
  %v1643 = vpack.c.b16 %v1634, %v1633
  %v1644 = vpack.c.b16 %v1636, %v1635
  %v1645 = vpack.c.b16 %v1638, %v1637
  %v1646 = vpack.c.b16 %v1640, %v1639
  %1653 = vst [vmem:[#allocation3 + $0x4] sm:$0xff] %v1641
  %1654 = vst [vmem:[#allocation3 + $0xc] sm:$0xff] %v1642
  %1655 = vst [vmem:[#allocation3 + $0x14] sm:$0xff] %v1643
  %1656 = vst [vmem:[#allocation3 + $0x24] sm:$0xff] %v1644
  %1657 = vst [vmem:[#allocation3 + $0x2c] sm:$0xff] %v1645
  %1658 = vst [vmem:[#allocation3 + $0x34] sm:$0xff] %v1646
  %v1659 = vld [vmem:[#allocation3] sm:$0xff]
  %v1660 = vld [vmem:[#allocation3 + $0x8] sm:$0xff]
  %v1661 = vld [vmem:[#allocation3 + $0x10] sm:$0xff]
  %v1662 = vld [vmem:[#allocation3 + $0x18] sm:$0xf]
  %v1663 = vld [vmem:[#allocation3 + $0x20] sm:$0xff]
  %v1664 = vld [vmem:[#allocation3 + $0x28] sm:$0xff]
  %v1665 = vld [vmem:[#allocation3 + $0x30] sm:$0xff]
  %v1666 = vld [vmem:[#allocation3 + $0x38] sm:$0xf]
  %v1667 = vld [vmem:[#allocation3 + $0x4] sm:$0xff]
  %v1668 = vld [vmem:[#allocation3 + $0xc] sm:$0xff]
  %v1669 = vld [vmem:[#allocation3 + $0x14] sm:$0xff]
  %v1670 = vld [vmem:[#allocation3 + $0x24] sm:$0xff]
  %v1671 = vld [vmem:[#allocation3 + $0x2c] sm:$0xff]
  %v1672 = vld [vmem:[#allocation3 + $0x34] sm:$0xff]
  %v1673 = vld [vmem:[#allocation3 + $0x4] sm:$0xff]
  %v1674 = vld [vmem:[#allocation3 + $0xc] sm:$0xff]
  %v1675 = vld [vmem:[#allocation3 + $0x14] sm:$0xff]
  %v1676 = vld [vmem:[#allocation3 + $0x1c] sm:$0xf]
  %v1677 = vld [vmem:[#allocation3 + $0x24] sm:$0xff]
  %v1678 = vld [vmem:[#allocation3 + $0x2c] sm:$0xff]
  %v1679 = vld [vmem:[#allocation3 + $0x34] sm:$0xff]
  %v1680 = vld [vmem:[#allocation3 + $0x3c] sm:$0xf]
  %v1689 = vunpack.c.l.b16 %v1659
  %v1690 = vunpack.c.h.b16 %v1659
  %v1691 = vunpack.c.l.b16 %v1660
  %v1692 = vunpack.c.h.b16 %v1660
  %v1693 = vunpack.c.l.b16 %v1661
  %v1694 = vunpack.c.h.b16 %v1661
  %v1695 = vunpack.c.l.b16 %v1662
  %v1696 = vunpack.c.l.b16 %v1663
  %v1697 = vunpack.c.h.b16 %v1663
  %v1698 = vunpack.c.l.b16 %v1664
  %v1699 = vunpack.c.h.b16 %v1664
  %v1700 = vunpack.c.l.b16 %v1665
  %v1701 = vunpack.c.h.b16 %v1665
  %v1702 = vunpack.c.l.b16 %v1666
  %v1703 = vpack.c.b16 %v1696, %v1689
  %v1704 = vpack.c.b16 %v1697, %v1690
  %v1705 = vpack.c.b16 %v1698, %v1691
  %v1706 = vpack.c.b16 %v1699, %v1692
  %v1707 = vpack.c.b16 %v1700, %v1693
  %v1708 = vpack.c.b16 %v1701, %v1694
  %v1709 = vpack.c.b16 %v1702, %v1695
  %1710 = vrot.lane.b32.xlu0 %v1703, 127
  %v1711 = vpop.permute.xlu0 %1710
  %1712 = vrot.lane.b32.xlu0 %v1704, 127
  %v1713 = vpop.permute.xlu0 %1712
  %1714 = vrot.lane.b32.xlu0 %v1705, 127
  %v1715 = vpop.permute.xlu0 %1714
  %1716 = vrot.lane.b32.xlu0 %v1706, 127
  %v1717 = vpop.permute.xlu0 %1716
  %1718 = vrot.lane.b32.xlu0 %v1707, 127
  %v1719 = vpop.permute.xlu0 %1718
  %1720 = vrot.lane.b32.xlu0 %v1708, 127
  %v1721 = vpop.permute.xlu0 %1720
  %1722 = vrot.lane.b32.xlu0 %v1709, 127
  %v1723 = vpop.permute.xlu0 %1722
  %v1724 = vsel %vm179, %v1711, %v1713
  %v1725 = vsel %vm179, %v1713, %v1715
  %v1726 = vsel %vm179, %v1715, %v1717
  %v1727 = vsel %vm179, %v1717, %v1719
  %v1728 = vsel %vm179, %v1719, %v1721
  %v1729 = vsel %vm179, %v1721, %v1723
  %1730 = vrot.lane.b32.xlu0 %v1703, 126
  %v1731 = vpop.permute.xlu0 %1730
  %1732 = vrot.lane.b32.xlu0 %v1704, 126
  %v1733 = vpop.permute.xlu0 %1732
  %1734 = vrot.lane.b32.xlu0 %v1705, 126
  %v1735 = vpop.permute.xlu0 %1734
  %1736 = vrot.lane.b32.xlu0 %v1706, 126
  %v1737 = vpop.permute.xlu0 %1736
  %1738 = vrot.lane.b32.xlu0 %v1707, 126
  %v1739 = vpop.permute.xlu0 %1738
  %1740 = vrot.lane.b32.xlu0 %v1708, 126
  %v1741 = vpop.permute.xlu0 %1740
  %1742 = vrot.lane.b32.xlu0 %v1709, 126
  %v1743 = vpop.permute.xlu0 %1742
  %v1744 = vsel %vm200, %v1731, %v1733
  %v1745 = vsel %vm200, %v1733, %v1735
  %v1746 = vsel %vm200, %v1735, %v1737
  %v1747 = vsel %vm200, %v1737, %v1739
  %v1748 = vsel %vm200, %v1739, %v1741
  %v1749 = vsel %vm200, %v1741, %v1743
  %1750 = vrot.lane.b32.xlu0 %v1703, 110
  %v1751 = vpop.permute.xlu0 %1750
  %1752 = vrot.lane.b32.xlu0 %v1704, 110
  %v1753 = vpop.permute.xlu0 %1752
  %1754 = vrot.lane.b32.xlu0 %v1705, 110
  %v1755 = vpop.permute.xlu0 %1754
  %1756 = vrot.lane.b32.xlu0 %v1706, 110
  %v1757 = vpop.permute.xlu0 %1756
  %1758 = vrot.lane.b32.xlu0 %v1707, 110
  %v1759 = vpop.permute.xlu0 %1758
  %1760 = vrot.lane.b32.xlu0 %v1708, 110
  %v1761 = vpop.permute.xlu0 %1760
  %1762 = vrot.lane.b32.xlu0 %v1709, 110
  %v1763 = vpop.permute.xlu0 %1762
  %v1764 = vsel %vm221, %v1751, %v1753
  %v1765 = vsel %vm221, %v1753, %v1755
  %v1766 = vsel %vm221, %v1755, %v1757
  %v1767 = vsel %vm221, %v1757, %v1759
  %v1768 = vsel %vm221, %v1759, %v1761
  %v1769 = vsel %vm221, %v1761, %v1763
  %v1776 = vunpack.c.l.b16 %v1667
  %v1777 = vunpack.c.h.b16 %v1667
  %v1778 = vunpack.c.l.b16 %v1668
  %v1779 = vunpack.c.h.b16 %v1668
  %v1780 = vunpack.c.l.b16 %v1669
  %v1781 = vunpack.c.h.b16 %v1669
  %v1782 = vunpack.c.l.b16 %v1670
  %v1783 = vunpack.c.h.b16 %v1670
  %v1784 = vunpack.c.l.b16 %v1671
  %v1785 = vunpack.c.h.b16 %v1671
  %v1786 = vunpack.c.l.b16 %v1672
  %v1787 = vunpack.c.h.b16 %v1672
  %v1788 = vpack.c.b16 %v1782, %v1776
  %v1789 = vpack.c.b16 %v1783, %v1777
  %v1790 = vpack.c.b16 %v1784, %v1778
  %v1791 = vpack.c.b16 %v1785, %v1779
  %v1792 = vpack.c.b16 %v1786, %v1780
  %v1793 = vpack.c.b16 %v1787, %v1781
  %1794 = vrot.lane.b32.xlu0 %v1788, 109
  %v1795 = vpop.permute.xlu0 %1794
  %1796 = vrot.lane.b32.xlu0 %v1789, 109
  %v1797 = vpop.permute.xlu0 %1796
  %1798 = vrot.lane.b32.xlu0 %v1790, 109
  %v1799 = vpop.permute.xlu0 %1798
  %1800 = vrot.lane.b32.xlu0 %v1791, 109
  %v1801 = vpop.permute.xlu0 %1800
  %1802 = vrot.lane.b32.xlu0 %v1792, 109
  %v1803 = vpop.permute.xlu0 %1802
  %1804 = vrot.lane.b32.xlu0 %v1793, 109
  %v1805 = vpop.permute.xlu0 %1804
  %v1806 = vsel %vm264, %v1795, %v1797
  %v1807 = vsel %vm264, %v1797, %v1799
  %v1808 = vsel %vm264, %v1799, %v1801
  %v1809 = vsel %vm264, %v1801, %v1803
  %v1810 = vsel %vm264, %v1803, %v1805
  %v1819 = vunpack.c.l.b16 %v1673
  %v1820 = vunpack.c.h.b16 %v1673
  %v1821 = vunpack.c.l.b16 %v1674
  %v1822 = vunpack.c.h.b16 %v1674
  %v1823 = vunpack.c.l.b16 %v1675
  %v1824 = vunpack.c.h.b16 %v1675
  %v1825 = vunpack.c.l.b16 %v1676
  %v1826 = vunpack.c.l.b16 %v1677
  %v1827 = vunpack.c.h.b16 %v1677
  %v1828 = vunpack.c.l.b16 %v1678
  %v1829 = vunpack.c.h.b16 %v1678
  %v1830 = vunpack.c.l.b16 %v1679
  %v1831 = vunpack.c.h.b16 %v1679
  %v1832 = vunpack.c.l.b16 %v1680
  %v1833 = vpack.c.b16 %v1826, %v1819
  %v1834 = vpack.c.b16 %v1827, %v1820
  %v1835 = vpack.c.b16 %v1828, %v1821
  %v1836 = vpack.c.b16 %v1829, %v1822
  %v1837 = vpack.c.b16 %v1830, %v1823
  %v1838 = vpack.c.b16 %v1831, %v1824
  %v1839 = vpack.c.b16 %v1832, %v1825
  %1840 = vrot.lane.b32.xlu0 %v1833, 108
  %v1841 = vpop.permute.xlu0 %1840
  %1842 = vrot.lane.b32.xlu0 %v1834, 108
  %v1843 = vpop.permute.xlu0 %1842
  %1844 = vrot.lane.b32.xlu0 %v1835, 108
  %v1845 = vpop.permute.xlu0 %1844
  %1846 = vrot.lane.b32.xlu0 %v1836, 108
  %v1847 = vpop.permute.xlu0 %1846
  %1848 = vrot.lane.b32.xlu0 %v1837, 108
  %v1849 = vpop.permute.xlu0 %1848
  %1850 = vrot.lane.b32.xlu0 %v1838, 108
  %v1851 = vpop.permute.xlu0 %1850
  %1852 = vrot.lane.b32.xlu0 %v1839, 108
  %v1853 = vpop.permute.xlu0 %1852
  %v1854 = vsel %vm313, %v1841, %v1843
  %v1855 = vsel %vm313, %v1843, %v1845
  %v1856 = vsel %vm313, %v1845, %v1847
  %v1857 = vsel %vm313, %v1847, %v1849
  %v1858 = vsel %vm313, %v1849, %v1851
  %v1859 = vsel %vm313, %v1851, %v1853
  %1860 = vrot.lane.b32.xlu0 %v1833, 92
  %v1861 = vpop.permute.xlu0 %1860
  %1862 = vrot.lane.b32.xlu0 %v1834, 92
  %v1863 = vpop.permute.xlu0 %1862
  %1864 = vrot.lane.b32.xlu0 %v1835, 92
  %v1865 = vpop.permute.xlu0 %1864
  %1866 = vrot.lane.b32.xlu0 %v1836, 92
  %v1867 = vpop.permute.xlu0 %1866
  %1868 = vrot.lane.b32.xlu0 %v1837, 92
  %v1869 = vpop.permute.xlu0 %1868
  %1870 = vrot.lane.b32.xlu0 %v1838, 92
  %v1871 = vpop.permute.xlu0 %1870
  %1872 = vrot.lane.b32.xlu0 %v1839, 92
  %v1873 = vpop.permute.xlu0 %1872
  %v1874 = vsel %vm334, %v1861, %v1863
  %v1875 = vsel %vm334, %v1863, %v1865
  %v1876 = vsel %vm334, %v1865, %v1867
  %v1877 = vsel %vm334, %v1867, %v1869
  %v1878 = vsel %vm334, %v1869, %v1871
  %v1879 = vsel %vm334, %v1871, %v1873
  %1880 = vrot.lane.b32.xlu0 %v1833, 91
  %v1881 = vpop.permute.xlu0 %1880
  %1882 = vrot.lane.b32.xlu0 %v1834, 91
  %v1883 = vpop.permute.xlu0 %1882
  %1884 = vrot.lane.b32.xlu0 %v1835, 91
  %v1885 = vpop.permute.xlu0 %1884
  %1886 = vrot.lane.b32.xlu0 %v1836, 91
  %v1887 = vpop.permute.xlu0 %1886
  %1888 = vrot.lane.b32.xlu0 %v1837, 91
  %v1889 = vpop.permute.xlu0 %1888
  %1890 = vrot.lane.b32.xlu0 %v1838, 91
  %v1891 = vpop.permute.xlu0 %1890
  %1892 = vrot.lane.b32.xlu0 %v1839, 91
  %v1893 = vpop.permute.xlu0 %1892
  %v1894 = vsel %vm355, %v1881, %v1883
  %v1895 = vsel %vm355, %v1883, %v1885
  %v1896 = vsel %vm355, %v1885, %v1887
  %v1897 = vsel %vm355, %v1887, %v1889
  %v1898 = vsel %vm355, %v1889, %v1891
  %v1899 = vsel %vm355, %v1891, %v1893
  %1900 = vrot.lane.b32.xlu0 %v1833, 90
  %v1901 = vpop.permute.xlu0 %1900
  %1902 = vrot.lane.b32.xlu0 %v1834, 90
  %v1903 = vpop.permute.xlu0 %1902
  %1904 = vrot.lane.b32.xlu0 %v1835, 90
  %v1905 = vpop.permute.xlu0 %1904
  %1906 = vrot.lane.b32.xlu0 %v1836, 90
  %v1907 = vpop.permute.xlu0 %1906
  %1908 = vrot.lane.b32.xlu0 %v1837, 90
  %v1909 = vpop.permute.xlu0 %1908
  %1910 = vrot.lane.b32.xlu0 %v1838, 90
  %v1911 = vpop.permute.xlu0 %1910
  %1912 = vrot.lane.b32.xlu0 %v1839, 90
  %v1913 = vpop.permute.xlu0 %1912
  %v1914 = vsel %vm376, %v1901, %v1903
  %v1915 = vsel %vm376, %v1903, %v1905
  %v1916 = vsel %vm376, %v1905, %v1907
  %v1917 = vsel %vm376, %v1907, %v1909
  %v1918 = vsel %vm376, %v1909, %v1911
  %v1919 = vsel %vm376, %v1911, %v1913
  %v1920 = vld [vmem:[%s7] sm:$0xff]
  %v1921 = vld [vmem:[%s7 + $0x8] sm:$0xff]
  %v1924 = vunpack.c.l.b16 %v1920
  %v1925 = vunpack.c.h.b16 %v1920
  %v1926 = vunpack.c.l.b16 %v1921
  %v1927 = vunpack.c.h.b16 %v1921
  %v1928 = vpack.c.b16 %v1926, %v1924
  %v1929 = vpack.c.b16 %v1927, %v1925
  %1931 = vrot.lane.b32.xlu0 %v1703, 19
  %v1932 = vpop.permute.xlu0 %1931
  %1933 = vrot.lane.b32.xlu0 %v1704, 19
  %v1934 = vpop.permute.xlu0 %1933
  %1935 = vrot.lane.b32.xlu0 %v1705, 19
  %v1936 = vpop.permute.xlu0 %1935
  %1937 = vrot.lane.b32.xlu0 %v1706, 19
  %v1938 = vpop.permute.xlu0 %1937
  %1939 = vrot.lane.b32.xlu0 %v1707, 19
  %v1940 = vpop.permute.xlu0 %1939
  %1941 = vrot.lane.b32.xlu0 %v1708, 19
  %v1942 = vpop.permute.xlu0 %1941
  %1943 = vrot.lane.b32.xlu0 %v1709, 19
  %v1944 = vpop.permute.xlu0 %1943
  %1945 = vrot.lane.b32.xlu0 %v1724, 19
  %v1946 = vpop.permute.xlu0 %1945
  %1947 = vrot.lane.b32.xlu0 %v1725, 19
  %v1948 = vpop.permute.xlu0 %1947
  %1949 = vrot.lane.b32.xlu0 %v1726, 19
  %v1950 = vpop.permute.xlu0 %1949
  %1951 = vrot.lane.b32.xlu0 %v1727, 19
  %v1952 = vpop.permute.xlu0 %1951
  %1953 = vrot.lane.b32.xlu0 %v1728, 19
  %v1954 = vpop.permute.xlu0 %1953
  %1955 = vrot.lane.b32.xlu0 %v1729, 19
  %v1956 = vpop.permute.xlu0 %1955
  %1957 = vrot.lane.b32.xlu0 %v1723, 19
  %v1958 = vpop.permute.xlu0 %1957
  %1959 = vrot.lane.b32.xlu0 %v1744, 19
  %v1960 = vpop.permute.xlu0 %1959
  %1961 = vrot.lane.b32.xlu0 %v1745, 19
  %v1962 = vpop.permute.xlu0 %1961
  %1963 = vrot.lane.b32.xlu0 %v1746, 19
  %v1964 = vpop.permute.xlu0 %1963
  %1965 = vrot.lane.b32.xlu0 %v1747, 19
  %v1966 = vpop.permute.xlu0 %1965
  %1967 = vrot.lane.b32.xlu0 %v1748, 19
  %v1968 = vpop.permute.xlu0 %1967
  %1969 = vrot.lane.b32.xlu0 %v1749, 19
  %v1970 = vpop.permute.xlu0 %1969
  %1971 = vrot.lane.b32.xlu0 %v1743, 19
  %v1972 = vpop.permute.xlu0 %1971
  %1973 = vrot.lane.b32.xlu0 %v1764, 19
  %v1974 = vpop.permute.xlu0 %1973
  %1975 = vrot.lane.b32.xlu0 %v1765, 19
  %v1976 = vpop.permute.xlu0 %1975
  %1977 = vrot.lane.b32.xlu0 %v1766, 19
  %v1978 = vpop.permute.xlu0 %1977
  %1979 = vrot.lane.b32.xlu0 %v1767, 19
  %v1980 = vpop.permute.xlu0 %1979
  %1981 = vrot.lane.b32.xlu0 %v1768, 19
  %v1982 = vpop.permute.xlu0 %1981
  %1983 = vrot.lane.b32.xlu0 %v1769, 19
  %v1984 = vpop.permute.xlu0 %1983
  %1985 = vrot.lane.b32.xlu0 %v1763, 19
  %v1986 = vpop.permute.xlu0 %1985
  %1987 = vrot.lane.b32.xlu0 %v1795, 19
  %v1988 = vpop.permute.xlu0 %1987
  %1989 = vrot.lane.b32.xlu0 %v1806, 19
  %v1990 = vpop.permute.xlu0 %1989
  %1991 = vrot.lane.b32.xlu0 %v1807, 19
  %v1992 = vpop.permute.xlu0 %1991
  %1993 = vrot.lane.b32.xlu0 %v1808, 19
  %v1994 = vpop.permute.xlu0 %1993
  %1995 = vrot.lane.b32.xlu0 %v1809, 19
  %v1996 = vpop.permute.xlu0 %1995
  %1997 = vrot.lane.b32.xlu0 %v1810, 19
  %v1998 = vpop.permute.xlu0 %1997
  %1999 = vrot.lane.b32.xlu0 %v1805, 19
  %v2000 = vpop.permute.xlu0 %1999
  %2001 = vrot.lane.b32.xlu0 %v1841, 19
  %v2002 = vpop.permute.xlu0 %2001
  %2003 = vrot.lane.b32.xlu0 %v1854, 19
  %v2004 = vpop.permute.xlu0 %2003
  %2005 = vrot.lane.b32.xlu0 %v1855, 19
  %v2006 = vpop.permute.xlu0 %2005
  %2007 = vrot.lane.b32.xlu0 %v1856, 19
  %v2008 = vpop.permute.xlu0 %2007
  %2009 = vrot.lane.b32.xlu0 %v1857, 19
  %v2010 = vpop.permute.xlu0 %2009
  %2011 = vrot.lane.b32.xlu0 %v1858, 19
  %v2012 = vpop.permute.xlu0 %2011
  %2013 = vrot.lane.b32.xlu0 %v1859, 19
  %v2014 = vpop.permute.xlu0 %2013
  %2015 = vrot.lane.b32.xlu0 %v1861, 19
  %v2016 = vpop.permute.xlu0 %2015
  %2017 = vrot.lane.b32.xlu0 %v1874, 19
  %v2018 = vpop.permute.xlu0 %2017
  %2019 = vrot.lane.b32.xlu0 %v1875, 19
  %v2020 = vpop.permute.xlu0 %2019
  %2021 = vrot.lane.b32.xlu0 %v1876, 19
  %v2022 = vpop.permute.xlu0 %2021
  %2023 = vrot.lane.b32.xlu0 %v1877, 19
  %v2024 = vpop.permute.xlu0 %2023
  %2025 = vrot.lane.b32.xlu0 %v1878, 19
  %v2026 = vpop.permute.xlu0 %2025
  %2027 = vrot.lane.b32.xlu0 %v1879, 19
  %v2028 = vpop.permute.xlu0 %2027
  %2029 = vrot.lane.b32.xlu0 %v1881, 19
  %v2030 = vpop.permute.xlu0 %2029
  %2031 = vrot.lane.b32.xlu0 %v1894, 19
  %v2032 = vpop.permute.xlu0 %2031
  %2033 = vrot.lane.b32.xlu0 %v1895, 19
  %v2034 = vpop.permute.xlu0 %2033
  %2035 = vrot.lane.b32.xlu0 %v1896, 19
  %v2036 = vpop.permute.xlu0 %2035
  %2037 = vrot.lane.b32.xlu0 %v1897, 19
  %v2038 = vpop.permute.xlu0 %2037
  %2039 = vrot.lane.b32.xlu0 %v1898, 19
  %v2040 = vpop.permute.xlu0 %2039
  %2041 = vrot.lane.b32.xlu0 %v1899, 19
  %v2042 = vpop.permute.xlu0 %2041
  %2043 = vrot.lane.b32.xlu0 %v1901, 19
  %v2044 = vpop.permute.xlu0 %2043
  %2045 = vrot.lane.b32.xlu0 %v1914, 19
  %v2046 = vpop.permute.xlu0 %2045
  %2047 = vrot.lane.b32.xlu0 %v1915, 19
  %v2048 = vpop.permute.xlu0 %2047
  %2049 = vrot.lane.b32.xlu0 %v1916, 19
  %v2050 = vpop.permute.xlu0 %2049
  %2051 = vrot.lane.b32.xlu0 %v1917, 19
  %v2052 = vpop.permute.xlu0 %2051
  %2053 = vrot.lane.b32.xlu0 %v1918, 19
  %v2054 = vpop.permute.xlu0 %2053
  %2055 = vrot.lane.b32.xlu0 %v1919, 19
  %v2056 = vpop.permute.xlu0 %2055
  %v2057 = vsel %vm520, %v1932, %v1934
  %v2058 = vsel %vm520, %v1934, %v1936
  %v2059 = vsel %vm520, %v1936, %v1938
  %v2060 = vsel %vm520, %v1938, %v1940
  %v2061 = vsel %vm520, %v1940, %v1942
  %v2062 = vsel %vm520, %v1942, %v1944
  %v2063 = vsel %vm520, %v1946, %v1948
  %v2064 = vsel %vm520, %v1948, %v1950
  %v2065 = vsel %vm520, %v1950, %v1952
  %v2066 = vsel %vm520, %v1952, %v1954
  %v2067 = vsel %vm520, %v1954, %v1956
  %v2068 = vsel %vm520, %v1956, %v1958
  %v2069 = vsel %vm520, %v1960, %v1962
  %v2070 = vsel %vm520, %v1962, %v1964
  %v2071 = vsel %vm520, %v1964, %v1966
  %v2072 = vsel %vm520, %v1966, %v1968
  %v2073 = vsel %vm520, %v1968, %v1970
  %v2074 = vsel %vm520, %v1970, %v1972
  %v2075 = vsel %vm520, %v1974, %v1976
  %v2076 = vsel %vm520, %v1976, %v1978
  %v2077 = vsel %vm520, %v1978, %v1980
  %v2078 = vsel %vm520, %v1980, %v1982
  %v2079 = vsel %vm520, %v1982, %v1984
  %v2080 = vsel %vm520, %v1984, %v1986
  %v2081 = vsel %vm520, %v1988, %v1990
  %v2082 = vsel %vm520, %v1990, %v1992
  %v2083 = vsel %vm520, %v1992, %v1994
  %v2084 = vsel %vm520, %v1994, %v1996
  %v2085 = vsel %vm520, %v1996, %v1998
  %v2086 = vsel %vm520, %v1998, %v2000
  %v2087 = vsel %vm520, %v2002, %v2004
  %v2088 = vsel %vm520, %v2004, %v2006
  %v2089 = vsel %vm520, %v2006, %v2008
  %v2090 = vsel %vm520, %v2008, %v2010
  %v2091 = vsel %vm520, %v2010, %v2012
  %v2092 = vsel %vm520, %v2012, %v2014
  %v2093 = vsel %vm520, %v2016, %v2018
  %v2094 = vsel %vm520, %v2018, %v2020
  %v2095 = vsel %vm520, %v2020, %v2022
  %v2096 = vsel %vm520, %v2022, %v2024
  %v2097 = vsel %vm520, %v2024, %v2026
  %v2098 = vsel %vm520, %v2026, %v2028
  %v2099 = vsel %vm520, %v2030, %v2032
  %v2100 = vsel %vm520, %v2032, %v2034
  %v2101 = vsel %vm520, %v2034, %v2036
  %v2102 = vsel %vm520, %v2036, %v2038
  %v2103 = vsel %vm520, %v2038, %v2040
  %v2104 = vsel %vm520, %v2040, %v2042
  %v2105 = vsel %vm520, %v2044, %v2046
  %v2106 = vsel %vm520, %v2046, %v2048
  %v2107 = vsel %vm520, %v2048, %v2050
  %v2108 = vsel %vm520, %v2050, %v2052
  %v2109 = vsel %vm520, %v2052, %v2054
  %v2110 = vsel %vm520, %v2054, %v2056
  %v2166 = vsel %vm629, %v1929, 0
  %2168 = vmatprep.subr.bf16.mxu0 %v2100
  %2169 = vmatpush1.bf16.msra.mxu0 %v2099
  %2170 = vmatprep.subr.bf16.mxu0 %v2094
  %2171 = vmatpush1.bf16.msra.mxu0 %v2093
  %2172 = vmatprep.subr.bf16.mxu0 %v2088
  %2173 = vmatpush1.bf16.msra.mxu0 %v2087
  %2174 = vmatprep.subr.bf16.mxu0 %v2082
  %2175 = vmatpush1.bf16.msra.mxu0 %v2081
  %2176 = vmatprep.subr.bf16.mxu0 %v2076
  %2177 = vmatpush1.bf16.msra.mxu0 %v2075
  %2178 = vmatprep.subr.bf16.mxu0 %v2070
  %2179 = vmatpush1.bf16.msra.mxu0 %v2069
  %2180 = vmatprep.subr.bf16.mxu0 %v2064
  %2181 = vmatpush1.bf16.msra.mxu0 %v2063
  %2182 = vmatprep.subr.bf16.mxu0 %v2058
  %2183 = vmatpush1.bf16.msra.mxu0 %v2057
  %2184 = vmatprep.subr.bf16.mxu0 0
  %2185 = vmatpush2.bf16.msra.mxu0 0
  %2186 = vmatprep.subr.bf16.mxu0 0
  %2187 = vmatpush2.bf16.msra.mxu0 0
  %2188 = vmatprep.subr.bf16.mxu0 0
  %2189 = vmatpush2.bf16.msra.mxu0 0
  %2190 = vmatprep.subr.bf16.mxu0 0
  %2191 = vmatpush2.bf16.msra.mxu0 0
  %2192 = vmatprep.subr.bf16.mxu0 0
  %2193 = vmatpush2.bf16.msra.mxu0 0
  %2194 = vmatprep.subr.bf16.mxu0 0
  %2195 = vmatpush2.bf16.msra.mxu0 0
  %2196 = vmatprep.subr.bf16.mxu0 0
  %2197 = vmatpush2.bf16.msra.mxu0 0
  %2198 = vmatprep.subr.bf16.mxu0 %v2106
  %2199 = vmatpush2.bf16.msra.mxu0 %v2105
  %2200 = vmatprep.mubr.bf16.mxu0 %v2166
  %2201 = vmatmul.mubr.bf16.gmra.mxu0 %v1928
  %v2202 = vpop.f32.mrf.mxu0
  %v2203 = vadd.f32 0.0, %v2202
  %v2204 = vpop.f32.mrf.mxu0
  %v2205 = vadd.f32 0.0, %v2204
  %v2206 = vpop.f32.mrf.mxu0
  %v2207 = vadd.f32 0.0, %v2206
  %v2208 = vpop.f32.mrf.mxu0
  %v2209 = vadd.f32 0.0, %v2208
  %2210 = vdwg.mxu0
  %2211 = vmatprep.subr.bf16.mxu0 %v2102
  %2212 = vmatpush1.bf16.msra.mxu0 %v2101
  %2213 = vmatprep.subr.bf16.mxu0 %v2096
  %2214 = vmatpush1.bf16.msra.mxu0 %v2095
  %2215 = vmatprep.subr.bf16.mxu0 %v2090
  %2216 = vmatpush1.bf16.msra.mxu0 %v2089
  %2217 = vmatprep.subr.bf16.mxu0 %v2084
  %2218 = vmatpush1.bf16.msra.mxu0 %v2083
  %2219 = vmatprep.subr.bf16.mxu0 %v2078
  %2220 = vmatpush1.bf16.msra.mxu0 %v2077
  %2221 = vmatprep.subr.bf16.mxu0 %v2072
  %2222 = vmatpush1.bf16.msra.mxu0 %v2071
  %2223 = vmatprep.subr.bf16.mxu0 %v2066
  %2224 = vmatpush1.bf16.msra.mxu0 %v2065
  %2225 = vmatprep.subr.bf16.mxu0 %v2060
  %2226 = vmatpush1.bf16.msra.mxu0 %v2059
  %2227 = vmatprep.subr.bf16.mxu0 0
  %2228 = vmatpush2.bf16.msra.mxu0 0
  %2229 = vmatprep.subr.bf16.mxu0 0
  %2230 = vmatpush2.bf16.msra.mxu0 0
  %2231 = vmatprep.subr.bf16.mxu0 0
  %2232 = vmatpush2.bf16.msra.mxu0 0
  %2233 = vmatprep.subr.bf16.mxu0 0
  %2234 = vmatpush2.bf16.msra.mxu0 0
  %2235 = vmatprep.subr.bf16.mxu0 0
  %2236 = vmatpush2.bf16.msra.mxu0 0
  %2237 = vmatprep.subr.bf16.mxu0 0
  %2238 = vmatpush2.bf16.msra.mxu0 0
  %2239 = vmatprep.subr.bf16.mxu0 0
  %2240 = vmatpush2.bf16.msra.mxu0 0
  %2241 = vmatprep.subr.bf16.mxu0 %v2108
  %2242 = vmatpush2.bf16.msra.mxu0 %v2107
  %2243 = vmatprep.mubr.bf16.mxu0 %v2166
  %2244 = vmatmul.mubr.bf16.gmra.mxu0 %v1928
  %v2245 = vpop.f32.mrf.mxu0
  %v2246 = vadd.f32 0.0, %v2245
  %v2247 = vpop.f32.mrf.mxu0
  %v2248 = vadd.f32 0.0, %v2247
  %v2249 = vpop.f32.mrf.mxu0
  %v2250 = vadd.f32 0.0, %v2249
  %v2251 = vpop.f32.mrf.mxu0
  %v2252 = vadd.f32 0.0, %v2251
  %2253 = vdwg.mxu0
  %2254 = vmatprep.subr.bf16.mxu0 %v2104
  %2255 = vmatpush1.bf16.msra.mxu0 %v2103
  %2256 = vmatprep.subr.bf16.mxu0 %v2098
  %2257 = vmatpush1.bf16.msra.mxu0 %v2097
  %2258 = vmatprep.subr.bf16.mxu0 %v2092
  %2259 = vmatpush1.bf16.msra.mxu0 %v2091
  %2260 = vmatprep.subr.bf16.mxu0 %v2086
  %2261 = vmatpush1.bf16.msra.mxu0 %v2085
  %2262 = vmatprep.subr.bf16.mxu0 %v2080
  %2263 = vmatpush1.bf16.msra.mxu0 %v2079
  %2264 = vmatprep.subr.bf16.mxu0 %v2074
  %2265 = vmatpush1.bf16.msra.mxu0 %v2073
  %2266 = vmatprep.subr.bf16.mxu0 %v2068
  %2267 = vmatpush1.bf16.msra.mxu0 %v2067
  %2268 = vmatprep.subr.bf16.mxu0 %v2062
  %2269 = vmatpush1.bf16.msra.mxu0 %v2061
  %2270 = vmatprep.subr.bf16.mxu0 0
  %2271 = vmatpush2.bf16.msra.mxu0 0
  %2272 = vmatprep.subr.bf16.mxu0 0
  %2273 = vmatpush2.bf16.msra.mxu0 0
  %2274 = vmatprep.subr.bf16.mxu0 0
  %2275 = vmatpush2.bf16.msra.mxu0 0
  %2276 = vmatprep.subr.bf16.mxu0 0
  %2277 = vmatpush2.bf16.msra.mxu0 0
  %2278 = vmatprep.subr.bf16.mxu0 0
  %2279 = vmatpush2.bf16.msra.mxu0 0
  %2280 = vmatprep.subr.bf16.mxu0 0
  %2281 = vmatpush2.bf16.msra.mxu0 0
  %2282 = vmatprep.subr.bf16.mxu0 0
  %2283 = vmatpush2.bf16.msra.mxu0 0
  %2284 = vmatprep.subr.bf16.mxu0 %v2110
  %2285 = vmatpush2.bf16.msra.mxu0 %v2109
  %2286 = vmatprep.mubr.bf16.mxu0 %v2166
  %2287 = vmatmul.mubr.bf16.gmra.mxu0 %v1928
  %v2288 = vpop.f32.mrf.mxu0
  %v2289 = vadd.f32 0.0, %v2288
  %v2290 = vpop.f32.mrf.mxu0
  %v2291 = vadd.f32 0.0, %v2290
  %v2292 = vpop.f32.mrf.mxu0
  %v2293 = vadd.f32 0.0, %v2292
  %v2294 = vpop.f32.mrf.mxu0
  %v2295 = vadd.f32 0.0, %v2294
  %2296 = vdwg.mxu0
  %v2297 = vld [vmem:[%s8] sm:$0xff]
  %v2298 = vld [vmem:[%s8 + $0x8] sm:$0xff]
  %2300 = vset.pattern.permute.xlu0 0
  %2301 = vperm.xlu0 %2300, %v2297
  %v2302 = vpop.permute.xlu0 %2301
  %2305 = vset.pattern.permute.xlu0 0
  %2306 = vperm.xlu0 %2305, %v2298
  %v2307 = vpop.permute.xlu0 %2306
  %v2309 = vmul.f32 %v2203, %v2302
  %v2310 = vmul.f32 %v2205, %v2302
  %v2311 = vmul.f32 %v2246, %v2302
  %v2312 = vmul.f32 %v2248, %v2302
  %v2313 = vmul.f32 %v2289, %v2302
  %v2314 = vmul.f32 %v2291, %v2302
  %v2315 = vmul.f32 %v2207, %v2307
  %v2316 = vmul.f32 %v2209, %v2307
  %v2317 = vmul.f32 %v2250, %v2307
  %v2318 = vmul.f32 %v2252, %v2307
  %v2319 = vmul.f32 %v2293, %v2307
  %v2320 = vmul.f32 %v2295, %v2307
  %v2321 = vld [vmem:[%s9] sm:$0xff]
  %v2322 = vld [vmem:[%s9 + $0x8] sm:$0xff]
  %2324 = vset.pattern.permute.xlu0 0
  %2325 = vperm.xlu0 %2324, %v2321
  %v2326 = vpop.permute.xlu0 %2325
  %2329 = vset.pattern.permute.xlu0 0
  %2330 = vperm.xlu0 %2329, %v2322
  %v2331 = vpop.permute.xlu0 %2330
  %v2333 = vadd.f32 %v2309, %v2326
  %v2334 = vadd.f32 %v2310, %v2326
  %v2335 = vadd.f32 %v2311, %v2326
  %v2336 = vadd.f32 %v2312, %v2326
  %v2337 = vadd.f32 %v2313, %v2326
  %v2338 = vadd.f32 %v2314, %v2326
  %v2339 = vadd.f32 %v2315, %v2331
  %v2340 = vadd.f32 %v2316, %v2331
  %v2341 = vadd.f32 %v2317, %v2331
  %v2342 = vadd.f32 %v2318, %v2331
  %v2343 = vadd.f32 %v2319, %v2331
  %v2344 = vadd.f32 %v2320, %v2331
  %v2345 = vld [vmem:[#allocation2 + $0x4] sm:$0xff]
  %v2346 = vld [vmem:[#allocation2 + $0xc] sm:$0xff]
  %v2347 = vld [vmem:[#allocation2 + $0x14] sm:$0xff]
  %v2348 = vld [vmem:[#allocation2 + $0x24] sm:$0xff]
  %v2349 = vld [vmem:[#allocation2 + $0x2c] sm:$0xff]
  %v2350 = vld [vmem:[#allocation2 + $0x34] sm:$0xff]
  %v2351 = vunpack.c.l.bf16 %v2345
  %v2352 = vunpack.c.h.bf16 %v2345
  %v2353 = vunpack.c.l.bf16 %v2346
  %v2354 = vunpack.c.h.bf16 %v2346
  %v2355 = vunpack.c.l.bf16 %v2347
  %v2356 = vunpack.c.h.bf16 %v2347
  %v2357 = vunpack.c.l.bf16 %v2348
  %v2358 = vunpack.c.h.bf16 %v2348
  %v2359 = vunpack.c.l.bf16 %v2349
  %v2360 = vunpack.c.h.bf16 %v2349
  %v2361 = vunpack.c.l.bf16 %v2350
  %v2362 = vunpack.c.h.bf16 %v2350
  %v2363 = vadd.f32 %v2333, %v2351
  %v2364 = vadd.f32 %v2334, %v2352
  %v2365 = vadd.f32 %v2335, %v2353
  %v2366 = vadd.f32 %v2336, %v2354
  %v2367 = vadd.f32 %v2337, %v2355
  %v2368 = vadd.f32 %v2338, %v2356
  %v2369 = vadd.f32 %v2339, %v2357
  %v2370 = vadd.f32 %v2340, %v2358
  %v2371 = vadd.f32 %v2341, %v2359
  %v2372 = vadd.f32 %v2342, %v2360
  %v2373 = vadd.f32 %v2343, %v2361
  %v2374 = vadd.f32 %v2344, %v2362
  %v2375 = vmax.f32 %v2363, 0.0
  %v2376 = vmax.f32 %v2364, 0.0
  %v2377 = vmax.f32 %v2365, 0.0
  %v2378 = vmax.f32 %v2366, 0.0
  %v2379 = vmax.f32 %v2367, 0.0
  %v2380 = vmax.f32 %v2368, 0.0
  %v2381 = vmax.f32 %v2369, 0.0
  %v2382 = vmax.f32 %v2370, 0.0
  %v2383 = vmax.f32 %v2371, 0.0
  %v2384 = vmax.f32 %v2372, 0.0
  %v2385 = vmax.f32 %v2373, 0.0
  %v2386 = vmax.f32 %v2374, 0.0
  %v2387 = vmul.f32 %v2375, %v826
  %v2388 = vmul.f32 %v2376, %v830
  %v2389 = vmul.f32 %v2377, %v834
  %v2390 = vmul.f32 %v2378, %v838
  %v2391 = vmul.f32 %v2379, %v842
  %v2392 = vmul.f32 %v2380, %v846
  %v2393 = vmul.f32 %v2381, %v826
  %v2394 = vmul.f32 %v2382, %v830
  %v2395 = vmul.f32 %v2383, %v834
  %v2396 = vmul.f32 %v2384, %v838
  %v2397 = vmul.f32 %v2385, %v842
  %v2398 = vmul.f32 %v2386, %v846
  %v2399 = vpack.c.bf16 %v2393, %v2387
  %v2400 = vpack.c.bf16 %v2394, %v2388
  %v2401 = vpack.c.bf16 %v2395, %v2389
  %v2402 = vpack.c.bf16 %v2396, %v2390
  %v2403 = vpack.c.bf16 %v2397, %v2391
  %v2404 = vpack.c.bf16 %v2398, %v2392
  %v2411 = vunpack.c.l.b16 %v2399
  %v2412 = vunpack.c.l.b16 %v2400
  %v2413 = vunpack.c.l.b16 %v2401
  %v2414 = vunpack.c.l.b16 %v2402
  %v2415 = vunpack.c.l.b16 %v2403
  %v2416 = vunpack.c.l.b16 %v2404
  %v2417 = vunpack.c.h.b16 %v2399
  %v2418 = vunpack.c.h.b16 %v2400
  %v2419 = vunpack.c.h.b16 %v2401
  %v2420 = vunpack.c.h.b16 %v2402
  %v2421 = vunpack.c.h.b16 %v2403
  %v2422 = vunpack.c.h.b16 %v2404
  %v2423 = vpack.c.b16 %v2412, %v2411
  %v2424 = vpack.c.b16 %v2414, %v2413
  %v2425 = vpack.c.b16 %v2416, %v2415
  %v2426 = vpack.c.b16 %v2418, %v2417
  %v2427 = vpack.c.b16 %v2420, %v2419
  %v2428 = vpack.c.b16 %v2422, %v2421
  %2435 = vst [vmem:[#allocation4 + $0x4] sm:$0xff] %v2423
  %2436 = vst [vmem:[#allocation4 + $0xc] sm:$0xff] %v2424
  %2437 = vst [vmem:[#allocation4 + $0x14] sm:$0xff] %v2425
  %2438 = vst [vmem:[#allocation4 + $0x24] sm:$0xff] %v2426
  %2439 = vst [vmem:[#allocation4 + $0x2c] sm:$0xff] %v2427
  %2440 = vst [vmem:[#allocation4 + $0x34] sm:$0xff] %v2428
  %v2441 = vld [vmem:[#allocation4] sm:$0xff]
  %v2442 = vld [vmem:[#allocation4 + $0x8] sm:$0xff]
  %v2443 = vld [vmem:[#allocation4 + $0x10] sm:$0xff]
  %v2444 = vld [vmem:[#allocation4 + $0x18] sm:$0xf]
  %v2445 = vld [vmem:[#allocation4 + $0x20] sm:$0xff]
  %v2446 = vld [vmem:[#allocation4 + $0x28] sm:$0xff]
  %v2447 = vld [vmem:[#allocation4 + $0x30] sm:$0xff]
  %v2448 = vld [vmem:[#allocation4 + $0x38] sm:$0xf]
  %v2449 = vld [vmem:[#allocation4 + $0x4] sm:$0xff]
  %v2450 = vld [vmem:[#allocation4 + $0xc] sm:$0xff]
  %v2451 = vld [vmem:[#allocation4 + $0x14] sm:$0xff]
  %v2452 = vld [vmem:[#allocation4 + $0x24] sm:$0xff]
  %v2453 = vld [vmem:[#allocation4 + $0x2c] sm:$0xff]
  %v2454 = vld [vmem:[#allocation4 + $0x34] sm:$0xff]
  %v2455 = vld [vmem:[#allocation4 + $0x4] sm:$0xff]
  %v2456 = vld [vmem:[#allocation4 + $0xc] sm:$0xff]
  %v2457 = vld [vmem:[#allocation4 + $0x14] sm:$0xff]
  %v2458 = vld [vmem:[#allocation4 + $0x1c] sm:$0xf]
  %v2459 = vld [vmem:[#allocation4 + $0x24] sm:$0xff]
  %v2460 = vld [vmem:[#allocation4 + $0x2c] sm:$0xff]
  %v2461 = vld [vmem:[#allocation4 + $0x34] sm:$0xff]
  %v2462 = vld [vmem:[#allocation4 + $0x3c] sm:$0xf]
  %v2471 = vunpack.c.l.b16 %v2441
  %v2472 = vunpack.c.h.b16 %v2441
  %v2473 = vunpack.c.l.b16 %v2442
  %v2474 = vunpack.c.h.b16 %v2442
  %v2475 = vunpack.c.l.b16 %v2443
  %v2476 = vunpack.c.h.b16 %v2443
  %v2477 = vunpack.c.l.b16 %v2444
  %v2478 = vunpack.c.l.b16 %v2445
  %v2479 = vunpack.c.h.b16 %v2445
  %v2480 = vunpack.c.l.b16 %v2446
  %v2481 = vunpack.c.h.b16 %v2446
  %v2482 = vunpack.c.l.b16 %v2447
  %v2483 = vunpack.c.h.b16 %v2447
  %v2484 = vunpack.c.l.b16 %v2448
  %v2485 = vpack.c.b16 %v2478, %v2471
  %v2486 = vpack.c.b16 %v2479, %v2472
  %v2487 = vpack.c.b16 %v2480, %v2473
  %v2488 = vpack.c.b16 %v2481, %v2474
  %v2489 = vpack.c.b16 %v2482, %v2475
  %v2490 = vpack.c.b16 %v2483, %v2476
  %v2491 = vpack.c.b16 %v2484, %v2477
  %2492 = vrot.lane.b32.xlu0 %v2485, 127
  %v2493 = vpop.permute.xlu0 %2492
  %2494 = vrot.lane.b32.xlu0 %v2486, 127
  %v2495 = vpop.permute.xlu0 %2494
  %2496 = vrot.lane.b32.xlu0 %v2487, 127
  %v2497 = vpop.permute.xlu0 %2496
  %2498 = vrot.lane.b32.xlu0 %v2488, 127
  %v2499 = vpop.permute.xlu0 %2498
  %2500 = vrot.lane.b32.xlu0 %v2489, 127
  %v2501 = vpop.permute.xlu0 %2500
  %2502 = vrot.lane.b32.xlu0 %v2490, 127
  %v2503 = vpop.permute.xlu0 %2502
  %2504 = vrot.lane.b32.xlu0 %v2491, 127
  %v2505 = vpop.permute.xlu0 %2504
  %v2506 = vsel %vm179, %v2493, %v2495
  %v2507 = vsel %vm179, %v2495, %v2497
  %v2508 = vsel %vm179, %v2497, %v2499
  %v2509 = vsel %vm179, %v2499, %v2501
  %v2510 = vsel %vm179, %v2501, %v2503
  %v2511 = vsel %vm179, %v2503, %v2505
  %2512 = vrot.lane.b32.xlu0 %v2485, 126
  %v2513 = vpop.permute.xlu0 %2512
  %2514 = vrot.lane.b32.xlu0 %v2486, 126
  %v2515 = vpop.permute.xlu0 %2514
  %2516 = vrot.lane.b32.xlu0 %v2487, 126
  %v2517 = vpop.permute.xlu0 %2516
  %2518 = vrot.lane.b32.xlu0 %v2488, 126
  %v2519 = vpop.permute.xlu0 %2518
  %2520 = vrot.lane.b32.xlu0 %v2489, 126
  %v2521 = vpop.permute.xlu0 %2520
  %2522 = vrot.lane.b32.xlu0 %v2490, 126
  %v2523 = vpop.permute.xlu0 %2522
  %2524 = vrot.lane.b32.xlu0 %v2491, 126
  %v2525 = vpop.permute.xlu0 %2524
  %v2526 = vsel %vm200, %v2513, %v2515
  %v2527 = vsel %vm200, %v2515, %v2517
  %v2528 = vsel %vm200, %v2517, %v2519
  %v2529 = vsel %vm200, %v2519, %v2521
  %v2530 = vsel %vm200, %v2521, %v2523
  %v2531 = vsel %vm200, %v2523, %v2525
  %2532 = vrot.lane.b32.xlu0 %v2485, 110
  %v2533 = vpop.permute.xlu0 %2532
  %2534 = vrot.lane.b32.xlu0 %v2486, 110
  %v2535 = vpop.permute.xlu0 %2534
  %2536 = vrot.lane.b32.xlu0 %v2487, 110
  %v2537 = vpop.permute.xlu0 %2536
  %2538 = vrot.lane.b32.xlu0 %v2488, 110
  %v2539 = vpop.permute.xlu0 %2538
  %2540 = vrot.lane.b32.xlu0 %v2489, 110
  %v2541 = vpop.permute.xlu0 %2540
  %2542 = vrot.lane.b32.xlu0 %v2490, 110
  %v2543 = vpop.permute.xlu0 %2542
  %2544 = vrot.lane.b32.xlu0 %v2491, 110
  %v2545 = vpop.permute.xlu0 %2544
  %v2546 = vsel %vm221, %v2533, %v2535
  %v2547 = vsel %vm221, %v2535, %v2537
  %v2548 = vsel %vm221, %v2537, %v2539
  %v2549 = vsel %vm221, %v2539, %v2541
  %v2550 = vsel %vm221, %v2541, %v2543
  %v2551 = vsel %vm221, %v2543, %v2545
  %v2558 = vunpack.c.l.b16 %v2449
  %v2559 = vunpack.c.h.b16 %v2449
  %v2560 = vunpack.c.l.b16 %v2450
  %v2561 = vunpack.c.h.b16 %v2450
  %v2562 = vunpack.c.l.b16 %v2451
  %v2563 = vunpack.c.h.b16 %v2451
  %v2564 = vunpack.c.l.b16 %v2452
  %v2565 = vunpack.c.h.b16 %v2452
  %v2566 = vunpack.c.l.b16 %v2453
  %v2567 = vunpack.c.h.b16 %v2453
  %v2568 = vunpack.c.l.b16 %v2454
  %v2569 = vunpack.c.h.b16 %v2454
  %v2570 = vpack.c.b16 %v2564, %v2558
  %v2571 = vpack.c.b16 %v2565, %v2559
  %v2572 = vpack.c.b16 %v2566, %v2560
  %v2573 = vpack.c.b16 %v2567, %v2561
  %v2574 = vpack.c.b16 %v2568, %v2562
  %v2575 = vpack.c.b16 %v2569, %v2563
  %2576 = vrot.lane.b32.xlu0 %v2570, 109
  %v2577 = vpop.permute.xlu0 %2576
  %2578 = vrot.lane.b32.xlu0 %v2571, 109
  %v2579 = vpop.permute.xlu0 %2578
  %2580 = vrot.lane.b32.xlu0 %v2572, 109
  %v2581 = vpop.permute.xlu0 %2580
  %2582 = vrot.lane.b32.xlu0 %v2573, 109
  %v2583 = vpop.permute.xlu0 %2582
  %2584 = vrot.lane.b32.xlu0 %v2574, 109
  %v2585 = vpop.permute.xlu0 %2584
  %2586 = vrot.lane.b32.xlu0 %v2575, 109
  %v2587 = vpop.permute.xlu0 %2586
  %v2588 = vsel %vm264, %v2577, %v2579
  %v2589 = vsel %vm264, %v2579, %v2581
  %v2590 = vsel %vm264, %v2581, %v2583
  %v2591 = vsel %vm264, %v2583, %v2585
  %v2592 = vsel %vm264, %v2585, %v2587
  %v2601 = vunpack.c.l.b16 %v2455
  %v2602 = vunpack.c.h.b16 %v2455
  %v2603 = vunpack.c.l.b16 %v2456
  %v2604 = vunpack.c.h.b16 %v2456
  %v2605 = vunpack.c.l.b16 %v2457
  %v2606 = vunpack.c.h.b16 %v2457
  %v2607 = vunpack.c.l.b16 %v2458
  %v2608 = vunpack.c.l.b16 %v2459
  %v2609 = vunpack.c.h.b16 %v2459
  %v2610 = vunpack.c.l.b16 %v2460
  %v2611 = vunpack.c.h.b16 %v2460
  %v2612 = vunpack.c.l.b16 %v2461
  %v2613 = vunpack.c.h.b16 %v2461
  %v2614 = vunpack.c.l.b16 %v2462
  %v2615 = vpack.c.b16 %v2608, %v2601
  %v2616 = vpack.c.b16 %v2609, %v2602
  %v2617 = vpack.c.b16 %v2610, %v2603
  %v2618 = vpack.c.b16 %v2611, %v2604
  %v2619 = vpack.c.b16 %v2612, %v2605
  %v2620 = vpack.c.b16 %v2613, %v2606
  %v2621 = vpack.c.b16 %v2614, %v2607
  %2622 = vrot.lane.b32.xlu0 %v2615, 108
  %v2623 = vpop.permute.xlu0 %2622
  %2624 = vrot.lane.b32.xlu0 %v2616, 108
  %v2625 = vpop.permute.xlu0 %2624
  %2626 = vrot.lane.b32.xlu0 %v2617, 108
  %v2627 = vpop.permute.xlu0 %2626
  %2628 = vrot.lane.b32.xlu0 %v2618, 108
  %v2629 = vpop.permute.xlu0 %2628
  %2630 = vrot.lane.b32.xlu0 %v2619, 108
  %v2631 = vpop.permute.xlu0 %2630
  %2632 = vrot.lane.b32.xlu0 %v2620, 108
  %v2633 = vpop.permute.xlu0 %2632
  %2634 = vrot.lane.b32.xlu0 %v2621, 108
  %v2635 = vpop.permute.xlu0 %2634
  %v2636 = vsel %vm313, %v2623, %v2625
  %v2637 = vsel %vm313, %v2625, %v2627
  %v2638 = vsel %vm313, %v2627, %v2629
  %v2639 = vsel %vm313, %v2629, %v2631
  %v2640 = vsel %vm313, %v2631, %v2633
  %v2641 = vsel %vm313, %v2633, %v2635
  %2642 = vrot.lane.b32.xlu0 %v2615, 92
  %v2643 = vpop.permute.xlu0 %2642
  %2644 = vrot.lane.b32.xlu0 %v2616, 92
  %v2645 = vpop.permute.xlu0 %2644
  %2646 = vrot.lane.b32.xlu0 %v2617, 92
  %v2647 = vpop.permute.xlu0 %2646
  %2648 = vrot.lane.b32.xlu0 %v2618, 92
  %v2649 = vpop.permute.xlu0 %2648
  %2650 = vrot.lane.b32.xlu0 %v2619, 92
  %v2651 = vpop.permute.xlu0 %2650
  %2652 = vrot.lane.b32.xlu0 %v2620, 92
  %v2653 = vpop.permute.xlu0 %2652
  %2654 = vrot.lane.b32.xlu0 %v2621, 92
  %v2655 = vpop.permute.xlu0 %2654
  %v2656 = vsel %vm334, %v2643, %v2645
  %v2657 = vsel %vm334, %v2645, %v2647
  %v2658 = vsel %vm334, %v2647, %v2649
  %v2659 = vsel %vm334, %v2649, %v2651
  %v2660 = vsel %vm334, %v2651, %v2653
  %v2661 = vsel %vm334, %v2653, %v2655
  %2662 = vrot.lane.b32.xlu0 %v2615, 91
  %v2663 = vpop.permute.xlu0 %2662
  %2664 = vrot.lane.b32.xlu0 %v2616, 91
  %v2665 = vpop.permute.xlu0 %2664
  %2666 = vrot.lane.b32.xlu0 %v2617, 91
  %v2667 = vpop.permute.xlu0 %2666
  %2668 = vrot.lane.b32.xlu0 %v2618, 91
  %v2669 = vpop.permute.xlu0 %2668
  %2670 = vrot.lane.b32.xlu0 %v2619, 91
  %v2671 = vpop.permute.xlu0 %2670
  %2672 = vrot.lane.b32.xlu0 %v2620, 91
  %v2673 = vpop.permute.xlu0 %2672
  %2674 = vrot.lane.b32.xlu0 %v2621, 91
  %v2675 = vpop.permute.xlu0 %2674
  %v2676 = vsel %vm355, %v2663, %v2665
  %v2677 = vsel %vm355, %v2665, %v2667
  %v2678 = vsel %vm355, %v2667, %v2669
  %v2679 = vsel %vm355, %v2669, %v2671
  %v2680 = vsel %vm355, %v2671, %v2673
  %v2681 = vsel %vm355, %v2673, %v2675
  %2682 = vrot.lane.b32.xlu0 %v2615, 90
  %v2683 = vpop.permute.xlu0 %2682
  %2684 = vrot.lane.b32.xlu0 %v2616, 90
  %v2685 = vpop.permute.xlu0 %2684
  %2686 = vrot.lane.b32.xlu0 %v2617, 90
  %v2687 = vpop.permute.xlu0 %2686
  %2688 = vrot.lane.b32.xlu0 %v2618, 90
  %v2689 = vpop.permute.xlu0 %2688
  %2690 = vrot.lane.b32.xlu0 %v2619, 90
  %v2691 = vpop.permute.xlu0 %2690
  %2692 = vrot.lane.b32.xlu0 %v2620, 90
  %v2693 = vpop.permute.xlu0 %2692
  %2694 = vrot.lane.b32.xlu0 %v2621, 90
  %v2695 = vpop.permute.xlu0 %2694
  %v2696 = vsel %vm376, %v2683, %v2685
  %v2697 = vsel %vm376, %v2685, %v2687
  %v2698 = vsel %vm376, %v2687, %v2689
  %v2699 = vsel %vm376, %v2689, %v2691
  %v2700 = vsel %vm376, %v2691, %v2693
  %v2701 = vsel %vm376, %v2693, %v2695
  %v2702 = vld [vmem:[%s22] sm:$0xf]
  %v2703 = vld [vmem:[%s22 + $0x4] sm:$0xf]
  %v2704 = vld [vmem:[%s22 + $0x8] sm:$0xf]
  %v2705 = vld [vmem:[%s22 + $0xc] sm:$0xf]
  %v2706 = vld [vmem:[%s22 + $0x10] sm:$0xf]
  %v2707 = vld [vmem:[%s22 + $0x14] sm:$0xf]
  %v2708 = vld [vmem:[%s22 + $0x18] sm:$0xf]
  %v2709 = vld [vmem:[%s22 + $0x1c] sm:$0xf]
  %v2710 = vld [vmem:[%s22 + $0x20] sm:$0xf]
  %v2711 = vld [vmem:[%s22 + $0x24] sm:$0xf]
  %v2712 = vld [vmem:[%s22 + $0x28] sm:$0xf]
  %v2713 = vld [vmem:[%s22 + $0x2c] sm:$0xf]
  %v2714 = vld [vmem:[%s22 + $0x30] sm:$0xf]
  %v2715 = vld [vmem:[%s22 + $0x34] sm:$0xf]
  %v2716 = vld [vmem:[%s22 + $0x38] sm:$0xf]
  %v2717 = vld [vmem:[%s22 + $0x3c] sm:$0xf]
  %v2718 = vld [vmem:[%s22 + $0x40] sm:$0xf]
  %v2719 = vld [vmem:[%s22 + $0x44] sm:$0xf]
  %v2720 = vld [vmem:[%s22 + $0x48] sm:$0xf]
  %v2721 = vld [vmem:[%s22 + $0x4c] sm:$0xf]
  %v2722 = vld [vmem:[%s22 + $0x50] sm:$0xf]
  %v2723 = vld [vmem:[%s22 + $0x54] sm:$0xf]
  %v2724 = vld [vmem:[%s22 + $0x58] sm:$0xf]
  %v2725 = vld [vmem:[%s22 + $0x5c] sm:$0xf]
  %v2726 = vld [vmem:[%s22 + $0x60] sm:$0xf]
  %v2727 = vld [vmem:[%s22 + $0x64] sm:$0xf]
  %v2728 = vld [vmem:[%s22 + $0x68] sm:$0xf]
  %v2729 = vld [vmem:[%s22 + $0x6c] sm:$0xf]
  %v2730 = vld [vmem:[%s22 + $0x70] sm:$0xf]
  %v2731 = vld [vmem:[%s22 + $0x74] sm:$0xf]
  %v2732 = vld [vmem:[%s22 + $0x78] sm:$0xf]
  %v2733 = vld [vmem:[%s22 + $0x7c] sm:$0xf]
  %v2734 = vld [vmem:[%s22 + $0x80] sm:$0xf]
  %v2735 = vld [vmem:[%s22 + $0x84] sm:$0xf]
  %v2736 = vld [vmem:[%s22 + $0x88] sm:$0xf]
  %v2737 = vld [vmem:[%s22 + $0x8c] sm:$0xf]
  %v2738 = vld [vmem:[%s22 + $0x90] sm:$0xf]
  %v2739 = vld [vmem:[%s22 + $0x94] sm:$0xf]
  %v2740 = vld [vmem:[%s22 + $0x98] sm:$0xf]
  %v2741 = vld [vmem:[%s22 + $0x9c] sm:$0xf]
  %v2742 = vld [vmem:[%s22 + $0xa0] sm:$0xf]
  %v2743 = vld [vmem:[%s22 + $0xa4] sm:$0xf]
  %v2744 = vld [vmem:[%s22 + $0xa8] sm:$0xf]
  %v2745 = vld [vmem:[%s22 + $0xac] sm:$0xf]
  %v2746 = vld [vmem:[%s22 + $0xb0] sm:$0xf]
  %v2747 = vld [vmem:[%s22 + $0xb4] sm:$0xf]
  %v2748 = vld [vmem:[%s22 + $0xb8] sm:$0xf]
  %v2749 = vld [vmem:[%s22 + $0xbc] sm:$0xf]
  %v2750 = vld [vmem:[%s22 + $0xc0] sm:$0xf]
  %v2751 = vld [vmem:[%s22 + $0xc4] sm:$0xf]
  %v2752 = vld [vmem:[%s22 + $0xc8] sm:$0xf]
  %v2753 = vld [vmem:[%s22 + $0xcc] sm:$0xf]
  %v2754 = vld [vmem:[%s22 + $0xd0] sm:$0xf]
  %v2755 = vld [vmem:[%s22 + $0xd4] sm:$0xf]
  %v2756 = vld [vmem:[%s22 + $0xd8] sm:$0xf]
  %v2757 = vld [vmem:[%s22 + $0xdc] sm:$0xf]
  %v2758 = vld [vmem:[%s22 + $0xe0] sm:$0xf]
  %v2759 = vld [vmem:[%s22 + $0xe4] sm:$0xf]
  %v2760 = vld [vmem:[%s22 + $0xe8] sm:$0xf]
  %v2761 = vld [vmem:[%s22 + $0xec] sm:$0xf]
  %v2762 = vld [vmem:[%s22 + $0xf0] sm:$0xf]
  %v2763 = vld [vmem:[%s22 + $0xf4] sm:$0xf]
  %v2764 = vld [vmem:[%s22 + $0xf8] sm:$0xf]
  %v2765 = vld [vmem:[%s22 + $0xfc] sm:$0xf]
  %v2766 = vld [vmem:[%s22 + $0x100] sm:$0xf]
  %v2767 = vld [vmem:[%s22 + $0x104] sm:$0xf]
  %v2768 = vld [vmem:[%s22 + $0x108] sm:$0xf]
  %v2769 = vld [vmem:[%s22 + $0x10c] sm:$0xf]
  %v2770 = vld [vmem:[%s22 + $0x110] sm:$0xf]
  %v2771 = vld [vmem:[%s22 + $0x114] sm:$0xf]
  %v2772 = vld [vmem:[%s22 + $0x118] sm:$0xf]
  %v2773 = vld [vmem:[%s22 + $0x11c] sm:$0xf]
  %v2774 = vld [vmem:[%s22 + $0x120] sm:$0xf]
  %v2775 = vld [vmem:[%s22 + $0x124] sm:$0xf]
  %v2776 = vld [vmem:[%s22 + $0x128] sm:$0xf]
  %v2777 = vld [vmem:[%s22 + $0x12c] sm:$0xf]
  %v2778 = vld [vmem:[%s22 + $0x130] sm:$0xf]
  %v2779 = vld [vmem:[%s22 + $0x134] sm:$0xf]
  %v2780 = vld [vmem:[%s22 + $0x138] sm:$0xf]
  %v2781 = vld [vmem:[%s22 + $0x13c] sm:$0xf]
  %v2782 = vld [vmem:[%s22 + $0x140] sm:$0xf]
  %v2783 = vld [vmem:[%s22 + $0x144] sm:$0xf]
  %v2784 = vld [vmem:[%s22 + $0x148] sm:$0xf]
  %v2785 = vld [vmem:[%s22 + $0x14c] sm:$0xf]
  %v2786 = vld [vmem:[%s22 + $0x150] sm:$0xf]
  %v2787 = vld [vmem:[%s22 + $0x154] sm:$0xf]
  %v2788 = vld [vmem:[%s22 + $0x158] sm:$0xf]
  %v2789 = vld [vmem:[%s22 + $0x15c] sm:$0xf]
  %v2790 = vld [vmem:[%s22 + $0x160] sm:$0xf]
  %v2791 = vld [vmem:[%s22 + $0x164] sm:$0xf]
  %v2792 = vld [vmem:[%s22 + $0x168] sm:$0xf]
  %v2793 = vld [vmem:[%s22 + $0x16c] sm:$0xf]
  %v2794 = vld [vmem:[%s22 + $0x170] sm:$0xf]
  %v2795 = vld [vmem:[%s22 + $0x174] sm:$0xf]
  %v2796 = vld [vmem:[%s22 + $0x178] sm:$0xf]
  %v2797 = vld [vmem:[%s22 + $0x17c] sm:$0xf]
  %2798 = vrot.lane.b32.xlu0 %v2485, 19
  %v2799 = vpop.permute.xlu0 %2798
  %2800 = vrot.lane.b32.xlu0 %v2486, 19
  %v2801 = vpop.permute.xlu0 %2800
  %2802 = vrot.lane.b32.xlu0 %v2487, 19
  %v2803 = vpop.permute.xlu0 %2802
  %2804 = vrot.lane.b32.xlu0 %v2488, 19
  %v2805 = vpop.permute.xlu0 %2804
  %2806 = vrot.lane.b32.xlu0 %v2489, 19
  %v2807 = vpop.permute.xlu0 %2806
  %2808 = vrot.lane.b32.xlu0 %v2490, 19
  %v2809 = vpop.permute.xlu0 %2808
  %2810 = vrot.lane.b32.xlu0 %v2491, 19
  %v2811 = vpop.permute.xlu0 %2810
  %2812 = vrot.lane.b32.xlu0 %v2506, 19
  %v2813 = vpop.permute.xlu0 %2812
  %2814 = vrot.lane.b32.xlu0 %v2507, 19
  %v2815 = vpop.permute.xlu0 %2814
  %2816 = vrot.lane.b32.xlu0 %v2508, 19
  %v2817 = vpop.permute.xlu0 %2816
  %2818 = vrot.lane.b32.xlu0 %v2509, 19
  %v2819 = vpop.permute.xlu0 %2818
  %2820 = vrot.lane.b32.xlu0 %v2510, 19
  %v2821 = vpop.permute.xlu0 %2820
  %2822 = vrot.lane.b32.xlu0 %v2511, 19
  %v2823 = vpop.permute.xlu0 %2822
  %2824 = vrot.lane.b32.xlu0 %v2505, 19
  %v2825 = vpop.permute.xlu0 %2824
  %2826 = vrot.lane.b32.xlu0 %v2526, 19
  %v2827 = vpop.permute.xlu0 %2826
  %2828 = vrot.lane.b32.xlu0 %v2527, 19
  %v2829 = vpop.permute.xlu0 %2828
  %2830 = vrot.lane.b32.xlu0 %v2528, 19
  %v2831 = vpop.permute.xlu0 %2830
  %2832 = vrot.lane.b32.xlu0 %v2529, 19
  %v2833 = vpop.permute.xlu0 %2832
  %2834 = vrot.lane.b32.xlu0 %v2530, 19
  %v2835 = vpop.permute.xlu0 %2834
  %2836 = vrot.lane.b32.xlu0 %v2531, 19
  %v2837 = vpop.permute.xlu0 %2836
  %2838 = vrot.lane.b32.xlu0 %v2525, 19
  %v2839 = vpop.permute.xlu0 %2838
  %2840 = vrot.lane.b32.xlu0 %v2546, 19
  %v2841 = vpop.permute.xlu0 %2840
  %2842 = vrot.lane.b32.xlu0 %v2547, 19
  %v2843 = vpop.permute.xlu0 %2842
  %2844 = vrot.lane.b32.xlu0 %v2548, 19
  %v2845 = vpop.permute.xlu0 %2844
  %2846 = vrot.lane.b32.xlu0 %v2549, 19
  %v2847 = vpop.permute.xlu0 %2846
  %2848 = vrot.lane.b32.xlu0 %v2550, 19
  %v2849 = vpop.permute.xlu0 %2848
  %2850 = vrot.lane.b32.xlu0 %v2551, 19
  %v2851 = vpop.permute.xlu0 %2850
  %2852 = vrot.lane.b32.xlu0 %v2545, 19
  %v2853 = vpop.permute.xlu0 %2852
  %2854 = vrot.lane.b32.xlu0 %v2577, 19
  %v2855 = vpop.permute.xlu0 %2854
  %2856 = vrot.lane.b32.xlu0 %v2588, 19
  %v2857 = vpop.permute.xlu0 %2856
  %2858 = vrot.lane.b32.xlu0 %v2589, 19
  %v2859 = vpop.permute.xlu0 %2858
  %2860 = vrot.lane.b32.xlu0 %v2590, 19
  %v2861 = vpop.permute.xlu0 %2860
  %2862 = vrot.lane.b32.xlu0 %v2591, 19
  %v2863 = vpop.permute.xlu0 %2862
  %2864 = vrot.lane.b32.xlu0 %v2592, 19
  %v2865 = vpop.permute.xlu0 %2864
  %2866 = vrot.lane.b32.xlu0 %v2587, 19
  %v2867 = vpop.permute.xlu0 %2866
  %2868 = vrot.lane.b32.xlu0 %v2623, 19
  %v2869 = vpop.permute.xlu0 %2868
  %2870 = vrot.lane.b32.xlu0 %v2636, 19
  %v2871 = vpop.permute.xlu0 %2870
  %2872 = vrot.lane.b32.xlu0 %v2637, 19
  %v2873 = vpop.permute.xlu0 %2872
  %2874 = vrot.lane.b32.xlu0 %v2638, 19
  %v2875 = vpop.permute.xlu0 %2874
  %2876 = vrot.lane.b32.xlu0 %v2639, 19
  %v2877 = vpop.permute.xlu0 %2876
  %2878 = vrot.lane.b32.xlu0 %v2640, 19
  %v2879 = vpop.permute.xlu0 %2878
  %2880 = vrot.lane.b32.xlu0 %v2641, 19
  %v2881 = vpop.permute.xlu0 %2880
  %2882 = vrot.lane.b32.xlu0 %v2643, 19
  %v2883 = vpop.permute.xlu0 %2882
  %2884 = vrot.lane.b32.xlu0 %v2656, 19
  %v2885 = vpop.permute.xlu0 %2884
  %2886 = vrot.lane.b32.xlu0 %v2657, 19
  %v2887 = vpop.permute.xlu0 %2886
  %2888 = vrot.lane.b32.xlu0 %v2658, 19
  %v2889 = vpop.permute.xlu0 %2888
  %2890 = vrot.lane.b32.xlu0 %v2659, 19
  %v2891 = vpop.permute.xlu0 %2890
  %2892 = vrot.lane.b32.xlu0 %v2660, 19
  %v2893 = vpop.permute.xlu0 %2892
  %2894 = vrot.lane.b32.xlu0 %v2661, 19
  %v2895 = vpop.permute.xlu0 %2894
  %2896 = vrot.lane.b32.xlu0 %v2663, 19
  %v2897 = vpop.permute.xlu0 %2896
  %2898 = vrot.lane.b32.xlu0 %v2676, 19
  %v2899 = vpop.permute.xlu0 %2898
  %2900 = vrot.lane.b32.xlu0 %v2677, 19
  %v2901 = vpop.permute.xlu0 %2900
  %2902 = vrot.lane.b32.xlu0 %v2678, 19
  %v2903 = vpop.permute.xlu0 %2902
  %2904 = vrot.lane.b32.xlu0 %v2679, 19
  %v2905 = vpop.permute.xlu0 %2904
  %2906 = vrot.lane.b32.xlu0 %v2680, 19
  %v2907 = vpop.permute.xlu0 %2906
  %2908 = vrot.lane.b32.xlu0 %v2681, 19
  %v2909 = vpop.permute.xlu0 %2908
  %2910 = vrot.lane.b32.xlu0 %v2683, 19
  %v2911 = vpop.permute.xlu0 %2910
  %2912 = vrot.lane.b32.xlu0 %v2696, 19
  %v2913 = vpop.permute.xlu0 %2912
  %2914 = vrot.lane.b32.xlu0 %v2697, 19
  %v2915 = vpop.permute.xlu0 %2914
  %2916 = vrot.lane.b32.xlu0 %v2698, 19
  %v2917 = vpop.permute.xlu0 %2916
  %2918 = vrot.lane.b32.xlu0 %v2699, 19
  %v2919 = vpop.permute.xlu0 %2918
  %2920 = vrot.lane.b32.xlu0 %v2700, 19
  %v2921 = vpop.permute.xlu0 %2920
  %2922 = vrot.lane.b32.xlu0 %v2701, 19
  %v2923 = vpop.permute.xlu0 %2922
  %v2924 = vsel %vm520, %v2799, %v2801
  %v2925 = vsel %vm520, %v2801, %v2803
  %v2926 = vsel %vm520, %v2803, %v2805
  %v2927 = vsel %vm520, %v2805, %v2807
  %v2928 = vsel %vm520, %v2807, %v2809
  %v2929 = vsel %vm520, %v2809, %v2811
  %v2930 = vsel %vm520, %v2813, %v2815
  %v2931 = vsel %vm520, %v2815, %v2817
  %v2932 = vsel %vm520, %v2817, %v2819
  %v2933 = vsel %vm520, %v2819, %v2821
  %v2934 = vsel %vm520, %v2821, %v2823
  %v2935 = vsel %vm520, %v2823, %v2825
  %v2936 = vsel %vm520, %v2827, %v2829
  %v2937 = vsel %vm520, %v2829, %v2831
  %v2938 = vsel %vm520, %v2831, %v2833
  %v2939 = vsel %vm520, %v2833, %v2835
  %v2940 = vsel %vm520, %v2835, %v2837
  %v2941 = vsel %vm520, %v2837, %v2839
  %v2942 = vsel %vm520, %v2841, %v2843
  %v2943 = vsel %vm520, %v2843, %v2845
  %v2944 = vsel %vm520, %v2845, %v2847
  %v2945 = vsel %vm520, %v2847, %v2849
  %v2946 = vsel %vm520, %v2849, %v2851
  %v2947 = vsel %vm520, %v2851, %v2853
  %v2948 = vsel %vm520, %v2855, %v2857
  %v2949 = vsel %vm520, %v2857, %v2859
  %v2950 = vsel %vm520, %v2859, %v2861
  %v2951 = vsel %vm520, %v2861, %v2863
  %v2952 = vsel %vm520, %v2863, %v2865
  %v2953 = vsel %vm520, %v2865, %v2867
  %v2954 = vsel %vm520, %v2869, %v2871
  %v2955 = vsel %vm520, %v2871, %v2873
  %v2956 = vsel %vm520, %v2873, %v2875
  %v2957 = vsel %vm520, %v2875, %v2877
  %v2958 = vsel %vm520, %v2877, %v2879
  %v2959 = vsel %vm520, %v2879, %v2881
  %v2960 = vsel %vm520, %v2883, %v2885
  %v2961 = vsel %vm520, %v2885, %v2887
  %v2962 = vsel %vm520, %v2887, %v2889
  %v2963 = vsel %vm520, %v2889, %v2891
  %v2964 = vsel %vm520, %v2891, %v2893
  %v2965 = vsel %vm520, %v2893, %v2895
  %v2966 = vsel %vm520, %v2897, %v2899
  %v2967 = vsel %vm520, %v2899, %v2901
  %v2968 = vsel %vm520, %v2901, %v2903
  %v2969 = vsel %vm520, %v2903, %v2905
  %v2970 = vsel %vm520, %v2905, %v2907
  %v2971 = vsel %vm520, %v2907, %v2909
  %v2972 = vsel %vm520, %v2911, %v2913
  %v2973 = vsel %vm520, %v2913, %v2915
  %v2974 = vsel %vm520, %v2915, %v2917
  %v2975 = vsel %vm520, %v2917, %v2919
  %v2976 = vsel %vm520, %v2919, %v2921
  %v2977 = vsel %vm520, %v2921, %v2923
  %v3128 = vunpack.c.l.b16 %v2702
  %v3129 = vunpack.c.l.b16 %v2703
  %v3130 = vunpack.c.l.b16 %v2704
  %v3131 = vunpack.c.l.b16 %v2705
  %v3132 = vunpack.c.l.b16 %v2706
  %v3133 = vunpack.c.l.b16 %v2707
  %v3134 = vunpack.c.l.b16 %v2708
  %v3135 = vunpack.c.l.b16 %v2709
  %v3136 = vunpack.c.l.b16 %v2710
  %v3137 = vunpack.c.l.b16 %v2711
  %v3138 = vunpack.c.l.b16 %v2712
  %v3139 = vunpack.c.l.b16 %v2713
  %v3140 = vunpack.c.l.b16 %v2714
  %v3141 = vunpack.c.l.b16 %v2715
  %v3142 = vunpack.c.l.b16 %v2716
  %v3143 = vunpack.c.l.b16 %v2717
  %v3144 = vunpack.c.l.b16 %v2718
  %v3145 = vunpack.c.l.b16 %v2719
  %v3146 = vunpack.c.l.b16 %v2720
  %v3147 = vunpack.c.l.b16 %v2721
  %v3148 = vunpack.c.l.b16 %v2722
  %v3149 = vunpack.c.l.b16 %v2723
  %v3150 = vunpack.c.l.b16 %v2724
  %v3151 = vunpack.c.l.b16 %v2725
  %v3152 = vunpack.c.l.b16 %v2726
  %v3153 = vunpack.c.l.b16 %v2727
  %v3154 = vunpack.c.l.b16 %v2728
  %v3155 = vunpack.c.l.b16 %v2729
  %v3156 = vunpack.c.l.b16 %v2730
  %v3157 = vunpack.c.l.b16 %v2731
  %v3158 = vunpack.c.l.b16 %v2732
  %v3159 = vunpack.c.l.b16 %v2733
  %v3160 = vunpack.c.l.b16 %v2734
  %v3161 = vunpack.c.l.b16 %v2735
  %v3162 = vunpack.c.l.b16 %v2736
  %v3163 = vunpack.c.l.b16 %v2737
  %v3164 = vunpack.c.l.b16 %v2738
  %v3165 = vunpack.c.l.b16 %v2739
  %v3166 = vunpack.c.l.b16 %v2740
  %v3167 = vunpack.c.l.b16 %v2741
  %v3168 = vunpack.c.l.b16 %v2742
  %v3169 = vunpack.c.l.b16 %v2743
  %v3170 = vunpack.c.l.b16 %v2744
  %v3171 = vunpack.c.l.b16 %v2745
  %v3172 = vunpack.c.l.b16 %v2746
  %v3173 = vunpack.c.l.b16 %v2747
  %v3174 = vunpack.c.l.b16 %v2748
  %v3175 = vunpack.c.l.b16 %v2749
  %v3176 = vunpack.c.l.b16 %v2750
  %v3177 = vunpack.c.l.b16 %v2751
  %v3178 = vunpack.c.l.b16 %v2752
  %v3179 = vunpack.c.l.b16 %v2753
  %v3180 = vunpack.c.l.b16 %v2754
  %v3181 = vunpack.c.l.b16 %v2755
  %v3182 = vunpack.c.l.b16 %v2756
  %v3183 = vunpack.c.l.b16 %v2757
  %v3184 = vunpack.c.l.b16 %v2758
  %v3185 = vunpack.c.l.b16 %v2759
  %v3186 = vunpack.c.l.b16 %v2760
  %v3187 = vunpack.c.l.b16 %v2761
  %v3188 = vunpack.c.l.b16 %v2762
  %v3189 = vunpack.c.l.b16 %v2763
  %v3190 = vunpack.c.l.b16 %v2764
  %v3191 = vunpack.c.l.b16 %v2765
  %v3192 = vunpack.c.l.b16 %v2766
  %v3193 = vunpack.c.l.b16 %v2767
  %v3194 = vunpack.c.l.b16 %v2768
  %v3195 = vunpack.c.l.b16 %v2769
  %v3196 = vunpack.c.l.b16 %v2770
  %v3197 = vunpack.c.l.b16 %v2771
  %v3198 = vunpack.c.l.b16 %v2772
  %v3199 = vunpack.c.l.b16 %v2773
  %v3200 = vunpack.c.l.b16 %v2774
  %v3201 = vunpack.c.l.b16 %v2775
  %v3202 = vunpack.c.l.b16 %v2776
  %v3203 = vunpack.c.l.b16 %v2777
  %v3204 = vunpack.c.l.b16 %v2778
  %v3205 = vunpack.c.l.b16 %v2779
  %v3206 = vunpack.c.l.b16 %v2780
  %v3207 = vunpack.c.l.b16 %v2781
  %v3208 = vunpack.c.l.b16 %v2782
  %v3209 = vunpack.c.l.b16 %v2783
  %v3210 = vunpack.c.l.b16 %v2784
  %v3211 = vunpack.c.l.b16 %v2785
  %v3212 = vunpack.c.l.b16 %v2786
  %v3213 = vunpack.c.l.b16 %v2787
  %v3214 = vunpack.c.l.b16 %v2788
  %v3215 = vunpack.c.l.b16 %v2789
  %v3216 = vunpack.c.l.b16 %v2790
  %v3217 = vunpack.c.l.b16 %v2791
  %v3218 = vunpack.c.l.b16 %v2792
  %v3219 = vunpack.c.l.b16 %v2793
  %v3220 = vunpack.c.l.b16 %v2794
  %v3221 = vunpack.c.l.b16 %v2795
  %v3222 = vunpack.c.l.b16 %v2796
  %v3223 = vunpack.c.l.b16 %v2797
  %v3224 = vpack.c.b16 %v3129, %v3128
  %v3225 = vpack.c.b16 %v3131, %v3130
  %v3226 = vpack.c.b16 %v3133, %v3132
  %v3227 = vpack.c.b16 %v3135, %v3134
  %v3228 = vpack.c.b16 %v3137, %v3136
  %v3229 = vpack.c.b16 %v3139, %v3138
  %v3230 = vpack.c.b16 %v3141, %v3140
  %v3231 = vpack.c.b16 %v3143, %v3142
  %v3232 = vpack.c.b16 %v3145, %v3144
  %v3233 = vpack.c.b16 %v3147, %v3146
  %v3234 = vpack.c.b16 %v3149, %v3148
  %v3235 = vpack.c.b16 %v3151, %v3150
  %v3236 = vpack.c.b16 %v3153, %v3152
  %v3237 = vpack.c.b16 %v3155, %v3154
  %v3238 = vpack.c.b16 %v3157, %v3156
  %v3239 = vpack.c.b16 %v3159, %v3158
  %v3240 = vpack.c.b16 %v3161, %v3160
  %v3241 = vpack.c.b16 %v3163, %v3162
  %v3242 = vpack.c.b16 %v3165, %v3164
  %v3243 = vpack.c.b16 %v3167, %v3166
  %v3244 = vpack.c.b16 %v3169, %v3168
  %v3245 = vpack.c.b16 %v3171, %v3170
  %v3246 = vpack.c.b16 %v3173, %v3172
  %v3247 = vpack.c.b16 %v3175, %v3174
  %v3248 = vpack.c.b16 %v3177, %v3176
  %v3249 = vpack.c.b16 %v3179, %v3178
  %v3250 = vpack.c.b16 %v3181, %v3180
  %v3251 = vpack.c.b16 %v3183, %v3182
  %v3252 = vpack.c.b16 %v3185, %v3184
  %v3253 = vpack.c.b16 %v3187, %v3186
  %v3254 = vpack.c.b16 %v3189, %v3188
  %v3255 = vpack.c.b16 %v3191, %v3190
  %v3256 = vpack.c.b16 %v3193, %v3192
  %v3257 = vpack.c.b16 %v3195, %v3194
  %v3258 = vpack.c.b16 %v3197, %v3196
  %v3259 = vpack.c.b16 %v3199, %v3198
  %v3260 = vpack.c.b16 %v3201, %v3200
  %v3261 = vpack.c.b16 %v3203, %v3202
  %v3262 = vpack.c.b16 %v3205, %v3204
  %v3263 = vpack.c.b16 %v3207, %v3206
  %v3264 = vpack.c.b16 %v3209, %v3208
  %v3265 = vpack.c.b16 %v3211, %v3210
  %v3266 = vpack.c.b16 %v3213, %v3212
  %v3267 = vpack.c.b16 %v3215, %v3214
  %v3268 = vpack.c.b16 %v3217, %v3216
  %v3269 = vpack.c.b16 %v3219, %v3218
  %v3270 = vpack.c.b16 %v3221, %v3220
  %v3271 = vpack.c.b16 %v3223, %v3222
  %3320 = vmatprep.subr.bf16.mxu0 0
  %3321 = vmatpush1.bf16.msra.mxu0 %v3231
  %3322 = vmatprep.subr.bf16.mxu0 0
  %3323 = vmatpush1.bf16.msra.mxu0 %v3230
  %3324 = vmatprep.subr.bf16.mxu0 0
  %3325 = vmatpush1.bf16.msra.mxu0 %v3229
  %3326 = vmatprep.subr.bf16.mxu0 0
  %3327 = vmatpush1.bf16.msra.mxu0 %v3228
  %3328 = vmatprep.subr.bf16.mxu0 0
  %3329 = vmatpush1.bf16.msra.mxu0 %v3227
  %3330 = vmatprep.subr.bf16.mxu0 0
  %3331 = vmatpush1.bf16.msra.mxu0 %v3226
  %3332 = vmatprep.subr.bf16.mxu0 0
  %3333 = vmatpush1.bf16.msra.mxu0 %v3225
  %3334 = vmatprep.subr.bf16.mxu0 0
  %3335 = vmatpush1.bf16.msra.mxu0 %v3224
  %3336 = vmatprep.subr.bf16.mxu0 0
  %3337 = vmatpush2.bf16.msra.mxu0 %v3239
  %3338 = vmatprep.subr.bf16.mxu0 0
  %3339 = vmatpush2.bf16.msra.mxu0 %v3238
  %3340 = vmatprep.subr.bf16.mxu0 0
  %3341 = vmatpush2.bf16.msra.mxu0 %v3237
  %3342 = vmatprep.subr.bf16.mxu0 0
  %3343 = vmatpush2.bf16.msra.mxu0 %v3236
  %3344 = vmatprep.subr.bf16.mxu0 0
  %3345 = vmatpush2.bf16.msra.mxu0 %v3235
  %3346 = vmatprep.subr.bf16.mxu0 0
  %3347 = vmatpush2.bf16.msra.mxu0 %v3234
  %3348 = vmatprep.subr.bf16.mxu0 0
  %3349 = vmatpush2.bf16.msra.mxu0 %v3233
  %3350 = vmatprep.subr.bf16.mxu0 0
  %3351 = vmatpush2.bf16.msra.mxu0 %v3232
  %3352 = vmatprep.mubr.bf16.mxu0 %v2925
  %3353 = vmatmul.mubr.bf16.gmra.mxu0 %v2924
  %v3354 = vpop.f32.mrf.mxu0
  %v3355 = vadd.f32 0.0, %v3354
  %v3356 = vpop.f32.mrf.mxu0
  %v3357 = vpop.f32.mrf.mxu0
  %v3358 = vadd.f32 0.0, %v3357
  %v3359 = vpop.f32.mrf.mxu0
  %3360 = vmatprep.mubr.bf16.mxu0 %v2931
  %3361 = vmatmul.mubr.bf16.gmra.mxu0 %v2930
  %v3362 = vpop.f32.mrf.mxu0
  %v3363 = vadd.f32 0.0, %v3362
  %v3364 = vpop.f32.mrf.mxu0
  %v3365 = vpop.f32.mrf.mxu0
  %v3366 = vadd.f32 0.0, %v3365
  %v3367 = vpop.f32.mrf.mxu0
  %3368 = vmatprep.mubr.bf16.mxu0 %v2937
  %3369 = vmatmul.mubr.bf16.gmra.mxu0 %v2936
  %v3370 = vpop.f32.mrf.mxu0
  %v3371 = vadd.f32 0.0, %v3370
  %v3372 = vpop.f32.mrf.mxu0
  %v3373 = vpop.f32.mrf.mxu0
  %v3374 = vadd.f32 0.0, %v3373
  %v3375 = vpop.f32.mrf.mxu0
  %3376 = vmatprep.mubr.bf16.mxu0 %v2943
  %3377 = vmatmul.mubr.bf16.gmra.mxu0 %v2942
  %v3378 = vpop.f32.mrf.mxu0
  %v3379 = vadd.f32 0.0, %v3378
  %v3380 = vpop.f32.mrf.mxu0
  %v3381 = vpop.f32.mrf.mxu0
  %v3382 = vadd.f32 0.0, %v3381
  %v3383 = vpop.f32.mrf.mxu0
  %3384 = vmatprep.mubr.bf16.mxu0 %v2949
  %3385 = vmatmul.mubr.bf16.gmra.mxu0 %v2948
  %v3386 = vpop.f32.mrf.mxu0
  %v3387 = vadd.f32 0.0, %v3386
  %v3388 = vpop.f32.mrf.mxu0
  %v3389 = vpop.f32.mrf.mxu0
  %v3390 = vadd.f32 0.0, %v3389
  %v3391 = vpop.f32.mrf.mxu0
  %3392 = vmatprep.mubr.bf16.mxu0 %v2955
  %3393 = vmatmul.mubr.bf16.gmra.mxu0 %v2954
  %v3394 = vpop.f32.mrf.mxu0
  %v3395 = vadd.f32 0.0, %v3394
  %v3396 = vpop.f32.mrf.mxu0
  %v3397 = vpop.f32.mrf.mxu0
  %v3398 = vadd.f32 0.0, %v3397
  %v3399 = vpop.f32.mrf.mxu0
  %3400 = vmatprep.mubr.bf16.mxu0 %v2961
  %3401 = vmatmul.mubr.bf16.gmra.mxu0 %v2960
  %v3402 = vpop.f32.mrf.mxu0
  %v3403 = vadd.f32 0.0, %v3402
  %v3404 = vpop.f32.mrf.mxu0
  %v3405 = vpop.f32.mrf.mxu0
  %v3406 = vadd.f32 0.0, %v3405
  %v3407 = vpop.f32.mrf.mxu0
  %3408 = vmatprep.mubr.bf16.mxu0 %v2967
  %3409 = vmatmul.mubr.bf16.gmra.mxu0 %v2966
  %v3410 = vpop.f32.mrf.mxu0
  %v3411 = vadd.f32 0.0, %v3410
  %v3412 = vpop.f32.mrf.mxu0
  %v3413 = vpop.f32.mrf.mxu0
  %v3414 = vadd.f32 0.0, %v3413
  %v3415 = vpop.f32.mrf.mxu0
  %3416 = vmatprep.mubr.bf16.mxu0 %v2973
  %3417 = vmatmul.mubr.bf16.gmra.mxu0 %v2972
  %v3418 = vpop.f32.mrf.mxu0
  %v3419 = vadd.f32 0.0, %v3418
  %v3420 = vpop.f32.mrf.mxu0
  %v3421 = vpop.f32.mrf.mxu0
  %v3422 = vadd.f32 0.0, %v3421
  %v3423 = vpop.f32.mrf.mxu0
  %3424 = vdwg.mxu0
  %3425 = vmatprep.subr.bf16.mxu0 0
  %3426 = vmatpush1.bf16.msra.mxu0 %v3247
  %3427 = vmatprep.subr.bf16.mxu0 0
  %3428 = vmatpush1.bf16.msra.mxu0 %v3246
  %3429 = vmatprep.subr.bf16.mxu0 0
  %3430 = vmatpush1.bf16.msra.mxu0 %v3245
  %3431 = vmatprep.subr.bf16.mxu0 0
  %3432 = vmatpush1.bf16.msra.mxu0 %v3244
  %3433 = vmatprep.subr.bf16.mxu0 0
  %3434 = vmatpush1.bf16.msra.mxu0 %v3243
  %3435 = vmatprep.subr.bf16.mxu0 0
  %3436 = vmatpush1.bf16.msra.mxu0 %v3242
  %3437 = vmatprep.subr.bf16.mxu0 0
  %3438 = vmatpush1.bf16.msra.mxu0 %v3241
  %3439 = vmatprep.subr.bf16.mxu0 0
  %3440 = vmatpush1.bf16.msra.mxu0 %v3240
  %3441 = vmatprep.subr.bf16.mxu0 0
  %3442 = vmatpush2.bf16.msra.mxu0 %v3255
  %3443 = vmatprep.subr.bf16.mxu0 0
  %3444 = vmatpush2.bf16.msra.mxu0 %v3254
  %3445 = vmatprep.subr.bf16.mxu0 0
  %3446 = vmatpush2.bf16.msra.mxu0 %v3253
  %3447 = vmatprep.subr.bf16.mxu0 0
  %3448 = vmatpush2.bf16.msra.mxu0 %v3252
  %3449 = vmatprep.subr.bf16.mxu0 0
  %3450 = vmatpush2.bf16.msra.mxu0 %v3251
  %3451 = vmatprep.subr.bf16.mxu0 0
  %3452 = vmatpush2.bf16.msra.mxu0 %v3250
  %3453 = vmatprep.subr.bf16.mxu0 0
  %3454 = vmatpush2.bf16.msra.mxu0 %v3249
  %3455 = vmatprep.subr.bf16.mxu0 0
  %3456 = vmatpush2.bf16.msra.mxu0 %v3248
  %3457 = vmatprep.mubr.bf16.mxu0 %v2927
  %3458 = vmatmul.mubr.bf16.gmra.mxu0 %v2926
  %v3459 = vpop.f32.mrf.mxu0
  %v3460 = vadd.f32 %v3355, %v3459
  %v3461 = vpop.f32.mrf.mxu0
  %v3462 = vpop.f32.mrf.mxu0
  %v3463 = vadd.f32 %v3358, %v3462
  %v3464 = vpop.f32.mrf.mxu0
  %3465 = vmatprep.mubr.bf16.mxu0 %v2933
  %3466 = vmatmul.mubr.bf16.gmra.mxu0 %v2932
  %v3467 = vpop.f32.mrf.mxu0
  %v3468 = vadd.f32 %v3363, %v3467
  %v3469 = vpop.f32.mrf.mxu0
  %v3470 = vpop.f32.mrf.mxu0
  %v3471 = vadd.f32 %v3366, %v3470
  %v3472 = vpop.f32.mrf.mxu0
  %3473 = vmatprep.mubr.bf16.mxu0 %v2939
  %3474 = vmatmul.mubr.bf16.gmra.mxu0 %v2938
  %v3475 = vpop.f32.mrf.mxu0
  %v3476 = vadd.f32 %v3371, %v3475
  %v3477 = vpop.f32.mrf.mxu0
  %v3478 = vpop.f32.mrf.mxu0
  %v3479 = vadd.f32 %v3374, %v3478
  %v3480 = vpop.f32.mrf.mxu0
  %3481 = vmatprep.mubr.bf16.mxu0 %v2945
  %3482 = vmatmul.mubr.bf16.gmra.mxu0 %v2944
  %v3483 = vpop.f32.mrf.mxu0
  %v3484 = vadd.f32 %v3379, %v3483
  %v3485 = vpop.f32.mrf.mxu0
  %v3486 = vpop.f32.mrf.mxu0
  %v3487 = vadd.f32 %v3382, %v3486
  %v3488 = vpop.f32.mrf.mxu0
  %3489 = vmatprep.mubr.bf16.mxu0 %v2951
  %3490 = vmatmul.mubr.bf16.gmra.mxu0 %v2950
  %v3491 = vpop.f32.mrf.mxu0
  %v3492 = vadd.f32 %v3387, %v3491
  %v3493 = vpop.f32.mrf.mxu0
  %v3494 = vpop.f32.mrf.mxu0
  %v3495 = vadd.f32 %v3390, %v3494
  %v3496 = vpop.f32.mrf.mxu0
  %3497 = vmatprep.mubr.bf16.mxu0 %v2957
  %3498 = vmatmul.mubr.bf16.gmra.mxu0 %v2956
  %v3499 = vpop.f32.mrf.mxu0
  %v3500 = vadd.f32 %v3395, %v3499
  %v3501 = vpop.f32.mrf.mxu0
  %v3502 = vpop.f32.mrf.mxu0
  %v3503 = vadd.f32 %v3398, %v3502
  %v3504 = vpop.f32.mrf.mxu0
  %3505 = vmatprep.mubr.bf16.mxu0 %v2963
  %3506 = vmatmul.mubr.bf16.gmra.mxu0 %v2962
  %v3507 = vpop.f32.mrf.mxu0
  %v3508 = vadd.f32 %v3403, %v3507
  %v3509 = vpop.f32.mrf.mxu0
  %v3510 = vpop.f32.mrf.mxu0
  %v3511 = vadd.f32 %v3406, %v3510
  %v3512 = vpop.f32.mrf.mxu0
  %3513 = vmatprep.mubr.bf16.mxu0 %v2969
  %3514 = vmatmul.mubr.bf16.gmra.mxu0 %v2968
  %v3515 = vpop.f32.mrf.mxu0
  %v3516 = vadd.f32 %v3411, %v3515
  %v3517 = vpop.f32.mrf.mxu0
  %v3518 = vpop.f32.mrf.mxu0
  %v3519 = vadd.f32 %v3414, %v3518
  %v3520 = vpop.f32.mrf.mxu0
  %3521 = vmatprep.mubr.bf16.mxu0 %v2975
  %3522 = vmatmul.mubr.bf16.gmra.mxu0 %v2974
  %v3523 = vpop.f32.mrf.mxu0
  %v3524 = vadd.f32 %v3419, %v3523
  %v3525 = vpop.f32.mrf.mxu0
  %v3526 = vpop.f32.mrf.mxu0
  %v3527 = vadd.f32 %v3422, %v3526
  %v3528 = vpop.f32.mrf.mxu0
  %3529 = vdwg.mxu0
  %3530 = vmatprep.subr.bf16.mxu0 0
  %3531 = vmatpush1.bf16.msra.mxu0 %v3263
  %3532 = vmatprep.subr.bf16.mxu0 0
  %3533 = vmatpush1.bf16.msra.mxu0 %v3262
  %3534 = vmatprep.subr.bf16.mxu0 0
  %3535 = vmatpush1.bf16.msra.mxu0 %v3261
  %3536 = vmatprep.subr.bf16.mxu0 0
  %3537 = vmatpush1.bf16.msra.mxu0 %v3260
  %3538 = vmatprep.subr.bf16.mxu0 0
  %3539 = vmatpush1.bf16.msra.mxu0 %v3259
  %3540 = vmatprep.subr.bf16.mxu0 0
  %3541 = vmatpush1.bf16.msra.mxu0 %v3258
  %3542 = vmatprep.subr.bf16.mxu0 0
  %3543 = vmatpush1.bf16.msra.mxu0 %v3257
  %3544 = vmatprep.subr.bf16.mxu0 0
  %3545 = vmatpush1.bf16.msra.mxu0 %v3256
  %3546 = vmatprep.subr.bf16.mxu0 0
  %3547 = vmatpush2.bf16.msra.mxu0 %v3271
  %3548 = vmatprep.subr.bf16.mxu0 0
  %3549 = vmatpush2.bf16.msra.mxu0 %v3270
  %3550 = vmatprep.subr.bf16.mxu0 0
  %3551 = vmatpush2.bf16.msra.mxu0 %v3269
  %3552 = vmatprep.subr.bf16.mxu0 0
  %3553 = vmatpush2.bf16.msra.mxu0 %v3268
  %3554 = vmatprep.subr.bf16.mxu0 0
  %3555 = vmatpush2.bf16.msra.mxu0 %v3267
  %3556 = vmatprep.subr.bf16.mxu0 0
  %3557 = vmatpush2.bf16.msra.mxu0 %v3266
  %3558 = vmatprep.subr.bf16.mxu0 0
  %3559 = vmatpush2.bf16.msra.mxu0 %v3265
  %3560 = vmatprep.subr.bf16.mxu0 0
  %3561 = vmatpush2.bf16.msra.mxu0 %v3264
  %3562 = vmatprep.mubr.bf16.mxu0 %v2929
  %3563 = vmatmul.mubr.bf16.gmra.mxu0 %v2928
  %v3564 = vpop.f32.mrf.mxu0
  %v3565 = vadd.f32 %v3460, %v3564
  %v3566 = vpop.f32.mrf.mxu0
  %v3567 = vpop.f32.mrf.mxu0
  %v3568 = vadd.f32 %v3463, %v3567
  %v3569 = vpop.f32.mrf.mxu0
  %3570 = vmatprep.mubr.bf16.mxu0 %v2935
  %3571 = vmatmul.mubr.bf16.gmra.mxu0 %v2934
  %v3572 = vpop.f32.mrf.mxu0
  %v3573 = vadd.f32 %v3468, %v3572
  %v3574 = vpop.f32.mrf.mxu0
  %v3575 = vpop.f32.mrf.mxu0
  %v3576 = vadd.f32 %v3471, %v3575
  %v3577 = vpop.f32.mrf.mxu0
  %3578 = vmatprep.mubr.bf16.mxu0 %v2941
  %3579 = vmatmul.mubr.bf16.gmra.mxu0 %v2940
  %v3580 = vpop.f32.mrf.mxu0
  %v3581 = vadd.f32 %v3476, %v3580
  %v3582 = vpop.f32.mrf.mxu0
  %v3583 = vpop.f32.mrf.mxu0
  %v3584 = vadd.f32 %v3479, %v3583
  %v3585 = vpop.f32.mrf.mxu0
  %3586 = vmatprep.mubr.bf16.mxu0 %v2947
  %3587 = vmatmul.mubr.bf16.gmra.mxu0 %v2946
  %v3588 = vpop.f32.mrf.mxu0
  %v3589 = vadd.f32 %v3484, %v3588
  %v3590 = vpop.f32.mrf.mxu0
  %v3591 = vpop.f32.mrf.mxu0
  %v3592 = vadd.f32 %v3487, %v3591
  %v3593 = vpop.f32.mrf.mxu0
  %3594 = vmatprep.mubr.bf16.mxu0 %v2953
  %3595 = vmatmul.mubr.bf16.gmra.mxu0 %v2952
  %v3596 = vpop.f32.mrf.mxu0
  %v3597 = vadd.f32 %v3492, %v3596
  %v3598 = vpop.f32.mrf.mxu0
  %v3599 = vpop.f32.mrf.mxu0
  %v3600 = vadd.f32 %v3495, %v3599
  %v3601 = vpop.f32.mrf.mxu0
  %3602 = vmatprep.mubr.bf16.mxu0 %v2959
  %3603 = vmatmul.mubr.bf16.gmra.mxu0 %v2958
  %v3604 = vpop.f32.mrf.mxu0
  %v3605 = vadd.f32 %v3500, %v3604
  %v3606 = vpop.f32.mrf.mxu0
  %v3607 = vpop.f32.mrf.mxu0
  %v3608 = vadd.f32 %v3503, %v3607
  %v3609 = vpop.f32.mrf.mxu0
  %3610 = vmatprep.mubr.bf16.mxu0 %v2965
  %3611 = vmatmul.mubr.bf16.gmra.mxu0 %v2964
  %v3612 = vpop.f32.mrf.mxu0
  %v3613 = vadd.f32 %v3508, %v3612
  %v3614 = vpop.f32.mrf.mxu0
  %v3615 = vpop.f32.mrf.mxu0
  %v3616 = vadd.f32 %v3511, %v3615
  %v3617 = vpop.f32.mrf.mxu0
  %3618 = vmatprep.mubr.bf16.mxu0 %v2971
  %3619 = vmatmul.mubr.bf16.gmra.mxu0 %v2970
  %v3620 = vpop.f32.mrf.mxu0
  %v3621 = vadd.f32 %v3516, %v3620
  %v3622 = vpop.f32.mrf.mxu0
  %v3623 = vpop.f32.mrf.mxu0
  %v3624 = vadd.f32 %v3519, %v3623
  %v3625 = vpop.f32.mrf.mxu0
  %3626 = vmatprep.mubr.bf16.mxu0 %v2977
  %3627 = vmatmul.mubr.bf16.gmra.mxu0 %v2976
  %v3628 = vpop.f32.mrf.mxu0
  %v3629 = vadd.f32 %v3524, %v3628
  %v3630 = vpop.f32.mrf.mxu0
  %v3631 = vpop.f32.mrf.mxu0
  %v3632 = vadd.f32 %v3527, %v3631
  %v3633 = vpop.f32.mrf.mxu0
  %3634 = vdwg.mxu0
  %v3635 = vpack.c.bf16 %v3568, %v3565
  %v3636 = vpack.c.bf16 %v3576, %v3573
  %v3637 = vpack.c.bf16 %v3584, %v3581
  %v3638 = vpack.c.bf16 %v3592, %v3589
  %v3639 = vpack.c.bf16 %v3600, %v3597
  %v3640 = vpack.c.bf16 %v3608, %v3605
  %v3641 = vpack.c.bf16 %v3616, %v3613
  %v3642 = vpack.c.bf16 %v3624, %v3621
  %v3643 = vpack.c.bf16 %v3632, %v3629
  %v3644 = vld [vmem:[%s10] sm:$0xff]
  %v3645 = vld [vmem:[%s10 + $0x8] sm:$0xff]
  %v3646 = vld [vmem:[%s10 + $0x10] sm:$0xff]
  %v3647 = vld [vmem:[%s10 + $0x18] sm:$0xff]
  %v3652 = vunpack.c.l.b16 %v3644
  %v3653 = vunpack.c.h.b16 %v3644
  %v3654 = vunpack.c.l.b16 %v3645
  %v3655 = vunpack.c.h.b16 %v3645
  %v3656 = vunpack.c.l.b16 %v3646
  %v3657 = vunpack.c.h.b16 %v3646
  %v3658 = vunpack.c.l.b16 %v3647
  %v3659 = vunpack.c.h.b16 %v3647
  %v3660 = vpack.c.b16 %v3654, %v3652
  %v3661 = vpack.c.b16 %v3655, %v3653
  %v3662 = vpack.c.b16 %v3658, %v3656
  %v3663 = vpack.c.b16 %v3659, %v3657
  %v3667 = vsel %vm629, %v3661, 0
  %v3670 = vsel %vm629, %v3663, 0
  %3672 = vmatprep.subr.bf16.mxu0 0
  %3673 = vmatpush1.bf16.msra.mxu0 %v3642
  %3674 = vmatprep.subr.bf16.mxu0 0
  %3675 = vmatpush1.bf16.msra.mxu0 %v3641
  %3676 = vmatprep.subr.bf16.mxu0 0
  %3677 = vmatpush1.bf16.msra.mxu0 %v3640
  %3678 = vmatprep.subr.bf16.mxu0 0
  %3679 = vmatpush1.bf16.msra.mxu0 %v3639
  %3680 = vmatprep.subr.bf16.mxu0 0
  %3681 = vmatpush1.bf16.msra.mxu0 %v3638
  %3682 = vmatprep.subr.bf16.mxu0 0
  %3683 = vmatpush1.bf16.msra.mxu0 %v3637
  %3684 = vmatprep.subr.bf16.mxu0 0
  %3685 = vmatpush1.bf16.msra.mxu0 %v3636
  %3686 = vmatprep.subr.bf16.mxu0 0
  %3687 = vmatpush1.bf16.msra.mxu0 %v3635
  %3688 = vmatprep.subr.bf16.mxu0 0
  %3689 = vmatpush2.bf16.msra.mxu0 0
  %3690 = vmatprep.subr.bf16.mxu0 0
  %3691 = vmatpush2.bf16.msra.mxu0 0
  %3692 = vmatprep.subr.bf16.mxu0 0
  %3693 = vmatpush2.bf16.msra.mxu0 0
  %3694 = vmatprep.subr.bf16.mxu0 0
  %3695 = vmatpush2.bf16.msra.mxu0 0
  %3696 = vmatprep.subr.bf16.mxu0 0
  %3697 = vmatpush2.bf16.msra.mxu0 0
  %3698 = vmatprep.subr.bf16.mxu0 0
  %3699 = vmatpush2.bf16.msra.mxu0 0
  %3700 = vmatprep.subr.bf16.mxu0 0
  %3701 = vmatpush2.bf16.msra.mxu0 0
  %3702 = vmatprep.subr.bf16.mxu0 0
  %3703 = vmatpush2.bf16.msra.mxu0 %v3643
  %3704 = vmatprep.mubr.bf16.mxu0 %v3667
  %3705 = vmatmul.mubr.bf16.gmra.mxu0 %v3660
  %v3706 = vpop.f32.mrf.mxu0
  %v3707 = vadd.f32 0.0, %v3706
  %v3708 = vpop.f32.mrf.mxu0
  %v3709 = vpop.f32.mrf.mxu0
  %v3710 = vadd.f32 0.0, %v3709
  %v3711 = vpop.f32.mrf.mxu0
  %3712 = vmatprep.mubr.bf16.mxu0 %v3670
  %3713 = vmatmul.mubr.bf16.gmra.mxu0 %v3662
  %v3714 = vpop.f32.mrf.mxu0
  %v3715 = vadd.f32 0.0, %v3714
  %v3716 = vpop.f32.mrf.mxu0
  %v3717 = vpop.f32.mrf.mxu0
  %v3718 = vadd.f32 0.0, %v3717
  %v3719 = vpop.f32.mrf.mxu0
  %3720 = vdwg.mxu0
  %v3721 = vld [vmem:[%s11] sm:$0xff]
  %v3722 = vld [vmem:[%s11 + $0x8] sm:$0xff]
  %v3723 = vld [vmem:[%s11 + $0x10] sm:$0xff]
  %v3724 = vld [vmem:[%s11 + $0x18] sm:$0xff]
  %3726 = vset.pattern.permute.xlu0 0
  %3727 = vperm.xlu0 %3726, %v3721
  %v3728 = vpop.permute.xlu0 %3727
  %3731 = vset.pattern.permute.xlu0 0
  %3732 = vperm.xlu0 %3731, %v3722
  %v3733 = vpop.permute.xlu0 %3732
  %3736 = vset.pattern.permute.xlu0 0
  %3737 = vperm.xlu0 %3736, %v3723
  %v3738 = vpop.permute.xlu0 %3737
  %3741 = vset.pattern.permute.xlu0 0
  %3742 = vperm.xlu0 %3741, %v3724
  %v3743 = vpop.permute.xlu0 %3742
  %v3745 = vmul.f32 %v3707, %v3728
  %v3746 = vmul.f32 %v3710, %v3733
  %v3747 = vmul.f32 %v3715, %v3738
  %v3748 = vmul.f32 %v3718, %v3743
  %v3749 = vld [vmem:[%s12] sm:$0xff]
  %v3750 = vld [vmem:[%s12 + $0x8] sm:$0xff]
  %v3751 = vld [vmem:[%s12 + $0x10] sm:$0xff]
  %v3752 = vld [vmem:[%s12 + $0x18] sm:$0xff]
  %3754 = vset.pattern.permute.xlu0 0
  %3755 = vperm.xlu0 %3754, %v3749
  %v3756 = vpop.permute.xlu0 %3755
  %3759 = vset.pattern.permute.xlu0 0
  %3760 = vperm.xlu0 %3759, %v3750
  %v3761 = vpop.permute.xlu0 %3760
  %3764 = vset.pattern.permute.xlu0 0
  %3765 = vperm.xlu0 %3764, %v3751
  %v3766 = vpop.permute.xlu0 %3765
  %3769 = vset.pattern.permute.xlu0 0
  %3770 = vperm.xlu0 %3769, %v3752
  %v3771 = vpop.permute.xlu0 %3770
  %v3773 = vadd.f32 %v3745, %v3756
  %v3774 = vadd.f32 %v3746, %v3761
  %v3775 = vadd.f32 %v3747, %v3766
  %v3776 = vadd.f32 %v3748, %v3771
  %v3777 = vmax.f32 %v3773, 0.0
  %v3778 = vmax.f32 %v3774, 0.0
  %v3779 = vmax.f32 %v3775, 0.0
  %v3780 = vmax.f32 %v3776, 0.0
  %v3781 = vld [vmem:[%s13] sm:$0xf]
  %v3782 = vld [vmem:[%s13 + $0x4] sm:$0xf]
  %v3783 = vld [vmem:[%s13 + $0x8] sm:$0xf]
  %v3784 = vld [vmem:[%s13 + $0xc] sm:$0xf]
  %v3789 = vunpack.c.l.b16 %v3781
  %v3790 = vunpack.c.l.b16 %v3782
  %v3791 = vunpack.c.l.b16 %v3783
  %v3792 = vunpack.c.l.b16 %v3784
  %v3793 = vpack.c.b16 %v3790, %v3789
  %v3794 = vpack.c.b16 %v3792, %v3791
  %v3796 = vsel %vm629, %v3793, 0
  %v3799 = vsel %vm629, %v3794, 0
  %3801 = vmatprep.subr.bf16.mxu0 0
  %3802 = vmatpush1.bf16.msra.mxu0 0
  %3803 = vmatprep.subr.bf16.mxu0 0
  %3804 = vmatpush1.bf16.msra.mxu0 0
  %3805 = vmatprep.subr.bf16.mxu0 0
  %3806 = vmatpush1.bf16.msra.mxu0 0
  %3807 = vmatprep.subr.bf16.mxu0 0
  %3808 = vmatpush1.bf16.msra.mxu0 0
  %3809 = vmatprep.subr.bf16.mxu0 0
  %3810 = vmatpush1.bf16.msra.mxu0 0
  %3811 = vmatprep.subr.bf16.mxu0 0
  %3812 = vmatpush1.bf16.msra.mxu0 0
  %3813 = vmatprep.subr.bf16.mxu0 0
  %3814 = vmatpush1.bf16.msra.mxu0 0
  %3815 = vmatprep.subr.bf16.mxu0 0
  %3816 = vmatpush1.bf16.msra.mxu0 %v3639
  %3817 = vmatprep.subr.bf16.mxu0 0
  %3818 = vmatpush2.bf16.msra.mxu0 0
  %3819 = vmatprep.subr.bf16.mxu0 0
  %3820 = vmatpush2.bf16.msra.mxu0 0
  %3821 = vmatprep.subr.bf16.mxu0 0
  %3822 = vmatpush2.bf16.msra.mxu0 0
  %3823 = vmatprep.subr.bf16.mxu0 0
  %3824 = vmatpush2.bf16.msra.mxu0 0
  %3825 = vmatprep.subr.bf16.mxu0 0
  %3826 = vmatpush2.bf16.msra.mxu0 0
  %3827 = vmatprep.subr.bf16.mxu0 0
  %3828 = vmatpush2.bf16.msra.mxu0 0
  %3829 = vmatprep.subr.bf16.mxu0 0
  %3830 = vmatpush2.bf16.msra.mxu0 0
  %3831 = vmatprep.subr.bf16.mxu0 0
  %3832 = vmatpush2.bf16.msra.mxu0 0
  %3833 = vmatprep.mubr.bf16.mxu0 0
  %3834 = vmatmul.mubr.bf16.gmra.mxu0 %v3796
  %v3835 = vpop.f32.mrf.mxu0
  %v3836 = vadd.f32 0.0, %v3835
  %v3837 = vpop.f32.mrf.mxu0
  %v3838 = vpop.f32.mrf.mxu0
  %v3839 = vadd.f32 0.0, %v3838
  %v3840 = vpop.f32.mrf.mxu0
  %3841 = vmatprep.mubr.bf16.mxu0 0
  %3842 = vmatmul.mubr.bf16.gmra.mxu0 %v3799
  %v3843 = vpop.f32.mrf.mxu0
  %v3844 = vadd.f32 0.0, %v3843
  %v3845 = vpop.f32.mrf.mxu0
  %v3846 = vpop.f32.mrf.mxu0
  %v3847 = vadd.f32 0.0, %v3846
  %v3848 = vpop.f32.mrf.mxu0
  %3849 = vdwg.mxu0
  %v3850 = vld [vmem:[%s14] sm:$0xff]
  %v3851 = vld [vmem:[%s14 + $0x8] sm:$0xff]
  %v3852 = vld [vmem:[%s14 + $0x10] sm:$0xff]
  %v3853 = vld [vmem:[%s14 + $0x18] sm:$0xff]
  %3855 = vset.pattern.permute.xlu0 0
  %3856 = vperm.xlu0 %3855, %v3850
  %v3857 = vpop.permute.xlu0 %3856
  %3860 = vset.pattern.permute.xlu0 0
  %3861 = vperm.xlu0 %3860, %v3851
  %v3862 = vpop.permute.xlu0 %3861
  %3865 = vset.pattern.permute.xlu0 0
  %3866 = vperm.xlu0 %3865, %v3852
  %v3867 = vpop.permute.xlu0 %3866
  %3870 = vset.pattern.permute.xlu0 0
  %3871 = vperm.xlu0 %3870, %v3853
  %v3872 = vpop.permute.xlu0 %3871
  %v3874 = vmul.f32 %v3836, %v3857
  %v3875 = vmul.f32 %v3839, %v3862
  %v3876 = vmul.f32 %v3844, %v3867
  %v3877 = vmul.f32 %v3847, %v3872
  %v3878 = vld [vmem:[%s15] sm:$0xff]
  %v3879 = vld [vmem:[%s15 + $0x8] sm:$0xff]
  %v3880 = vld [vmem:[%s15 + $0x10] sm:$0xff]
  %v3881 = vld [vmem:[%s15 + $0x18] sm:$0xff]
  %3883 = vset.pattern.permute.xlu0 0
  %3884 = vperm.xlu0 %3883, %v3878
  %v3885 = vpop.permute.xlu0 %3884
  %3888 = vset.pattern.permute.xlu0 0
  %3889 = vperm.xlu0 %3888, %v3879
  %v3890 = vpop.permute.xlu0 %3889
  %3893 = vset.pattern.permute.xlu0 0
  %3894 = vperm.xlu0 %3893, %v3880
  %v3895 = vpop.permute.xlu0 %3894
  %3898 = vset.pattern.permute.xlu0 0
  %3899 = vperm.xlu0 %3898, %v3881
  %v3900 = vpop.permute.xlu0 %3899
  %v3902 = vadd.f32 %v3874, %v3885
  %v3903 = vadd.f32 %v3875, %v3890
  %v3904 = vadd.f32 %v3876, %v3895
  %v3905 = vadd.f32 %v3877, %v3900
  %v3906 = vpack.c.bf16 %v3778, %v3777
  %v3907 = vpack.c.bf16 %v3780, %v3779
  %v3908 = vld [vmem:[%s23] sm:$0xff]
  %v3909 = vld [vmem:[%s23 + $0x8] sm:$0xff]
  %v3910 = vld [vmem:[%s23 + $0x10] sm:$0xff]
  %v3911 = vld [vmem:[%s23 + $0x18] sm:$0xff]
  %v3912 = vld [vmem:[%s23 + $0x20] sm:$0xff]
  %v3913 = vld [vmem:[%s23 + $0x28] sm:$0xff]
  %v3914 = vld [vmem:[%s23 + $0x30] sm:$0xff]
  %v3915 = vld [vmem:[%s23 + $0x38] sm:$0xff]
  %v3916 = vld [vmem:[%s23 + $0x40] sm:$0xff]
  %v3917 = vld [vmem:[%s23 + $0x48] sm:$0xff]
  %v3918 = vld [vmem:[%s23 + $0x50] sm:$0xff]
  %v3919 = vld [vmem:[%s23 + $0x58] sm:$0xff]
  %v3920 = vld [vmem:[%s23 + $0x60] sm:$0xff]
  %v3921 = vld [vmem:[%s23 + $0x68] sm:$0xff]
  %v3922 = vld [vmem:[%s23 + $0x70] sm:$0xff]
  %v3923 = vld [vmem:[%s23 + $0x78] sm:$0xff]
  %v3940 = vunpack.c.l.b16 %v3908
  %v3941 = vunpack.c.h.b16 %v3908
  %v3942 = vunpack.c.l.b16 %v3909
  %v3943 = vunpack.c.h.b16 %v3909
  %v3944 = vunpack.c.l.b16 %v3910
  %v3945 = vunpack.c.h.b16 %v3910
  %v3946 = vunpack.c.l.b16 %v3911
  %v3947 = vunpack.c.h.b16 %v3911
  %v3948 = vunpack.c.l.b16 %v3912
  %v3949 = vunpack.c.h.b16 %v3912
  %v3950 = vunpack.c.l.b16 %v3913
  %v3951 = vunpack.c.h.b16 %v3913
  %v3952 = vunpack.c.l.b16 %v3914
  %v3953 = vunpack.c.h.b16 %v3914
  %v3954 = vunpack.c.l.b16 %v3915
  %v3955 = vunpack.c.h.b16 %v3915
  %v3956 = vunpack.c.l.b16 %v3916
  %v3957 = vunpack.c.h.b16 %v3916
  %v3958 = vunpack.c.l.b16 %v3917
  %v3959 = vunpack.c.h.b16 %v3917
  %v3960 = vunpack.c.l.b16 %v3918
  %v3961 = vunpack.c.h.b16 %v3918
  %v3962 = vunpack.c.l.b16 %v3919
  %v3963 = vunpack.c.h.b16 %v3919
  %v3964 = vunpack.c.l.b16 %v3920
  %v3965 = vunpack.c.h.b16 %v3920
  %v3966 = vunpack.c.l.b16 %v3921
  %v3967 = vunpack.c.h.b16 %v3921
  %v3968 = vunpack.c.l.b16 %v3922
  %v3969 = vunpack.c.h.b16 %v3922
  %v3970 = vunpack.c.l.b16 %v3923
  %v3971 = vunpack.c.h.b16 %v3923
  %v3972 = vpack.c.b16 %v3942, %v3940
  %v3973 = vpack.c.b16 %v3943, %v3941
  %v3974 = vpack.c.b16 %v3946, %v3944
  %v3975 = vpack.c.b16 %v3947, %v3945
  %v3976 = vpack.c.b16 %v3950, %v3948
  %v3977 = vpack.c.b16 %v3951, %v3949
  %v3978 = vpack.c.b16 %v3954, %v3952
  %v3979 = vpack.c.b16 %v3955, %v3953
  %v3980 = vpack.c.b16 %v3958, %v3956
  %v3981 = vpack.c.b16 %v3959, %v3957
  %v3982 = vpack.c.b16 %v3962, %v3960
  %v3983 = vpack.c.b16 %v3963, %v3961
  %v3984 = vpack.c.b16 %v3966, %v3964
  %v3985 = vpack.c.b16 %v3967, %v3965
  %v3986 = vpack.c.b16 %v3970, %v3968
  %v3987 = vpack.c.b16 %v3971, %v3969
  %4004 = vmatprep.subr.bf16.mxu0 %v3987
  %4005 = vmatpush1.bf16.msra.mxu0 %v3986
  %4006 = vmatprep.subr.bf16.mxu0 %v3985
  %4007 = vmatpush1.bf16.msra.mxu0 %v3984
  %4008 = vmatprep.subr.bf16.mxu0 %v3983
  %4009 = vmatpush1.bf16.msra.mxu0 %v3982
  %4010 = vmatprep.subr.bf16.mxu0 %v3981
  %4011 = vmatpush1.bf16.msra.mxu0 %v3980
  %4012 = vmatprep.subr.bf16.mxu0 %v3979
  %4013 = vmatpush1.bf16.msra.mxu0 %v3978
  %4014 = vmatprep.subr.bf16.mxu0 %v3977
  %4015 = vmatpush1.bf16.msra.mxu0 %v3976
  %4016 = vmatprep.subr.bf16.mxu0 %v3975
  %4017 = vmatpush1.bf16.msra.mxu0 %v3974
  %4018 = vmatprep.subr.bf16.mxu0 %v3973
  %4019 = vmatpush1.bf16.msra.mxu0 %v3972
  %4020 = vmatprep.subr.bf16.mxu0 0
  %4021 = vmatpush2.bf16.msra.mxu0 0
  %4022 = vmatprep.subr.bf16.mxu0 0
  %4023 = vmatpush2.bf16.msra.mxu0 0
  %4024 = vmatprep.subr.bf16.mxu0 0
  %4025 = vmatpush2.bf16.msra.mxu0 0
  %4026 = vmatprep.subr.bf16.mxu0 0
  %4027 = vmatpush2.bf16.msra.mxu0 0
  %4028 = vmatprep.subr.bf16.mxu0 0
  %4029 = vmatpush2.bf16.msra.mxu0 0
  %4030 = vmatprep.subr.bf16.mxu0 0
  %4031 = vmatpush2.bf16.msra.mxu0 0
  %4032 = vmatprep.subr.bf16.mxu0 0
  %4033 = vmatpush2.bf16.msra.mxu0 0
  %4034 = vmatprep.subr.bf16.mxu0 0
  %4035 = vmatpush2.bf16.msra.mxu0 0
  %4036 = vmatprep.mubr.bf16.mxu0 0
  %4037 = vmatmul.mubr.bf16.gmra.mxu0 %v3906
  %v4038 = vpop.f32.mrf.mxu0
  %v4039 = vadd.f32 0.0, %v4038
  %v4040 = vpop.f32.mrf.mxu0
  %v4041 = vadd.f32 0.0, %v4040
  %v4042 = vpop.f32.mrf.mxu0
  %v4043 = vadd.f32 0.0, %v4042
  %v4044 = vpop.f32.mrf.mxu0
  %v4045 = vadd.f32 0.0, %v4044
  %4046 = vmatprep.mubr.bf16.mxu0 0
  %4047 = vmatmul.mubr.bf16.gmra.mxu0 %v3907
  %v4048 = vpop.f32.mrf.mxu0
  %v4049 = vadd.f32 0.0, %v4048
  %v4050 = vpop.f32.mrf.mxu0
  %v4051 = vadd.f32 0.0, %v4050
  %v4052 = vpop.f32.mrf.mxu0
  %v4053 = vadd.f32 0.0, %v4052
  %v4054 = vpop.f32.mrf.mxu0
  %v4055 = vadd.f32 0.0, %v4054
  %4056 = vdwg.mxu0
  %v4057 = vpack.c.bf16 %v4043, %v4039
  %v4058 = vpack.c.bf16 %v4045, %v4041
  %v4059 = vpack.c.bf16 %v4053, %v4049
  %v4060 = vpack.c.bf16 %v4055, %v4051
  %v4065 = vunpack.c.l.b16 %v4057
  %v4066 = vunpack.c.l.b16 %v4058
  %v4067 = vunpack.c.h.b16 %v4057
  %v4068 = vunpack.c.h.b16 %v4058
  %v4069 = vunpack.c.l.b16 %v4059
  %v4070 = vunpack.c.l.b16 %v4060
  %v4071 = vunpack.c.h.b16 %v4059
  %v4072 = vunpack.c.h.b16 %v4060
  %v4073 = vpack.c.b16 %v4066, %v4065
  %v4074 = vpack.c.b16 %v4068, %v4067
  %v4075 = vpack.c.b16 %v4070, %v4069
  %v4076 = vpack.c.b16 %v4072, %v4071
  %4081 = vst [vmem:[#allocation5 + $0x4] sm:$0xff] %v4073
  %4082 = vst [vmem:[#allocation5 + $0x14] sm:$0xff] %v4074
  %4083 = vst [vmem:[#allocation5 + $0x24] sm:$0xff] %v4075
  %4084 = vst [vmem:[#allocation5 + $0x34] sm:$0xff] %v4076
  %v4085 = vld [vmem:[#allocation5] sm:$0xff]
  %v4086 = vld [vmem:[#allocation5 + $0x8] sm:$0xf]
  %v4087 = vld [vmem:[#allocation5 + $0x10] sm:$0xff]
  %v4088 = vld [vmem:[#allocation5 + $0x18] sm:$0xf]
  %v4089 = vld [vmem:[#allocation5 + $0x20] sm:$0xff]
  %v4090 = vld [vmem:[#allocation5 + $0x28] sm:$0xf]
  %v4091 = vld [vmem:[#allocation5 + $0x30] sm:$0xff]
  %v4092 = vld [vmem:[#allocation5 + $0x38] sm:$0xf]
  %v4093 = vld [vmem:[#allocation5 + $0x4] sm:$0xff]
  %v4094 = vld [vmem:[#allocation5 + $0x14] sm:$0xff]
  %v4095 = vld [vmem:[#allocation5 + $0x24] sm:$0xff]
  %v4096 = vld [vmem:[#allocation5 + $0x34] sm:$0xff]
  %v4097 = vld [vmem:[#allocation5 + $0x4] sm:$0xff]
  %v4098 = vld [vmem:[#allocation5 + $0xc] sm:$0xf]
  %v4099 = vld [vmem:[#allocation5 + $0x14] sm:$0xff]
  %v4100 = vld [vmem:[#allocation5 + $0x1c] sm:$0xf]
  %v4101 = vld [vmem:[#allocation5 + $0x24] sm:$0xff]
  %v4102 = vld [vmem:[#allocation5 + $0x2c] sm:$0xf]
  %v4103 = vld [vmem:[#allocation5 + $0x34] sm:$0xff]
  %v4104 = vld [vmem:[#allocation5 + $0x3c] sm:$0xf]
  %v4113 = vunpack.c.l.b16 %v4085
  %v4114 = vunpack.c.h.b16 %v4085
  %v4115 = vunpack.c.l.b16 %v4086
  %v4116 = vunpack.c.l.b16 %v4087
  %v4117 = vunpack.c.h.b16 %v4087
  %v4118 = vunpack.c.l.b16 %v4088
  %v4119 = vunpack.c.l.b16 %v4089
  %v4120 = vunpack.c.h.b16 %v4089
  %v4121 = vunpack.c.l.b16 %v4090
  %v4122 = vunpack.c.l.b16 %v4091
  %v4123 = vunpack.c.h.b16 %v4091
  %v4124 = vunpack.c.l.b16 %v4092
  %v4125 = vpack.c.b16 %v4116, %v4113
  %v4126 = vpack.c.b16 %v4117, %v4114
  %v4127 = vpack.c.b16 %v4118, %v4115
  %v4128 = vpack.c.b16 %v4122, %v4119
  %v4129 = vpack.c.b16 %v4123, %v4120
  %v4130 = vpack.c.b16 %v4124, %v4121
  %4131 = vrot.lane.b32.xlu0 %v4125, 127
  %v4132 = vpop.permute.xlu0 %4131
  %4133 = vrot.lane.b32.xlu0 %v4126, 127
  %v4134 = vpop.permute.xlu0 %4133
  %4135 = vrot.lane.b32.xlu0 %v4127, 127
  %v4136 = vpop.permute.xlu0 %4135
  %4137 = vrot.lane.b32.xlu0 %v4128, 127
  %v4138 = vpop.permute.xlu0 %4137
  %4139 = vrot.lane.b32.xlu0 %v4129, 127
  %v4140 = vpop.permute.xlu0 %4139
  %4141 = vrot.lane.b32.xlu0 %v4130, 127
  %v4142 = vpop.permute.xlu0 %4141
  %v4143 = vsel %vm179, %v4132, %v4134
  %v4144 = vsel %vm179, %v4134, %v4136
  %v4145 = vsel %vm179, %v4138, %v4140
  %v4146 = vsel %vm179, %v4140, %v4142
  %4147 = vrot.lane.b32.xlu0 %v4125, 126
  %v4148 = vpop.permute.xlu0 %4147
  %4149 = vrot.lane.b32.xlu0 %v4126, 126
  %v4150 = vpop.permute.xlu0 %4149
  %4151 = vrot.lane.b32.xlu0 %v4127, 126
  %v4152 = vpop.permute.xlu0 %4151
  %4153 = vrot.lane.b32.xlu0 %v4128, 126
  %v4154 = vpop.permute.xlu0 %4153
  %4155 = vrot.lane.b32.xlu0 %v4129, 126
  %v4156 = vpop.permute.xlu0 %4155
  %4157 = vrot.lane.b32.xlu0 %v4130, 126
  %v4158 = vpop.permute.xlu0 %4157
  %v4159 = vsel %vm200, %v4148, %v4150
  %v4160 = vsel %vm200, %v4150, %v4152
  %v4161 = vsel %vm200, %v4154, %v4156
  %v4162 = vsel %vm200, %v4156, %v4158
  %4163 = vrot.lane.b32.xlu0 %v4125, 118
  %v4164 = vpop.permute.xlu0 %4163
  %4165 = vrot.lane.b32.xlu0 %v4126, 118
  %v4166 = vpop.permute.xlu0 %4165
  %4167 = vrot.lane.b32.xlu0 %v4127, 118
  %v4168 = vpop.permute.xlu0 %4167
  %4169 = vrot.lane.b32.xlu0 %v4128, 118
  %v4170 = vpop.permute.xlu0 %4169
  %4171 = vrot.lane.b32.xlu0 %v4129, 118
  %v4172 = vpop.permute.xlu0 %4171
  %4173 = vrot.lane.b32.xlu0 %v4130, 118
  %v4174 = vpop.permute.xlu0 %4173
  %vm4175 = vcmask 965632
  %v4176 = vsel %vm4175, %v4164, %v4166
  %v4177 = vsel %vm4175, %v4166, %v4168
  %v4178 = vsel %vm4175, %v4170, %v4172
  %v4179 = vsel %vm4175, %v4172, %v4174
  %v4184 = vunpack.c.l.b16 %v4093
  %v4185 = vunpack.c.h.b16 %v4093
  %v4186 = vunpack.c.l.b16 %v4094
  %v4187 = vunpack.c.h.b16 %v4094
  %v4188 = vunpack.c.l.b16 %v4095
  %v4189 = vunpack.c.h.b16 %v4095
  %v4190 = vunpack.c.l.b16 %v4096
  %v4191 = vunpack.c.h.b16 %v4096
  %v4192 = vpack.c.b16 %v4186, %v4184
  %v4193 = vpack.c.b16 %v4187, %v4185
  %v4194 = vpack.c.b16 %v4190, %v4188
  %v4195 = vpack.c.b16 %v4191, %v4189
  %4196 = vrot.lane.b32.xlu0 %v4192, 117
  %v4197 = vpop.permute.xlu0 %4196
  %4198 = vrot.lane.b32.xlu0 %v4193, 117
  %v4199 = vpop.permute.xlu0 %4198
  %4200 = vrot.lane.b32.xlu0 %v4194, 117
  %v4201 = vpop.permute.xlu0 %4200
  %4202 = vrot.lane.b32.xlu0 %v4195, 117
  %v4203 = vpop.permute.xlu0 %4202
  %vm4204 = vcmask 957440
  %v4205 = vsel %vm4204, %v4197, %v4199
  %v4206 = vsel %vm4204, %v4201, %v4203
  %v4215 = vunpack.c.l.b16 %v4097
  %v4216 = vunpack.c.h.b16 %v4097
  %v4217 = vunpack.c.l.b16 %v4098
  %v4218 = vunpack.c.l.b16 %v4099
  %v4219 = vunpack.c.h.b16 %v4099
  %v4220 = vunpack.c.l.b16 %v4100
  %v4221 = vunpack.c.l.b16 %v4101
  %v4222 = vunpack.c.h.b16 %v4101
  %v4223 = vunpack.c.l.b16 %v4102
  %v4224 = vunpack.c.l.b16 %v4103
  %v4225 = vunpack.c.h.b16 %v4103
  %v4226 = vunpack.c.l.b16 %v4104
  %v4227 = vpack.c.b16 %v4218, %v4215
  %v4228 = vpack.c.b16 %v4219, %v4216
  %v4229 = vpack.c.b16 %v4220, %v4217
  %v4230 = vpack.c.b16 %v4224, %v4221
  %v4231 = vpack.c.b16 %v4225, %v4222
  %v4232 = vpack.c.b16 %v4226, %v4223
  %4233 = vrot.lane.b32.xlu0 %v4227, 116
  %v4234 = vpop.permute.xlu0 %4233
  %4235 = vrot.lane.b32.xlu0 %v4228, 116
  %v4236 = vpop.permute.xlu0 %4235
  %4237 = vrot.lane.b32.xlu0 %v4229, 116
  %v4238 = vpop.permute.xlu0 %4237
  %4239 = vrot.lane.b32.xlu0 %v4230, 116
  %v4240 = vpop.permute.xlu0 %4239
  %4241 = vrot.lane.b32.xlu0 %v4231, 116
  %v4242 = vpop.permute.xlu0 %4241
  %4243 = vrot.lane.b32.xlu0 %v4232, 116
  %v4244 = vpop.permute.xlu0 %4243
  %vm4245 = vcmask 949248
  %v4246 = vsel %vm4245, %v4234, %v4236
  %v4247 = vsel %vm4245, %v4236, %v4238
  %v4248 = vsel %vm4245, %v4240, %v4242
  %v4249 = vsel %vm4245, %v4242, %v4244
  %4250 = vrot.lane.b32.xlu0 %v4227, 108
  %v4251 = vpop.permute.xlu0 %4250
  %4252 = vrot.lane.b32.xlu0 %v4228, 108
  %v4253 = vpop.permute.xlu0 %4252
  %4254 = vrot.lane.b32.xlu0 %v4229, 108
  %v4255 = vpop.permute.xlu0 %4254
  %4256 = vrot.lane.b32.xlu0 %v4230, 108
  %v4257 = vpop.permute.xlu0 %4256
  %4258 = vrot.lane.b32.xlu0 %v4231, 108
  %v4259 = vpop.permute.xlu0 %4258
  %4260 = vrot.lane.b32.xlu0 %v4232, 108
  %v4261 = vpop.permute.xlu0 %4260
  %v4262 = vsel %vm313, %v4251, %v4253
  %v4263 = vsel %vm313, %v4253, %v4255
  %v4264 = vsel %vm313, %v4257, %v4259
  %v4265 = vsel %vm313, %v4259, %v4261
  %4266 = vrot.lane.b32.xlu0 %v4227, 107
  %v4267 = vpop.permute.xlu0 %4266
  %4268 = vrot.lane.b32.xlu0 %v4228, 107
  %v4269 = vpop.permute.xlu0 %4268
  %4270 = vrot.lane.b32.xlu0 %v4229, 107
  %v4271 = vpop.permute.xlu0 %4270
  %4272 = vrot.lane.b32.xlu0 %v4230, 107
  %v4273 = vpop.permute.xlu0 %4272
  %4274 = vrot.lane.b32.xlu0 %v4231, 107
  %v4275 = vpop.permute.xlu0 %4274
  %4276 = vrot.lane.b32.xlu0 %v4232, 107
  %v4277 = vpop.permute.xlu0 %4276
  %vm4278 = vcmask 875520
  %v4279 = vsel %vm4278, %v4267, %v4269
  %v4280 = vsel %vm4278, %v4269, %v4271
  %v4281 = vsel %vm4278, %v4273, %v4275
  %v4282 = vsel %vm4278, %v4275, %v4277
  %4283 = vrot.lane.b32.xlu0 %v4227, 106
  %v4284 = vpop.permute.xlu0 %4283
  %4285 = vrot.lane.b32.xlu0 %v4228, 106
  %v4286 = vpop.permute.xlu0 %4285
  %4287 = vrot.lane.b32.xlu0 %v4229, 106
  %v4288 = vpop.permute.xlu0 %4287
  %4289 = vrot.lane.b32.xlu0 %v4230, 106
  %v4290 = vpop.permute.xlu0 %4289
  %4291 = vrot.lane.b32.xlu0 %v4231, 106
  %v4292 = vpop.permute.xlu0 %4291
  %4293 = vrot.lane.b32.xlu0 %v4232, 106
  %v4294 = vpop.permute.xlu0 %4293
  %vm4295 = vcmask 867328
  %v4296 = vsel %vm4295, %v4284, %v4286
  %v4297 = vsel %vm4295, %v4286, %v4288
  %v4298 = vsel %vm4295, %v4290, %v4292
  %v4299 = vsel %vm4295, %v4292, %v4294
  %v4300 = vld [vmem:[%s16] sm:$0xff]
  %v4301 = vld [vmem:[%s16 + $0x8] sm:$0xf]
  %v4302 = vld [vmem:[%s16 + $0xc] sm:$0xff]
  %v4303 = vld [vmem:[%s16 + $0x14] sm:$0xf]
  %v4304 = vld [vmem:[%s16 + $0x18] sm:$0xff]
  %v4305 = vld [vmem:[%s16 + $0x20] sm:$0xf]
  %v4306 = vld [vmem:[%s16 + $0x24] sm:$0xff]
  %v4307 = vld [vmem:[%s16 + $0x2c] sm:$0xf]
  %v4316 = vunpack.c.l.b16 %v4300
  %v4317 = vunpack.c.h.b16 %v4300
  %v4318 = vunpack.c.l.b16 %v4301
  %v4319 = vunpack.c.l.b16 %v4302
  %v4320 = vunpack.c.h.b16 %v4302
  %v4321 = vunpack.c.l.b16 %v4303
  %v4322 = vunpack.c.l.b16 %v4304
  %v4323 = vunpack.c.h.b16 %v4304
  %v4324 = vunpack.c.l.b16 %v4305
  %v4325 = vunpack.c.l.b16 %v4306
  %v4326 = vunpack.c.h.b16 %v4306
  %v4327 = vunpack.c.l.b16 %v4307
  %v4328 = vpack.c.b16 %v4319, %v4316
  %v4329 = vpack.c.b16 %v4320, %v4317
  %v4330 = vpack.c.b16 %v4321, %v4318
  %v4331 = vpack.c.b16 %v4325, %v4322
  %v4332 = vpack.c.b16 %v4326, %v4323
  %v4333 = vpack.c.b16 %v4327, %v4324
  %4338 = vrot.lane.b32.xlu0 %v4125, 11
  %v4339 = vpop.permute.xlu0 %4338
  %4340 = vrot.lane.b32.xlu0 %v4126, 11
  %v4341 = vpop.permute.xlu0 %4340
  %4342 = vrot.lane.b32.xlu0 %v4127, 11
  %v4343 = vpop.permute.xlu0 %4342
  %4344 = vrot.lane.b32.xlu0 %v4128, 11
  %v4345 = vpop.permute.xlu0 %4344
  %4346 = vrot.lane.b32.xlu0 %v4129, 11
  %v4347 = vpop.permute.xlu0 %4346
  %4348 = vrot.lane.b32.xlu0 %v4130, 11
  %v4349 = vpop.permute.xlu0 %4348
  %4350 = vrot.lane.b32.xlu0 %v4143, 11
  %v4351 = vpop.permute.xlu0 %4350
  %4352 = vrot.lane.b32.xlu0 %v4144, 11
  %v4353 = vpop.permute.xlu0 %4352
  %4354 = vrot.lane.b32.xlu0 %v4136, 11
  %v4355 = vpop.permute.xlu0 %4354
  %4356 = vrot.lane.b32.xlu0 %v4145, 11
  %v4357 = vpop.permute.xlu0 %4356
  %4358 = vrot.lane.b32.xlu0 %v4146, 11
  %v4359 = vpop.permute.xlu0 %4358
  %4360 = vrot.lane.b32.xlu0 %v4142, 11
  %v4361 = vpop.permute.xlu0 %4360
  %4362 = vrot.lane.b32.xlu0 %v4159, 11
  %v4363 = vpop.permute.xlu0 %4362
  %4364 = vrot.lane.b32.xlu0 %v4160, 11
  %v4365 = vpop.permute.xlu0 %4364
  %4366 = vrot.lane.b32.xlu0 %v4152, 11
  %v4367 = vpop.permute.xlu0 %4366
  %4368 = vrot.lane.b32.xlu0 %v4161, 11
  %v4369 = vpop.permute.xlu0 %4368
  %4370 = vrot.lane.b32.xlu0 %v4162, 11
  %v4371 = vpop.permute.xlu0 %4370
  %4372 = vrot.lane.b32.xlu0 %v4158, 11
  %v4373 = vpop.permute.xlu0 %4372
  %4374 = vrot.lane.b32.xlu0 %v4176, 11
  %v4375 = vpop.permute.xlu0 %4374
  %4376 = vrot.lane.b32.xlu0 %v4177, 11
  %v4377 = vpop.permute.xlu0 %4376
  %4378 = vrot.lane.b32.xlu0 %v4168, 11
  %v4379 = vpop.permute.xlu0 %4378
  %4380 = vrot.lane.b32.xlu0 %v4178, 11
  %v4381 = vpop.permute.xlu0 %4380
  %4382 = vrot.lane.b32.xlu0 %v4179, 11
  %v4383 = vpop.permute.xlu0 %4382
  %4384 = vrot.lane.b32.xlu0 %v4174, 11
  %v4385 = vpop.permute.xlu0 %4384
  %4386 = vrot.lane.b32.xlu0 %v4197, 11
  %v4387 = vpop.permute.xlu0 %4386
  %4388 = vrot.lane.b32.xlu0 %v4205, 11
  %v4389 = vpop.permute.xlu0 %4388
  %4390 = vrot.lane.b32.xlu0 %v4199, 11
  %v4391 = vpop.permute.xlu0 %4390
  %4392 = vrot.lane.b32.xlu0 %v4201, 11
  %v4393 = vpop.permute.xlu0 %4392
  %4394 = vrot.lane.b32.xlu0 %v4206, 11
  %v4395 = vpop.permute.xlu0 %4394
  %4396 = vrot.lane.b32.xlu0 %v4203, 11
  %v4397 = vpop.permute.xlu0 %4396
  %4398 = vrot.lane.b32.xlu0 %v4234, 11
  %v4399 = vpop.permute.xlu0 %4398
  %4400 = vrot.lane.b32.xlu0 %v4246, 11
  %v4401 = vpop.permute.xlu0 %4400
  %4402 = vrot.lane.b32.xlu0 %v4247, 11
  %v4403 = vpop.permute.xlu0 %4402
  %4404 = vrot.lane.b32.xlu0 %v4240, 11
  %v4405 = vpop.permute.xlu0 %4404
  %4406 = vrot.lane.b32.xlu0 %v4248, 11
  %v4407 = vpop.permute.xlu0 %4406
  %4408 = vrot.lane.b32.xlu0 %v4249, 11
  %v4409 = vpop.permute.xlu0 %4408
  %4410 = vrot.lane.b32.xlu0 %v4251, 11
  %v4411 = vpop.permute.xlu0 %4410
  %4412 = vrot.lane.b32.xlu0 %v4262, 11
  %v4413 = vpop.permute.xlu0 %4412
  %4414 = vrot.lane.b32.xlu0 %v4263, 11
  %v4415 = vpop.permute.xlu0 %4414
  %4416 = vrot.lane.b32.xlu0 %v4257, 11
  %v4417 = vpop.permute.xlu0 %4416
  %4418 = vrot.lane.b32.xlu0 %v4264, 11
  %v4419 = vpop.permute.xlu0 %4418
  %4420 = vrot.lane.b32.xlu0 %v4265, 11
  %v4421 = vpop.permute.xlu0 %4420
  %4422 = vrot.lane.b32.xlu0 %v4267, 11
  %v4423 = vpop.permute.xlu0 %4422
  %4424 = vrot.lane.b32.xlu0 %v4279, 11
  %v4425 = vpop.permute.xlu0 %4424
  %4426 = vrot.lane.b32.xlu0 %v4280, 11
  %v4427 = vpop.permute.xlu0 %4426
  %4428 = vrot.lane.b32.xlu0 %v4273, 11
  %v4429 = vpop.permute.xlu0 %4428
  %4430 = vrot.lane.b32.xlu0 %v4281, 11
  %v4431 = vpop.permute.xlu0 %4430
  %4432 = vrot.lane.b32.xlu0 %v4282, 11
  %v4433 = vpop.permute.xlu0 %4432
  %4434 = vrot.lane.b32.xlu0 %v4284, 11
  %v4435 = vpop.permute.xlu0 %4434
  %4436 = vrot.lane.b32.xlu0 %v4296, 11
  %v4437 = vpop.permute.xlu0 %4436
  %4438 = vrot.lane.b32.xlu0 %v4297, 11
  %v4439 = vpop.permute.xlu0 %4438
  %4440 = vrot.lane.b32.xlu0 %v4290, 11
  %v4441 = vpop.permute.xlu0 %4440
  %4442 = vrot.lane.b32.xlu0 %v4298, 11
  %v4443 = vpop.permute.xlu0 %4442
  %4444 = vrot.lane.b32.xlu0 %v4299, 11
  %v4445 = vpop.permute.xlu0 %4444
  %vm4446 = vcmask 89088
  %v4447 = vsel %vm4446, %v4339, %v4341
  %v4448 = vsel %vm4446, %v4341, %v4343
  %v4449 = vsel %vm4446, %v4345, %v4347
  %v4450 = vsel %vm4446, %v4347, %v4349
  %v4451 = vsel %vm4446, %v4351, %v4353
  %v4452 = vsel %vm4446, %v4353, %v4355
  %v4453 = vsel %vm4446, %v4357, %v4359
  %v4454 = vsel %vm4446, %v4359, %v4361
  %v4455 = vsel %vm4446, %v4363, %v4365
  %v4456 = vsel %vm4446, %v4365, %v4367
  %v4457 = vsel %vm4446, %v4369, %v4371
  %v4458 = vsel %vm4446, %v4371, %v4373
  %v4459 = vsel %vm4446, %v4375, %v4377
  %v4460 = vsel %vm4446, %v4377, %v4379
  %v4461 = vsel %vm4446, %v4381, %v4383
  %v4462 = vsel %vm4446, %v4383, %v4385
  %v4463 = vsel %vm4446, %v4387, %v4389
  %v4464 = vsel %vm4446, %v4389, %v4391
  %v4465 = vsel %vm4446, %v4393, %v4395
  %v4466 = vsel %vm4446, %v4395, %v4397
  %v4467 = vsel %vm4446, %v4399, %v4401
  %v4468 = vsel %vm4446, %v4401, %v4403
  %v4469 = vsel %vm4446, %v4405, %v4407
  %v4470 = vsel %vm4446, %v4407, %v4409
  %v4471 = vsel %vm4446, %v4411, %v4413
  %v4472 = vsel %vm4446, %v4413, %v4415
  %v4473 = vsel %vm4446, %v4417, %v4419
  %v4474 = vsel %vm4446, %v4419, %v4421
  %v4475 = vsel %vm4446, %v4423, %v4425
  %v4476 = vsel %vm4446, %v4425, %v4427
  %v4477 = vsel %vm4446, %v4429, %v4431
  %v4478 = vsel %vm4446, %v4431, %v4433
  %v4479 = vsel %vm4446, %v4435, %v4437
  %v4480 = vsel %vm4446, %v4437, %v4439
  %v4481 = vsel %vm4446, %v4441, %v4443
  %v4482 = vsel %vm4446, %v4443, %v4445
  %vm4519 = vcmask 261120
  %v4521 = vsel %vm4519, %v4330, 0
  %v4524 = vsel %vm4519, %v4333, 0
  %4526 = vmatprep.subr.bf16.mxu0 %v4462
  %4527 = vmatpush1.bf16.msra.mxu0 %v4461
  %4528 = vmatprep.subr.bf16.mxu0 %v4460
  %4529 = vmatpush1.bf16.msra.mxu0 %v4459
  %4530 = vmatprep.subr.bf16.mxu0 %v4458
  %4531 = vmatpush1.bf16.msra.mxu0 %v4457
  %4532 = vmatprep.subr.bf16.mxu0 %v4456
  %4533 = vmatpush1.bf16.msra.mxu0 %v4455
  %4534 = vmatprep.subr.bf16.mxu0 %v4454
  %4535 = vmatpush1.bf16.msra.mxu0 %v4453
  %4536 = vmatprep.subr.bf16.mxu0 %v4452
  %4537 = vmatpush1.bf16.msra.mxu0 %v4451
  %4538 = vmatprep.subr.bf16.mxu0 %v4450
  %4539 = vmatpush1.bf16.msra.mxu0 %v4449
  %4540 = vmatprep.subr.bf16.mxu0 %v4448
  %4541 = vmatpush1.bf16.msra.mxu0 %v4447
  %4542 = vmatprep.subr.bf16.mxu0 %v4478
  %4543 = vmatpush2.bf16.msra.mxu0 %v4477
  %4544 = vmatprep.subr.bf16.mxu0 %v4476
  %4545 = vmatpush2.bf16.msra.mxu0 %v4475
  %4546 = vmatprep.subr.bf16.mxu0 %v4474
  %4547 = vmatpush2.bf16.msra.mxu0 %v4473
  %4548 = vmatprep.subr.bf16.mxu0 %v4472
  %4549 = vmatpush2.bf16.msra.mxu0 %v4471
  %4550 = vmatprep.subr.bf16.mxu0 %v4470
  %4551 = vmatpush2.bf16.msra.mxu0 %v4469
  %4552 = vmatprep.subr.bf16.mxu0 %v4468
  %4553 = vmatpush2.bf16.msra.mxu0 %v4467
  %4554 = vmatprep.subr.bf16.mxu0 %v4466
  %4555 = vmatpush2.bf16.msra.mxu0 %v4465
  %4556 = vmatprep.subr.bf16.mxu0 %v4464
  %4557 = vmatpush2.bf16.msra.mxu0 %v4463
  %4558 = vmatprep.mubr.bf16.mxu0 %v4329
  %4559 = vmatmul.mubr.bf16.gmra.mxu0 %v4328
  %v4560 = vpop.f32.mrf.mxu0
  %v4561 = vadd.f32 0.0, %v4560
  %v4562 = vpop.f32.mrf.mxu0
  %v4563 = vadd.f32 0.0, %v4562
  %v4564 = vpop.f32.mrf.mxu0
  %v4565 = vadd.f32 0.0, %v4564
  %v4566 = vpop.f32.mrf.mxu0
  %v4567 = vadd.f32 0.0, %v4566
  %4568 = vmatprep.mubr.bf16.mxu0 %v4332
  %4569 = vmatmul.mubr.bf16.gmra.mxu0 %v4331
  %v4570 = vpop.f32.mrf.mxu0
  %v4571 = vadd.f32 0.0, %v4570
  %v4572 = vpop.f32.mrf.mxu0
  %v4573 = vadd.f32 0.0, %v4572
  %v4574 = vpop.f32.mrf.mxu0
  %v4575 = vadd.f32 0.0, %v4574
  %v4576 = vpop.f32.mrf.mxu0
  %v4577 = vadd.f32 0.0, %v4576
  %4578 = vdwg.mxu0
  %4579 = vmatprep.subr.bf16.mxu0 0
  %4580 = vmatpush1.bf16.msra.mxu0 0
  %4581 = vmatprep.subr.bf16.mxu0 0
  %4582 = vmatpush1.bf16.msra.mxu0 0
  %4583 = vmatprep.subr.bf16.mxu0 0
  %4584 = vmatpush1.bf16.msra.mxu0 0
  %4585 = vmatprep.subr.bf16.mxu0 0
  %4586 = vmatpush1.bf16.msra.mxu0 0
  %4587 = vmatprep.subr.bf16.mxu0 0
  %4588 = vmatpush1.bf16.msra.mxu0 0
  %4589 = vmatprep.subr.bf16.mxu0 0
  %4590 = vmatpush1.bf16.msra.mxu0 0
  %4591 = vmatprep.subr.bf16.mxu0 %v4482
  %4592 = vmatpush1.bf16.msra.mxu0 %v4481
  %4593 = vmatprep.subr.bf16.mxu0 %v4480
  %4594 = vmatpush1.bf16.msra.mxu0 %v4479
  %4595 = vmatprep.subr.bf16.mxu0 0
  %4596 = vmatpush2.bf16.msra.mxu0 0
  %4597 = vmatprep.subr.bf16.mxu0 0
  %4598 = vmatpush2.bf16.msra.mxu0 0
  %4599 = vmatprep.subr.bf16.mxu0 0
  %4600 = vmatpush2.bf16.msra.mxu0 0
  %4601 = vmatprep.subr.bf16.mxu0 0
  %4602 = vmatpush2.bf16.msra.mxu0 0
  %4603 = vmatprep.subr.bf16.mxu0 0
  %4604 = vmatpush2.bf16.msra.mxu0 0
  %4605 = vmatprep.subr.bf16.mxu0 0
  %4606 = vmatpush2.bf16.msra.mxu0 0
  %4607 = vmatprep.subr.bf16.mxu0 0
  %4608 = vmatpush2.bf16.msra.mxu0 0
  %4609 = vmatprep.subr.bf16.mxu0 0
  %4610 = vmatpush2.bf16.msra.mxu0 0
  %4611 = vmatprep.mubr.bf16.mxu0 0
  %4612 = vmatmul.mubr.bf16.gmra.mxu0 %v4521
  %v4613 = vpop.f32.mrf.mxu0
  %v4614 = vadd.f32 %v4561, %v4613
  %v4615 = vpop.f32.mrf.mxu0
  %v4616 = vadd.f32 %v4563, %v4615
  %v4617 = vpop.f32.mrf.mxu0
  %v4618 = vadd.f32 %v4565, %v4617
  %v4619 = vpop.f32.mrf.mxu0
  %v4620 = vadd.f32 %v4567, %v4619
  %4621 = vmatprep.mubr.bf16.mxu0 0
  %4622 = vmatmul.mubr.bf16.gmra.mxu0 %v4524
  %v4623 = vpop.f32.mrf.mxu0
  %v4624 = vadd.f32 %v4571, %v4623
  %v4625 = vpop.f32.mrf.mxu0
  %v4626 = vadd.f32 %v4573, %v4625
  %v4627 = vpop.f32.mrf.mxu0
  %v4628 = vadd.f32 %v4575, %v4627
  %v4629 = vpop.f32.mrf.mxu0
  %v4630 = vadd.f32 %v4577, %v4629
  %4631 = vdwg.mxu0
  %v4632 = vld [vmem:[%s17] sm:$0xff]
  %v4633 = vld [vmem:[%s17 + $0x8] sm:$0xff]
  %v4634 = vld [vmem:[%s17 + $0x10] sm:$0xff]
  %v4635 = vld [vmem:[%s17 + $0x18] sm:$0xff]
  %4637 = vset.pattern.permute.xlu0 0
  %4638 = vperm.xlu0 %4637, %v4632
  %v4639 = vpop.permute.xlu0 %4638
  %4642 = vset.pattern.permute.xlu0 0
  %4643 = vperm.xlu0 %4642, %v4633
  %v4644 = vpop.permute.xlu0 %4643
  %4647 = vset.pattern.permute.xlu0 0
  %4648 = vperm.xlu0 %4647, %v4634
  %v4649 = vpop.permute.xlu0 %4648
  %4652 = vset.pattern.permute.xlu0 0
  %4653 = vperm.xlu0 %4652, %v4635
  %v4654 = vpop.permute.xlu0 %4653
  %v4656 = vmul.f32 %v4614, %v4639
  %v4657 = vmul.f32 %v4616, %v4639
  %v4658 = vmul.f32 %v4618, %v4644
  %v4659 = vmul.f32 %v4620, %v4644
  %v4660 = vmul.f32 %v4624, %v4649
  %v4661 = vmul.f32 %v4626, %v4649
  %v4662 = vmul.f32 %v4628, %v4654
  %v4663 = vmul.f32 %v4630, %v4654
  %v4664 = vld [vmem:[%s18] sm:$0xff]
  %v4665 = vld [vmem:[%s18 + $0x8] sm:$0xff]
  %v4666 = vld [vmem:[%s18 + $0x10] sm:$0xff]
  %v4667 = vld [vmem:[%s18 + $0x18] sm:$0xff]
  %4669 = vset.pattern.permute.xlu0 0
  %4670 = vperm.xlu0 %4669, %v4664
  %v4671 = vpop.permute.xlu0 %4670
  %4674 = vset.pattern.permute.xlu0 0
  %4675 = vperm.xlu0 %4674, %v4665
  %v4676 = vpop.permute.xlu0 %4675
  %4679 = vset.pattern.permute.xlu0 0
  %4680 = vperm.xlu0 %4679, %v4666
  %v4681 = vpop.permute.xlu0 %4680
  %4684 = vset.pattern.permute.xlu0 0
  %4685 = vperm.xlu0 %4684, %v4667
  %v4686 = vpop.permute.xlu0 %4685
  %v4688 = vadd.f32 %v4656, %v4671
  %v4689 = vadd.f32 %v4657, %v4671
  %v4690 = vadd.f32 %v4658, %v4676
  %v4691 = vadd.f32 %v4659, %v4676
  %v4692 = vadd.f32 %v4660, %v4681
  %v4693 = vadd.f32 %v4661, %v4681
  %v4694 = vadd.f32 %v4662, %v4686
  %v4695 = vadd.f32 %v4663, %v4686
  %v4696 = vpack.c.bf16 %v3903, %v3902
  %v4697 = vpack.c.bf16 %v3905, %v3904
  %v4698 = vld [vmem:[%s23] sm:$0xff]
  %v4699 = vld [vmem:[%s23 + $0x8] sm:$0xff]
  %v4700 = vld [vmem:[%s23 + $0x10] sm:$0xff]
  %v4701 = vld [vmem:[%s23 + $0x18] sm:$0xff]
  %v4702 = vld [vmem:[%s23 + $0x20] sm:$0xff]
  %v4703 = vld [vmem:[%s23 + $0x28] sm:$0xff]
  %v4704 = vld [vmem:[%s23 + $0x30] sm:$0xff]
  %v4705 = vld [vmem:[%s23 + $0x38] sm:$0xff]
  %v4706 = vld [vmem:[%s23 + $0x40] sm:$0xff]
  %v4707 = vld [vmem:[%s23 + $0x48] sm:$0xff]
  %v4708 = vld [vmem:[%s23 + $0x50] sm:$0xff]
  %v4709 = vld [vmem:[%s23 + $0x58] sm:$0xff]
  %v4710 = vld [vmem:[%s23 + $0x60] sm:$0xff]
  %v4711 = vld [vmem:[%s23 + $0x68] sm:$0xff]
  %v4712 = vld [vmem:[%s23 + $0x70] sm:$0xff]
  %v4713 = vld [vmem:[%s23 + $0x78] sm:$0xff]
  %v4730 = vunpack.c.l.b16 %v4698
  %v4731 = vunpack.c.h.b16 %v4698
  %v4732 = vunpack.c.l.b16 %v4699
  %v4733 = vunpack.c.h.b16 %v4699
  %v4734 = vunpack.c.l.b16 %v4700
  %v4735 = vunpack.c.h.b16 %v4700
  %v4736 = vunpack.c.l.b16 %v4701
  %v4737 = vunpack.c.h.b16 %v4701
  %v4738 = vunpack.c.l.b16 %v4702
  %v4739 = vunpack.c.h.b16 %v4702
  %v4740 = vunpack.c.l.b16 %v4703
  %v4741 = vunpack.c.h.b16 %v4703
  %v4742 = vunpack.c.l.b16 %v4704
  %v4743 = vunpack.c.h.b16 %v4704
  %v4744 = vunpack.c.l.b16 %v4705
  %v4745 = vunpack.c.h.b16 %v4705
  %v4746 = vunpack.c.l.b16 %v4706
  %v4747 = vunpack.c.h.b16 %v4706
  %v4748 = vunpack.c.l.b16 %v4707
  %v4749 = vunpack.c.h.b16 %v4707
  %v4750 = vunpack.c.l.b16 %v4708
  %v4751 = vunpack.c.h.b16 %v4708
  %v4752 = vunpack.c.l.b16 %v4709
  %v4753 = vunpack.c.h.b16 %v4709
  %v4754 = vunpack.c.l.b16 %v4710
  %v4755 = vunpack.c.h.b16 %v4710
  %v4756 = vunpack.c.l.b16 %v4711
  %v4757 = vunpack.c.h.b16 %v4711
  %v4758 = vunpack.c.l.b16 %v4712
  %v4759 = vunpack.c.h.b16 %v4712
  %v4760 = vunpack.c.l.b16 %v4713
  %v4761 = vunpack.c.h.b16 %v4713
  %v4762 = vpack.c.b16 %v4732, %v4730
  %v4763 = vpack.c.b16 %v4733, %v4731
  %v4764 = vpack.c.b16 %v4736, %v4734
  %v4765 = vpack.c.b16 %v4737, %v4735
  %v4766 = vpack.c.b16 %v4740, %v4738
  %v4767 = vpack.c.b16 %v4741, %v4739
  %v4768 = vpack.c.b16 %v4744, %v4742
  %v4769 = vpack.c.b16 %v4745, %v4743
  %v4770 = vpack.c.b16 %v4748, %v4746
  %v4771 = vpack.c.b16 %v4749, %v4747
  %v4772 = vpack.c.b16 %v4752, %v4750
  %v4773 = vpack.c.b16 %v4753, %v4751
  %v4774 = vpack.c.b16 %v4756, %v4754
  %v4775 = vpack.c.b16 %v4757, %v4755
  %v4776 = vpack.c.b16 %v4760, %v4758
  %v4777 = vpack.c.b16 %v4761, %v4759
  %4794 = vmatprep.subr.bf16.mxu0 %v4777
  %4795 = vmatpush1.bf16.msra.mxu0 %v4776
  %4796 = vmatprep.subr.bf16.mxu0 %v4775
  %4797 = vmatpush1.bf16.msra.mxu0 %v4774
  %4798 = vmatprep.subr.bf16.mxu0 %v4773
  %4799 = vmatpush1.bf16.msra.mxu0 %v4772
  %4800 = vmatprep.subr.bf16.mxu0 %v4771
  %4801 = vmatpush1.bf16.msra.mxu0 %v4770
  %4802 = vmatprep.subr.bf16.mxu0 %v4769
  %4803 = vmatpush1.bf16.msra.mxu0 %v4768
  %4804 = vmatprep.subr.bf16.mxu0 %v4767
  %4805 = vmatpush1.bf16.msra.mxu0 %v4766
  %4806 = vmatprep.subr.bf16.mxu0 %v4765
  %4807 = vmatpush1.bf16.msra.mxu0 %v4764
  %4808 = vmatprep.subr.bf16.mxu0 %v4763
  %4809 = vmatpush1.bf16.msra.mxu0 %v4762
  %4810 = vmatprep.subr.bf16.mxu0 0
  %4811 = vmatpush2.bf16.msra.mxu0 0
  %4812 = vmatprep.subr.bf16.mxu0 0
  %4813 = vmatpush2.bf16.msra.mxu0 0
  %4814 = vmatprep.subr.bf16.mxu0 0
  %4815 = vmatpush2.bf16.msra.mxu0 0
  %4816 = vmatprep.subr.bf16.mxu0 0
  %4817 = vmatpush2.bf16.msra.mxu0 0
  %4818 = vmatprep.subr.bf16.mxu0 0
  %4819 = vmatpush2.bf16.msra.mxu0 0
  %4820 = vmatprep.subr.bf16.mxu0 0
  %4821 = vmatpush2.bf16.msra.mxu0 0
  %4822 = vmatprep.subr.bf16.mxu0 0
  %4823 = vmatpush2.bf16.msra.mxu0 0
  %4824 = vmatprep.subr.bf16.mxu0 0
  %4825 = vmatpush2.bf16.msra.mxu0 0
  %4826 = vmatprep.mubr.bf16.mxu0 0
  %4827 = vmatmul.mubr.bf16.gmra.mxu0 %v4696
  %v4828 = vpop.f32.mrf.mxu0
  %v4829 = vadd.f32 0.0, %v4828
  %v4830 = vpop.f32.mrf.mxu0
  %v4831 = vadd.f32 0.0, %v4830
  %v4832 = vpop.f32.mrf.mxu0
  %v4833 = vadd.f32 0.0, %v4832
  %v4834 = vpop.f32.mrf.mxu0
  %v4835 = vadd.f32 0.0, %v4834
  %4836 = vmatprep.mubr.bf16.mxu0 0
  %4837 = vmatmul.mubr.bf16.gmra.mxu0 %v4697
  %v4838 = vpop.f32.mrf.mxu0
  %v4839 = vadd.f32 0.0, %v4838
  %v4840 = vpop.f32.mrf.mxu0
  %v4841 = vadd.f32 0.0, %v4840
  %v4842 = vpop.f32.mrf.mxu0
  %v4843 = vadd.f32 0.0, %v4842
  %v4844 = vpop.f32.mrf.mxu0
  %v4845 = vadd.f32 0.0, %v4844
  %4846 = vdwg.mxu0
  %v4847 = vadd.f32 %v4688, %v4829
  %v4848 = vadd.f32 %v4689, %v4831
  %v4849 = vadd.f32 %v4690, %v4833
  %v4850 = vadd.f32 %v4691, %v4835
  %v4851 = vadd.f32 %v4692, %v4839
  %v4852 = vadd.f32 %v4693, %v4841
  %v4853 = vadd.f32 %v4694, %v4843
  %v4854 = vadd.f32 %v4695, %v4845
  %v4855 = vmax.f32 %v4847, 0.0
  %v4856 = vmax.f32 %v4848, 0.0
  %v4857 = vmax.f32 %v4849, 0.0
  %v4858 = vmax.f32 %v4850, 0.0
  %v4859 = vmax.f32 %v4851, 0.0
  %v4860 = vmax.f32 %v4852, 0.0
  %v4861 = vmax.f32 %v4853, 0.0
  %v4862 = vmax.f32 %v4854, 0.0
  %v4863 = vpack.c.bf16 %v4857, %v4855
  %v4864 = vpack.c.bf16 %v4858, %v4856
  %v4865 = vpack.c.bf16 %v4861, %v4859
  %v4866 = vpack.c.bf16 %v4862, %v4860
  %v4867 = vld [vmem:[%s24] sm:$0xf]
  %v4868 = vld [vmem:[%s24 + $0x4] sm:$0xf]
  %v4869 = vld [vmem:[%s24 + $0x8] sm:$0xf]
  %v4870 = vld [vmem:[%s24 + $0xc] sm:$0xf]
  %v4871 = vld [vmem:[%s24 + $0x10] sm:$0xf]
  %v4872 = vld [vmem:[%s24 + $0x14] sm:$0xf]
  %v4873 = vld [vmem:[%s24 + $0x18] sm:$0xf]
  %v4874 = vld [vmem:[%s24 + $0x1c] sm:$0xf]
  %v4875 = vld [vmem:[%s24 + $0x20] sm:$0xf]
  %v4876 = vld [vmem:[%s24 + $0x24] sm:$0xf]
  %v4877 = vld [vmem:[%s24 + $0x28] sm:$0xf]
  %v4878 = vld [vmem:[%s24 + $0x2c] sm:$0xf]
  %v4879 = vld [vmem:[%s24 + $0x30] sm:$0xf]
  %v4880 = vld [vmem:[%s24 + $0x34] sm:$0xf]
  %v4881 = vld [vmem:[%s24 + $0x38] sm:$0xf]
  %v4882 = vld [vmem:[%s24 + $0x3c] sm:$0xf]
  %v4883 = vld [vmem:[%s24 + $0x40] sm:$0xf]
  %v4884 = vld [vmem:[%s24 + $0x44] sm:$0xf]
  %v4885 = vld [vmem:[%s24 + $0x48] sm:$0xf]
  %v4886 = vld [vmem:[%s24 + $0x4c] sm:$0xf]
  %v4887 = vld [vmem:[%s24 + $0x50] sm:$0xf]
  %v4888 = vld [vmem:[%s24 + $0x54] sm:$0xf]
  %v4889 = vld [vmem:[%s24 + $0x58] sm:$0xf]
  %v4890 = vld [vmem:[%s24 + $0x5c] sm:$0xf]
  %v4891 = vld [vmem:[%s24 + $0x60] sm:$0xf]
  %v4892 = vld [vmem:[%s24 + $0x64] sm:$0xf]
  %v4893 = vld [vmem:[%s24 + $0x68] sm:$0xf]
  %v4894 = vld [vmem:[%s24 + $0x6c] sm:$0xf]
  %v4895 = vld [vmem:[%s24 + $0x70] sm:$0xf]
  %v4896 = vld [vmem:[%s24 + $0x74] sm:$0xf]
  %v4897 = vld [vmem:[%s24 + $0x78] sm:$0xf]
  %v4898 = vld [vmem:[%s24 + $0x7c] sm:$0xf]
  %v4931 = vunpack.c.l.b16 %v4867
  %v4932 = vunpack.c.l.b16 %v4868
  %v4933 = vunpack.c.l.b16 %v4869
  %v4934 = vunpack.c.l.b16 %v4870
  %v4935 = vunpack.c.l.b16 %v4871
  %v4936 = vunpack.c.l.b16 %v4872
  %v4937 = vunpack.c.l.b16 %v4873
  %v4938 = vunpack.c.l.b16 %v4874
  %v4939 = vunpack.c.l.b16 %v4875
  %v4940 = vunpack.c.l.b16 %v4876
  %v4941 = vunpack.c.l.b16 %v4877
  %v4942 = vunpack.c.l.b16 %v4878
  %v4943 = vunpack.c.l.b16 %v4879
  %v4944 = vunpack.c.l.b16 %v4880
  %v4945 = vunpack.c.l.b16 %v4881
  %v4946 = vunpack.c.l.b16 %v4882
  %v4947 = vunpack.c.l.b16 %v4883
  %v4948 = vunpack.c.l.b16 %v4884
  %v4949 = vunpack.c.l.b16 %v4885
  %v4950 = vunpack.c.l.b16 %v4886
  %v4951 = vunpack.c.l.b16 %v4887
  %v4952 = vunpack.c.l.b16 %v4888
  %v4953 = vunpack.c.l.b16 %v4889
  %v4954 = vunpack.c.l.b16 %v4890
  %v4955 = vunpack.c.l.b16 %v4891
  %v4956 = vunpack.c.l.b16 %v4892
  %v4957 = vunpack.c.l.b16 %v4893
  %v4958 = vunpack.c.l.b16 %v4894
  %v4959 = vunpack.c.l.b16 %v4895
  %v4960 = vunpack.c.l.b16 %v4896
  %v4961 = vunpack.c.l.b16 %v4897
  %v4962 = vunpack.c.l.b16 %v4898
  %v4963 = vpack.c.b16 %v4932, %v4931
  %v4964 = vpack.c.b16 %v4934, %v4933
  %v4965 = vpack.c.b16 %v4936, %v4935
  %v4966 = vpack.c.b16 %v4938, %v4937
  %v4967 = vpack.c.b16 %v4940, %v4939
  %v4968 = vpack.c.b16 %v4942, %v4941
  %v4969 = vpack.c.b16 %v4944, %v4943
  %v4970 = vpack.c.b16 %v4946, %v4945
  %v4971 = vpack.c.b16 %v4948, %v4947
  %v4972 = vpack.c.b16 %v4950, %v4949
  %v4973 = vpack.c.b16 %v4952, %v4951
  %v4974 = vpack.c.b16 %v4954, %v4953
  %v4975 = vpack.c.b16 %v4956, %v4955
  %v4976 = vpack.c.b16 %v4958, %v4957
  %v4977 = vpack.c.b16 %v4960, %v4959
  %v4978 = vpack.c.b16 %v4962, %v4961
  %4995 = vmatprep.subr.bf16.mxu0 0
  %4996 = vmatpush1.bf16.msra.mxu0 %v4970
  %4997 = vmatprep.subr.bf16.mxu0 0
  %4998 = vmatpush1.bf16.msra.mxu0 %v4969
  %4999 = vmatprep.subr.bf16.mxu0 0
  %5000 = vmatpush1.bf16.msra.mxu0 %v4968
  %5001 = vmatprep.subr.bf16.mxu0 0
  %5002 = vmatpush1.bf16.msra.mxu0 %v4967
  %5003 = vmatprep.subr.bf16.mxu0 0
  %5004 = vmatpush1.bf16.msra.mxu0 %v4966
  %5005 = vmatprep.subr.bf16.mxu0 0
  %5006 = vmatpush1.bf16.msra.mxu0 %v4965
  %5007 = vmatprep.subr.bf16.mxu0 0
  %5008 = vmatpush1.bf16.msra.mxu0 %v4964
  %5009 = vmatprep.subr.bf16.mxu0 0
  %5010 = vmatpush1.bf16.msra.mxu0 %v4963
  %5011 = vmatprep.subr.bf16.mxu0 0
  %5012 = vmatpush2.bf16.msra.mxu0 %v4978
  %5013 = vmatprep.subr.bf16.mxu0 0
  %5014 = vmatpush2.bf16.msra.mxu0 %v4977
  %5015 = vmatprep.subr.bf16.mxu0 0
  %5016 = vmatpush2.bf16.msra.mxu0 %v4976
  %5017 = vmatprep.subr.bf16.mxu0 0
  %5018 = vmatpush2.bf16.msra.mxu0 %v4975
  %5019 = vmatprep.subr.bf16.mxu0 0
  %5020 = vmatpush2.bf16.msra.mxu0 %v4974
  %5021 = vmatprep.subr.bf16.mxu0 0
  %5022 = vmatpush2.bf16.msra.mxu0 %v4973
  %5023 = vmatprep.subr.bf16.mxu0 0
  %5024 = vmatpush2.bf16.msra.mxu0 %v4972
  %5025 = vmatprep.subr.bf16.mxu0 0
  %5026 = vmatpush2.bf16.msra.mxu0 %v4971
  %5027 = vmatprep.mubr.bf16.mxu0 %v4864
  %5028 = vmatmul.mubr.bf16.gmra.mxu0 %v4863
  %v5029 = vpop.f32.mrf.mxu0
  %v5030 = vadd.f32 0.0, %v5029
  %v5031 = vpop.f32.mrf.mxu0
  %v5032 = vpop.f32.mrf.mxu0
  %v5033 = vadd.f32 0.0, %v5032
  %v5034 = vpop.f32.mrf.mxu0
  %5035 = vmatprep.mubr.bf16.mxu0 %v4866
  %5036 = vmatmul.mubr.bf16.gmra.mxu0 %v4865
  %v5037 = vpop.f32.mrf.mxu0
  %v5038 = vadd.f32 0.0, %v5037
  %v5039 = vpop.f32.mrf.mxu0
  %v5040 = vpop.f32.mrf.mxu0
  %v5041 = vadd.f32 0.0, %v5040
  %v5042 = vpop.f32.mrf.mxu0
  %5043 = vdwg.mxu0
  %v5044 = vld [vmem:[%s19] sm:$0xf]
  %v5045 = vld [vmem:[%s19 + $0x4] sm:$0xf]
  %v5046 = vpack.c.bf16 %v5033, %v5030
  %v5047 = vpack.c.bf16 %v5041, %v5038
  %v5048 = vld [vmem:[%s20] sm:$0xff]
  %v5049 = vld [vmem:[%s20 + $0x8] sm:$0xff]
  %5051 = vset.pattern.permute.xlu0 0
  %5052 = vperm.xlu0 %5051, %v5048
  %v5053 = vpop.permute.xlu0 %5052
  %5056 = vset.pattern.permute.xlu0 0
  %5057 = vperm.xlu0 %5056, %v5049
  %v5058 = vpop.permute.xlu0 %5057
  %v5062 = vunpack.c.l.b16 %v5044
  %v5063 = vunpack.c.l.b16 %v5045
  %v5064 = vpack.c.b16 %v5063, %v5062
  %v5066 = vsel %vm4519, %v5064, 0
  %5068 = vmatprep.subr.bf16.mxu0 0
  %5069 = vmatpush1.bf16.msra.mxu0 0
  %5070 = vmatprep.subr.bf16.mxu0 0
  %5071 = vmatpush1.bf16.msra.mxu0 0
  %5072 = vmatprep.subr.bf16.mxu0 0
  %5073 = vmatpush1.bf16.msra.mxu0 0
  %5074 = vmatprep.subr.bf16.mxu0 0
  %5075 = vmatpush1.bf16.msra.mxu0 0
  %5076 = vmatprep.subr.bf16.mxu0 0
  %5077 = vmatpush1.bf16.msra.mxu0 0
  %5078 = vmatprep.subr.bf16.mxu0 0
  %5079 = vmatpush1.bf16.msra.mxu0 0
  %5080 = vmatprep.subr.bf16.mxu0 0
  %5081 = vmatpush1.bf16.msra.mxu0 %v5047
  %5082 = vmatprep.subr.bf16.mxu0 0
  %5083 = vmatpush1.bf16.msra.mxu0 %v5046
  %5084 = vmatprep.subr.bf16.mxu0 0
  %5085 = vmatpush2.bf16.msra.mxu0 0
  %5086 = vmatprep.subr.bf16.mxu0 0
  %5087 = vmatpush2.bf16.msra.mxu0 0
  %5088 = vmatprep.subr.bf16.mxu0 0
  %5089 = vmatpush2.bf16.msra.mxu0 0
  %5090 = vmatprep.subr.bf16.mxu0 0
  %5091 = vmatpush2.bf16.msra.mxu0 0
  %5092 = vmatprep.subr.bf16.mxu0 0
  %5093 = vmatpush2.bf16.msra.mxu0 0
  %5094 = vmatprep.subr.bf16.mxu0 0
  %5095 = vmatpush2.bf16.msra.mxu0 0
  %5096 = vmatprep.subr.bf16.mxu0 0
  %5097 = vmatpush2.bf16.msra.mxu0 0
  %5098 = vmatprep.subr.bf16.mxu0 0
  %5099 = vmatpush2.bf16.msra.mxu0 0
  %5100 = vmatprep.mubr.bf16.mxu0 0
  %5101 = vmatmul.mubr.bf16.gmra.mxu0 %v5066
  %v5102 = vpop.f32.mrf.mxu0
  %v5103 = vadd.f32 %v5053, %v5102
  %v5104 = vpop.f32.mrf.mxu0
  %v5105 = vpop.f32.mrf.mxu0
  %v5106 = vadd.f32 %v5058, %v5105
  %v5107 = vpop.f32.mrf.mxu0
  %5108 = vdwg.mxu0
  %5109 = vst [vmem:[%s25] sm:$0xff] %v5103
  %5110 = vst [vmem:[%s25 + $0x8] sm:$0xff] %v5106
  // Predicated region
  $region102: #{resnet_forward.1} parent=0 // pred_check
    _
  $region103: #{resnet_forward.1} parent=0 // pred_check_branch
    %5112 = sbr.rel (0) target = $region105
  $region104: #{resnet_forward.1} parent=0 // pred_region
    _
  $region105: #{resnet_forward.1} parent=0 // pred_fallthru
    _
  // Predicated region
  $region106: #{resnet_forward.1} parent=0 // pred_check
    _
  $region107: #{resnet_forward.1} parent=0 // pred_check_branch
    %5114 = sbr.rel (0) target = $region109
  $region108: #{resnet_forward.1} parent=0 // pred_region
    _
  $region109: #{resnet_forward.1} parent=0 // pred_fallthru
    _

</llo_original>
